<compile_context>
chip_gen: v5e
topology: v5e:2x2
jax: 0.10.0
libtpu: 0.0.40
codegen_flags: <defaults>
</compile_context>

<pallas_src>
import functools

import jax
import jax.numpy as jnp
from jax.experimental import pallas as pl
from jax.experimental.pallas import tpu as pltpu

LATENT_SIZE = 1536
NUM_CLASSES = 6
NUM_PROTOTYPES = 6
PROTOTYPE_SIZE = 50
PACKED = NUM_PROTOTYPES * PROTOTYPE_SIZE   # 300
EPS_PROTO = 1e-5                           # PWNet.epsilon
EPS_IN = 1e-5                              # nn.InstanceNorm1d default eps


# ----------------------------------------------------------------------------------
# Shared in-kernel math: all 6 prototype transforms applied at once on packed weights.
# ----------------------------------------------------------------------------------
def _packed_transform(x, w1, b1, w2_bd, b2, seg, seg_t):
    """x: (M, LATENT).  Returns (M, 300); columns [i*50, (i+1)*50) hold t_i(x)."""
    # Packed Linear(1536 -> 300): the single dominant matmul.
    h = jnp.dot(x, w1, preferred_element_type=jnp.float32) + b1           # (M, 300) f32
    # Per-prototype InstanceNorm1d via segment-indicator matmuls (no 50-wide slices).
    inv_n = 1.0 / PROTOTYPE_SIZE
    mean = jnp.dot(h, seg, preferred_element_type=jnp.float32) * inv_n    # (M, 6)
    ex2 = jnp.dot(h * h, seg, preferred_element_type=jnp.float32) * inv_n  # (M, 6)
    var = jnp.maximum(ex2 - mean * mean, 0.0)                             # biased variance
    inv_std = jax.lax.rsqrt(var + EPS_IN)                                 # (M, 6)
    mean_full = jnp.dot(mean, seg_t, preferred_element_type=jnp.float32)  # (M, 300)
    inv_full = jnp.dot(inv_std, seg_t, preferred_element_type=jnp.float32)
    hr = jnp.maximum((h - mean_full) * inv_full, 0.0)                     # ReLU
    # Block-diagonal Linear(50 -> 50) x 6 as one (300, 300) matmul.
    return jnp.dot(hr, w2_bd, preferred_element_type=jnp.float32) + b2    # (M, 300)


# ----------------------------------------------------------------------------------
# Kernel 1: one-shot prototype transforms (input independent, hoisted out of batch loop)
# ----------------------------------------------------------------------------------
def pwnet_proto_kernel(hx_ref, w1_ref, b1_ref, w2_ref, b2_ref, seg_ref, segt_ref, out_ref):
    seg_t = segt_ref[...]                                                  # (6, 300)
    feat = _packed_transform(hx_ref[...], w1_ref[...], b1_ref[...],
                             w2_ref[...], b2_ref[...], seg_ref[...], seg_t)  # (6, 300)
    # Row i only contributes its own 50-wide segment -> pack into a single (1, 300) row.
    out_ref[...] = jnp.sum(feat * seg_t, axis=0, keepdims=True)


# ----------------------------------------------------------------------------------
# Kernel 2: batched forward over a (TB, LATENT) tile of x
# ----------------------------------------------------------------------------------
def pwnet_batch_kernel(x_ref, w1_ref, b1_ref, w2_ref, b2_ref, seg_ref, segt_ref,
                       protos_ref, wlin_ref, out_ref):
    seg = seg_ref[...]
    feat = _packed_transform(x_ref[...], w1_ref[...], b1_ref[...],
                             w2_ref[...], b2_ref[...], seg, segt_ref[...])  # (TB, 300)
    diff = feat - protos_ref[...]                                           # (TB, 300)
    l2 = jnp.dot(diff * diff, seg, preferred_element_type=jnp.float32)      # (TB, 6)
    p_acts = jnp.log((l2 + 1.0) / (l2 + EPS_PROTO))                         # (TB, 6)
    # self.linear (bias-free): logits = p_acts @ W^T (W^T passed pre-transposed)
    logits = jnp.dot(p_acts, wlin_ref[...], preferred_element_type=jnp.float32)
    # softmax(dim=1)
    m = jnp.max(logits, axis=-1, keepdims=True)
    e = jnp.exp(logits - m)
    out_ref[...] = e / jnp.sum(e, axis=-1, keepdims=True)


# ----------------------------------------------------------------------------------
# Host-side packing + pallas_call wrappers
# ----------------------------------------------------------------------------------
def _pack_params(w1, b1, w2, b2):
    """Pack per-prototype weights into lane-friendly fused operands (layout plumbing)."""
    # w1: (6, 1536, 50) stored (in, out) per prototype -> (1536, 300)
    w1_packed = jnp.transpose(w1, (1, 0, 2)).reshape(LATENT_SIZE, PACKED)
    b1_packed = b1.reshape(1, PACKED)
    # w2: (6, 50, 50) stored (in, out) per prototype -> block-diagonal (300, 300)
    eye = jnp.eye(NUM_PROTOTYPES, dtype=w2.dtype)
    w2_bd = jnp.einsum("iab,ij->iajb", w2, eye).reshape(PACKED, PACKED)
    b2_packed = b2.reshape(1, PACKED)
    # Segment-indicator matrix S (300, 6): S[j, i] = 1 if column j belongs to prototype i.
    seg_ids = jnp.repeat(jnp.arange(NUM_PROTOTYPES), PROTOTYPE_SIZE)
    seg = (seg_ids[:, None] == jnp.arange(NUM_PROTOTYPES)[None, :]).astype(jnp.float32)
    seg_t = seg.T                                                          # (6, 300)
    return w1_packed, b1_packed, w2_bd, b2_packed, seg, seg_t


def _compute_protos(nn_human_x, w1_packed, b1_packed, w2_bd, b2_packed, seg, seg_t):
    return pl.pallas_call(
        pwnet_proto_kernel,
        out_shape=jax.ShapeDtypeStruct((1, PACKED), jnp.float32),
        grid_spec=pltpu.PrefetchScalarGridSpec(
            num_scalar_prefetch=0,
            grid=(1,),
            in_specs=[
                pl.BlockSpec((NUM_PROTOTYPES, LATENT_SIZE), lambda i: (0, 0)),
                pl.BlockSpec((LATENT_SIZE, PACKED), lambda i: (0, 0)),
                pl.BlockSpec((1, PACKED), lambda i: (0, 0)),
                pl.BlockSpec((PACKED, PACKED), lambda i: (0, 0)),
                pl.BlockSpec((1, PACKED), lambda i: (0, 0)),
                pl.BlockSpec((PACKED, NUM_PROTOTYPES), lambda i: (0, 0)),
                pl.BlockSpec((NUM_PROTOTYPES, PACKED), lambda i: (0, 0)),
            ],
            out_specs=pl.BlockSpec((1, PACKED), lambda i: (0, 0)),
        ),
        compiler_params=pltpu.CompilerParams(dimension_semantics=("arbitrary",)),
    )(nn_human_x, w1_packed, b1_packed, w2_bd, b2_packed, seg, seg_t)


@functools.partial(jax.jit, static_argnames=("block_b", "use_bf16"))
def pwnet_forward(x, nn_human_x, w1, b1, w2, b2, wlin_t, *, block_b=1024, use_bf16=False):
    """block_b=1024 is sized for v7x (64 MiB VMEM); v5e/v6e can raise it to 2048-4096.
    use_bf16=True halves HBM traffic for x / packed W1 on v6e/v7x (f32 accumulation)."""
    B = x.shape[0]
    w1_packed, b1_packed, w2_bd, b2_packed, seg, seg_t = _pack_params(w1, b1, w2, b2)

    # Input-independent prototype transforms: computed once per call, not per batch tile.
    protos = _compute_protos(nn_human_x.astype(jnp.float32), w1_packed, b1_packed,
                             w2_bd, b2_packed, seg, seg_t)                 # (1, 300)

    # Batch tiling (pad ragged batches; padded rows produce finite garbage, sliced off).
    tb = min(block_b, B)
    num_tiles = pl.cdiv(B, tb)
    padded_b = num_tiles * tb
    x_in = x if padded_b == B else jnp.pad(x, ((0, padded_b - B), (0, 0)))

    w1_main = w1_packed
    if use_bf16:
        x_in = x_in.astype(jnp.bfloat16)
        w1_main = w1_packed.astype(jnp.bfloat16)

    out = pl.pallas_call(
        pwnet_batch_kernel,
        out_shape=jax.ShapeDtypeStruct((padded_b, NUM_CLASSES), jnp.float32),
        grid_spec=pltpu.PrefetchScalarGridSpec(
            num_scalar_prefetch=0,
            grid=(num_tiles,),
            in_specs=[
                pl.BlockSpec((tb, LATENT_SIZE), lambda i: (i, 0)),          # streamed x tile
                pl.BlockSpec((LATENT_SIZE, PACKED), lambda i: (0, 0)),      # resident weights
                pl.BlockSpec((1, PACKED), lambda i: (0, 0)),
                pl.BlockSpec((PACKED, PACKED), lambda i: (0, 0)),
                pl.BlockSpec((1, PACKED), lambda i: (0, 0)),
                pl.BlockSpec((PACKED, NUM_PROTOTYPES), lambda i: (0, 0)),
                pl.BlockSpec((NUM_PROTOTYPES, PACKED), lambda i: (0, 0)),
                pl.BlockSpec((1, PACKED), lambda i: (0, 0)),
                pl.BlockSpec((NUM_PROTOTYPES, NUM_CLASSES), lambda i: (0, 0)),
            ],
            out_specs=pl.BlockSpec((tb, NUM_CLASSES), lambda i: (i, 0)),
        ),
        compiler_params=pltpu.CompilerParams(
            dimension_semantics=("parallel",),            # shards batch tiles across v7x's 2 TCs
            vmem_limit_bytes=48 * 1024 * 1024,
        ),
    )(x_in, w1_main, b1_packed, w2_bd, b2_packed, seg, seg_t, protos, wlin_t)

    return out if padded_b == B else out[:B]


# ----------------------------------------------------------------------------------
# Pure-JAX reference (mirrors the PyTorch module) and synthetic parameters
# ----------------------------------------------------------------------------------
def pwnet_reference(x, nn_human_x, w1, b1, w2, b2, wlin_t):
    def transform(inp, i):
        h = inp @ w1[i] + b1[i][None, :]
        mu = jnp.mean(h, axis=-1, keepdims=True)
        var = jnp.mean((h - mu) ** 2, axis=-1, keepdims=True)
        hr = jnp.maximum((h - mu) / jnp.sqrt(var + EPS_IN), 0.0)
        return hr @ w2[i] + b2[i][None, :]

    acts = []
    for i in range(NUM_PROTOTYPES):
        proto = transform(nn_human_x[i:i + 1], i)        # (1, 50)
        feat = transform(x, i)                           # (B, 50)
        l2 = jnp.sum((feat - proto) ** 2, axis=-1)
        acts.append(jnp.log((l2 + 1.0) / (l2 + EPS_PROTO)))
    p_acts = jnp.stack(acts, axis=1)                     # (B, 6)
    return jax.nn.softmax(p_acts @ wlin_t, axis=1)


def make_params(key):
    """Deterministic synthetic parameters with the shapes PWNet.__init__ implies."""
    ks = jax.random.split(key, 6)
    nn_human_x = jax.random.normal(ks[0], (NUM_PROTOTYPES, LATENT_SIZE), jnp.float32)
    # per-prototype Linear weights, stored pre-transposed to (in, out)
    w1 = 0.02 * jax.random.normal(ks[1], (NUM_PROTOTYPES, LATENT_SIZE, PROTOTYPE_SIZE), jnp.float32)
    b1 = 0.01 * jax.random.normal(ks[2], (NUM_PROTOTYPES, PROTOTYPE_SIZE), jnp.float32)
    w2 = 0.10 * jax.random.normal(ks[3], (NUM_PROTOTYPES, PROTOTYPE_SIZE, PROTOTYPE_SIZE), jnp.float32)
    b2 = 0.01 * jax.random.normal(ks[4], (NUM_PROTOTYPES, PROTOTYPE_SIZE), jnp.float32)
    # __make_linear_weights: class-identity connections (num_per_class == 1)
    n_per_class = NUM_PROTOTYPES // NUM_CLASSES
    rows = jnp.arange(NUM_PROTOTYPES)
    proto_class_identity = jnp.zeros((NUM_PROTOTYPES, NUM_CLASSES), jnp.float32)
    proto_class_identity = proto_class_identity.at[rows, rows // n_per_class].set(1.0)
    w_linear = proto_class_identity.T                    # PyTorch (out, in) layout
    wlin_t = w_linear.T                                  # (NUM_PROTOTYPES, NUM_CLASSES)
    return nn_human_x, w1, b1, w2, b2, wlin_t


if __name__ == "__main__":
    key = jax.random.PRNGKey(0)
    k_x, k_p = jax.random.split(key)

    B = 2
    x = jax.random.normal(k_x, (B, LATENT_SIZE), jnp.float32)
    nn_human_x, w1, b1, w2, b2, wlin_t = make_params(k_p)

    out = pwnet_forward(x, nn_human_x, w1, b1, w2, b2, wlin_t)
    out = jax.block_until_ready(out)

    assert out.shape == (B, NUM_CLASSES)
    assert bool(jnp.all(jnp.isfinite(out)))
    # softmax rows must sum to 1
    assert bool(jnp.all(jnp.abs(jnp.sum(out, axis=-1) - 1.0) < 1e-3))
    # match the straightforward per-prototype reference
    ref = pwnet_reference(x, nn_human_x, w1, b1, w2, b2, wlin_t)
    assert bool(jnp.all(jnp.abs(out - ref) < 1e-3))

    print("KERNEL_OK")
</pallas_src>

<mosaic_0001>
module attributes {stable_mosaic.version = 11 : i64} {
  func.func @pwnet_batch_kernel(%arg0: i32, %arg1: memref<2x1536xf32, #tpu.memory_space<vmem>>, %arg2: memref<1536x300xf32, #tpu.memory_space<vmem>>, %arg3: memref<1x300xf32, #tpu.memory_space<vmem>>, %arg4: memref<300x300xf32, #tpu.memory_space<vmem>>, %arg5: memref<1x300xf32, #tpu.memory_space<vmem>>, %arg6: memref<300x6xf32, #tpu.memory_space<vmem>>, %arg7: memref<6x300xf32, #tpu.memory_space<vmem>>, %arg8: memref<1x300xf32, #tpu.memory_space<vmem>>, %arg9: memref<6x6xf32, #tpu.memory_space<vmem>>, %arg10: memref<2x6xf32, #tpu.memory_space<vmem>>) attributes {dimension_semantics = [#tpu.dimension_semantics<parallel>], iteration_bounds = array<i64: 1>, scalar_prefetch = 0 : i64, scratch_operands = 0 : i64, tpu.core_type = #tpu.core_type<tc>, window_params = [{transform_indices = @transform_0, window_bounds = array<i64: 2, 1536>}, {pipeline_mode = #tpu.pipeline_mode<synchronous>, transform_indices = @transform_1, window_bounds = array<i64: 1536, 300>}, {pipeline_mode = #tpu.pipeline_mode<synchronous>, transform_indices = @transform_2, window_bounds = array<i64: 1, 300>}, {pipeline_mode = #tpu.pipeline_mode<synchronous>, transform_indices = @transform_3, window_bounds = array<i64: 300, 300>}, {pipeline_mode = #tpu.pipeline_mode<synchronous>, transform_indices = @transform_4, window_bounds = array<i64: 1, 300>}, {pipeline_mode = #tpu.pipeline_mode<synchronous>, transform_indices = @transform_5, window_bounds = array<i64: 300, 6>}, {pipeline_mode = #tpu.pipeline_mode<synchronous>, transform_indices = @transform_6, window_bounds = array<i64: 6, 300>}, {pipeline_mode = #tpu.pipeline_mode<synchronous>, transform_indices = @transform_7, window_bounds = array<i64: 1, 300>}, {pipeline_mode = #tpu.pipeline_mode<synchronous>, transform_indices = @transform_8, window_bounds = array<i64: 6, 6>}, {transform_indices = @transform_9, window_bounds = array<i64: 2, 6>}]} {
    %c0 = arith.constant 0 : index
    %c0_0 = arith.constant 0 : index
    %0 = vector.load %arg6[%c0, %c0_0] : memref<300x6xf32, #tpu.memory_space<vmem>>, vector<300x6xf32>
    %c0_1 = arith.constant 0 : index
    %c0_2 = arith.constant 0 : index
    %1 = vector.load %arg1[%c0_1, %c0_2] : memref<2x1536xf32, #tpu.memory_space<vmem>>, vector<2x1536xf32>
    %c0_3 = arith.constant 0 : index
    %c0_4 = arith.constant 0 : index
    %2 = vector.load %arg2[%c0_3, %c0_4] : memref<1536x300xf32, #tpu.memory_space<vmem>>, vector<1536x300xf32>
    %c0_5 = arith.constant 0 : index
    %c0_6 = arith.constant 0 : index
    %3 = vector.load %arg3[%c0_5, %c0_6] : memref<1x300xf32, #tpu.memory_space<vmem>>, vector<1x300xf32>
    %c0_7 = arith.constant 0 : index
    %c0_8 = arith.constant 0 : index
    %4 = vector.load %arg4[%c0_7, %c0_8] : memref<300x300xf32, #tpu.memory_space<vmem>>, vector<300x300xf32>
    %c0_9 = arith.constant 0 : index
    %c0_10 = arith.constant 0 : index
    %5 = vector.load %arg5[%c0_9, %c0_10] : memref<1x300xf32, #tpu.memory_space<vmem>>, vector<1x300xf32>
    %c0_11 = arith.constant 0 : index
    %c0_12 = arith.constant 0 : index
    %6 = vector.load %arg7[%c0_11, %c0_12] : memref<6x300xf32, #tpu.memory_space<vmem>>, vector<6x300xf32>
    %cst = arith.constant dense<0.000000e+00> : vector<2x300xf32>
    %7 = tpu.matmul %1, %2, %cst {dimension_numbers = #tpu.dot_dimension_numbers<[1], [0], [0], [1], [0, 0, 1, 1], [], []>} : vector<2x1536xf32>, vector<1536x300xf32>, vector<2x300xf32> -> vector<2x300xf32>
    %8 = vector.broadcast %3 : vector<1x300xf32> to vector<2x300xf32>
    %9 = arith.addf %7, %8 : vector<2x300xf32>
    %cst_13 = arith.constant dense<0.000000e+00> : vector<2x6xf32>
    %10 = tpu.matmul %9, %0, %cst_13 {dimension_numbers = #tpu.dot_dimension_numbers<[1], [0], [0], [1], [0, 0, 1, 1], [], []>} : vector<2x300xf32>, vector<300x6xf32>, vector<2x6xf32> -> vector<2x6xf32>
    %cst_14 = arith.constant 2.000000e-02 : f32
    %11 = vector.broadcast %cst_14 : f32 to vector<2x6xf32>
    %12 = arith.mulf %10, %11 : vector<2x6xf32>
    %13 = arith.mulf %9, %9 : vector<2x300xf32>
    %cst_15 = arith.constant dense<0.000000e+00> : vector<2x6xf32>
    %14 = tpu.matmul %13, %0, %cst_15 {dimension_numbers = #tpu.dot_dimension_numbers<[1], [0], [0], [1], [0, 0, 1, 1], [], []>} : vector<2x300xf32>, vector<300x6xf32>, vector<2x6xf32> -> vector<2x6xf32>
    %cst_16 = arith.constant 2.000000e-02 : f32
    %15 = vector.broadcast %cst_16 : f32 to vector<2x6xf32>
    %16 = arith.mulf %14, %15 : vector<2x6xf32>
    %17 = arith.mulf %12, %12 : vector<2x6xf32>
    %18 = arith.subf %16, %17 : vector<2x6xf32>
    %cst_17 = arith.constant 0.000000e+00 : f32
    %19 = vector.broadcast %cst_17 : f32 to vector<2x6xf32>
    %20 = arith.maximumf %18, %19 : vector<2x6xf32>
    %cst_18 = arith.constant 9.99999974E-6 : f32
    %21 = vector.broadcast %cst_18 : f32 to vector<2x6xf32>
    %22 = arith.addf %20, %21 : vector<2x6xf32>
    %23 = math.rsqrt %22 : vector<2x6xf32>
    %cst_19 = arith.constant dense<0.000000e+00> : vector<2x300xf32>
    %24 = tpu.matmul %12, %6, %cst_19 {dimension_numbers = #tpu.dot_dimension_numbers<[1], [0], [0], [1], [0, 0, 1, 1], [], []>} : vector<2x6xf32>, vector<6x300xf32>, vector<2x300xf32> -> vector<2x300xf32>
    %cst_20 = arith.constant dense<0.000000e+00> : vector<2x300xf32>
    %25 = tpu.matmul %23, %6, %cst_20 {dimension_numbers = #tpu.dot_dimension_numbers<[1], [0], [0], [1], [0, 0, 1, 1], [], []>} : vector<2x6xf32>, vector<6x300xf32>, vector<2x300xf32> -> vector<2x300xf32>
    %26 = arith.subf %9, %24 : vector<2x300xf32>
    %27 = arith.mulf %26, %25 : vector<2x300xf32>
    %cst_21 = arith.constant 0.000000e+00 : f32
    %28 = vector.broadcast %cst_21 : f32 to vector<2x300xf32>
    %29 = arith.maximumf %27, %28 : vector<2x300xf32>
    %cst_22 = arith.constant dense<0.000000e+00> : vector<2x300xf32>
    %30 = tpu.matmul %29, %4, %cst_22 {dimension_numbers = #tpu.dot_dimension_numbers<[1], [0], [0], [1], [0, 0, 1, 1], [], []>} : vector<2x300xf32>, vector<300x300xf32>, vector<2x300xf32> -> vector<2x300xf32>
    %31 = vector.broadcast %5 : vector<1x300xf32> to vector<2x300xf32>
    %32 = arith.addf %30, %31 : vector<2x300xf32>
    %c0_23 = arith.constant 0 : index
    %c0_24 = arith.constant 0 : index
    %33 = vector.load %arg8[%c0_23, %c0_24] : memref<1x300xf32, #tpu.memory_space<vmem>>, vector<1x300xf32>
    %34 = vector.broadcast %33 : vector<1x300xf32> to vector<2x300xf32>
    %35 = arith.subf %32, %34 : vector<2x300xf32>
    %36 = arith.mulf %35, %35 : vector<2x300xf32>
    %cst_25 = arith.constant dense<0.000000e+00> : vector<2x6xf32>
    %37 = tpu.matmul %36, %0, %cst_25 {dimension_numbers = #tpu.dot_dimension_numbers<[1], [0], [0], [1], [0, 0, 1, 1], [], []>} : vector<2x300xf32>, vector<300x6xf32>, vector<2x6xf32> -> vector<2x6xf32>
    %cst_26 = arith.constant 1.000000e+00 : f32
    %38 = vector.broadcast %cst_26 : f32 to vector<2x6xf32>
    %39 = arith.addf %37, %38 : vector<2x6xf32>
    %cst_27 = arith.constant 9.99999974E-6 : f32
    %40 = vector.broadcast %cst_27 : f32 to vector<2x6xf32>
    %41 = arith.addf %37, %40 : vector<2x6xf32>
    %42 = arith.divf %39, %41 : vector<2x6xf32>
    %43 = math.log %42 : vector<2x6xf32>
    %c0_28 = arith.constant 0 : index
    %c0_29 = arith.constant 0 : index
    %44 = vector.load %arg9[%c0_28, %c0_29] : memref<6x6xf32, #tpu.memory_space<vmem>>, vector<6x6xf32>
    %cst_30 = arith.constant dense<0.000000e+00> : vector<2x6xf32>
    %45 = tpu.matmul %43, %44, %cst_30 {dimension_numbers = #tpu.dot_dimension_numbers<[1], [0], [0], [1], [0, 0, 1, 1], [], []>} : vector<2x6xf32>, vector<6x6xf32>, vector<2x6xf32> -> vector<2x6xf32>
    %cst_31 = arith.constant dense<0xFF800000> : vector<2xf32>
    %46 = vector.multi_reduction <maximumf>, %45, %cst_31 [1] : vector<2x6xf32> to vector<2xf32>
    %47 = vector.shape_cast %46 : vector<2xf32> to vector<2x1xf32>
    %48 = vector.broadcast %47 : vector<2x1xf32> to vector<2x6xf32>
    %49 = arith.subf %45, %48 : vector<2x6xf32>
    %50 = math.exp %49 : vector<2x6xf32>
    %cst_32 = arith.constant dense<0.000000e+00> : vector<2xf32>
    %51 = vector.multi_reduction <add>, %50, %cst_32 [1] : vector<2x6xf32> to vector<2xf32>
    %52 = vector.shape_cast %51 : vector<2xf32> to vector<2x1xf32>
    %53 = vector.broadcast %52 : vector<2x1xf32> to vector<2x6xf32>
    %54 = arith.divf %50, %53 : vector<2x6xf32>
    %c0_33 = arith.constant 0 : index
    %c0_34 = arith.constant 0 : index
    %55 = vector.load %arg10[%c0_33, %c0_34] : memref<2x6xf32, #tpu.memory_space<vmem>>, vector<2x6xf32>
    tpu.vector_store %arg10[%c0_33, %c0_34], %54 {strides = array<i32>} : memref<2x6xf32, #tpu.memory_space<vmem>>, vector<2x6xf32>,
    return
  }
  func.func @transform_0(%arg0: i32) -> (i32, i32) {
    %c0_i32 = arith.constant 0 : i32
    %c0_i32_0 = arith.constant 0 : i32
    return %arg0, %c0_i32 : i32, i32
  }
  func.func @transform_1(%arg0: i32) -> (i32, i32) {
    %c0_i32 = arith.constant 0 : i32
    %c0_i32_0 = arith.constant 0 : i32
    %c0_i32_1 = arith.constant 0 : i32
    return %c0_i32, %c0_i32_0 : i32, i32
  }
  func.func @transform_2(%arg0: i32) -> (i32, i32) {
    %c0_i32 = arith.constant 0 : i32
    %c0_i32_0 = arith.constant 0 : i32
    %c0_i32_1 = arith.constant 0 : i32
    return %c0_i32, %c0_i32_0 : i32, i32
  }
  func.func @transform_3(%arg0: i32) -> (i32, i32) {
    %c0_i32 = arith.constant 0 : i32
    %c0_i32_0 = arith.constant 0 : i32
    %c0_i32_1 = arith.constant 0 : i32
    return %c0_i32, %c0_i32_0 : i32, i32
  }
  func.func @transform_4(%arg0: i32) -> (i32, i32) {
    %c0_i32 = arith.constant 0 : i32
    %c0_i32_0 = arith.constant 0 : i32
    %c0_i32_1 = arith.constant 0 : i32
    return %c0_i32, %c0_i32_0 : i32, i32
  }
  func.func @transform_5(%arg0: i32) -> (i32, i32) {
    %c0_i32 = arith.constant 0 : i32
    %c0_i32_0 = arith.constant 0 : i32
    %c0_i32_1 = arith.constant 0 : i32
    return %c0_i32, %c0_i32_0 : i32, i32
  }
  func.func @transform_6(%arg0: i32) -> (i32, i32) {
    %c0_i32 = arith.constant 0 : i32
    %c0_i32_0 = arith.constant 0 : i32
    %c0_i32_1 = arith.constant 0 : i32
    return %c0_i32, %c0_i32_0 : i32, i32
  }
  func.func @transform_7(%arg0: i32) -> (i32, i32) {
    %c0_i32 = arith.constant 0 : i32
    %c0_i32_0 = arith.constant 0 : i32
    %c0_i32_1 = arith.constant 0 : i32
    return %c0_i32, %c0_i32_0 : i32, i32
  }
  func.func @transform_8(%arg0: i32) -> (i32, i32) {
    %c0_i32 = arith.constant 0 : i32
    %c0_i32_0 = arith.constant 0 : i32
    %c0_i32_1 = arith.constant 0 : i32
    return %c0_i32, %c0_i32_0 : i32, i32
  }
  func.func @transform_9(%arg0: i32) -> (i32, i32) {
    %c0_i32 = arith.constant 0 : i32
    %c0_i32_0 = arith.constant 0 : i32
    return %arg0, %c0_i32 : i32, i32
  }
}

module attributes {stable_mosaic.version = 11 : i64} {
  func.func @pwnet_proto_kernel(%arg0: i32, %arg1: memref<6x1536xf32, #tpu.memory_space<vmem>>, %arg2: memref<1536x300xf32, #tpu.memory_space<vmem>>, %arg3: memref<1x300xf32, #tpu.memory_space<vmem>>, %arg4: memref<300x300xf32, #tpu.memory_space<vmem>>, %arg5: memref<1x300xf32, #tpu.memory_space<vmem>>, %arg6: memref<300x6xf32, #tpu.memory_space<vmem>>, %arg7: memref<6x300xf32, #tpu.memory_space<vmem>>, %arg8: memref<1x300xf32, #tpu.memory_space<vmem>>) attributes {dimension_semantics = [#tpu.dimension_semantics<arbitrary>], iteration_bounds = array<i64: 1>, scalar_prefetch = 0 : i64, scratch_operands = 0 : i64, tpu.core_type = #tpu.core_type<tc>, window_params = [{pipeline_mode = #tpu.pipeline_mode<synchronous>, transform_indices = @transform_0, window_bounds = array<i64: 6, 1536>}, {pipeline_mode = #tpu.pipeline_mode<synchronous>, transform_indices = @transform_1, window_bounds = array<i64: 1536, 300>}, {pipeline_mode = #tpu.pipeline_mode<synchronous>, transform_indices = @transform_2, window_bounds = array<i64: 1, 300>}, {pipeline_mode = #tpu.pipeline_mode<synchronous>, transform_indices = @transform_3, window_bounds = array<i64: 300, 300>}, {pipeline_mode = #tpu.pipeline_mode<synchronous>, transform_indices = @transform_4, window_bounds = array<i64: 1, 300>}, {pipeline_mode = #tpu.pipeline_mode<synchronous>, transform_indices = @transform_5, window_bounds = array<i64: 300, 6>}, {pipeline_mode = #tpu.pipeline_mode<synchronous>, transform_indices = @transform_6, window_bounds = array<i64: 6, 300>}, {pipeline_mode = #tpu.pipeline_mode<synchronous>, transform_indices = @transform_7, window_bounds = array<i64: 1, 300>}]} {
    %c0 = arith.constant 0 : index
    %c0_0 = arith.constant 0 : index
    %0 = vector.load %arg7[%c0, %c0_0] : memref<6x300xf32, #tpu.memory_space<vmem>>, vector<6x300xf32>
    %c0_1 = arith.constant 0 : index
    %c0_2 = arith.constant 0 : index
    %1 = vector.load %arg1[%c0_1, %c0_2] : memref<6x1536xf32, #tpu.memory_space<vmem>>, vector<6x1536xf32>
    %c0_3 = arith.constant 0 : index
    %c0_4 = arith.constant 0 : index
    %2 = vector.load %arg2[%c0_3, %c0_4] : memref<1536x300xf32, #tpu.memory_space<vmem>>, vector<1536x300xf32>
    %c0_5 = arith.constant 0 : index
    %c0_6 = arith.constant 0 : index
    %3 = vector.load %arg3[%c0_5, %c0_6] : memref<1x300xf32, #tpu.memory_space<vmem>>, vector<1x300xf32>
    %c0_7 = arith.constant 0 : index
    %c0_8 = arith.constant 0 : index
    %4 = vector.load %arg4[%c0_7, %c0_8] : memref<300x300xf32, #tpu.memory_space<vmem>>, vector<300x300xf32>
    %c0_9 = arith.constant 0 : index
    %c0_10 = arith.constant 0 : index
    %5 = vector.load %arg5[%c0_9, %c0_10] : memref<1x300xf32, #tpu.memory_space<vmem>>, vector<1x300xf32>
    %c0_11 = arith.constant 0 : index
    %c0_12 = arith.constant 0 : index
    %6 = vector.load %arg6[%c0_11, %c0_12] : memref<300x6xf32, #tpu.memory_space<vmem>>, vector<300x6xf32>
    %cst = arith.constant dense<0.000000e+00> : vector<6x300xf32>
    %7 = tpu.matmul %1, %2, %cst {dimension_numbers = #tpu.dot_dimension_numbers<[1], [0], [0], [1], [0, 0, 1, 1], [], []>} : vector<6x1536xf32>, vector<1536x300xf32>, vector<6x300xf32> -> vector<6x300xf32>
    %8 = vector.broadcast %3 : vector<1x300xf32> to vector<6x300xf32>
    %9 = arith.addf %7, %8 : vector<6x300xf32>
    %cst_13 = arith.constant dense<0.000000e+00> : vector<6x6xf32>
    %10 = tpu.matmul %9, %6, %cst_13 {dimension_numbers = #tpu.dot_dimension_numbers<[1], [0], [0], [1], [0, 0, 1, 1], [], []>} : vector<6x300xf32>, vector<300x6xf32>, vector<6x6xf32> -> vector<6x6xf32>
    %cst_14 = arith.constant 2.000000e-02 : f32
    %11 = vector.broadcast %cst_14 : f32 to vector<6x6xf32>
    %12 = arith.mulf %10, %11 : vector<6x6xf32>
    %13 = arith.mulf %9, %9 : vector<6x300xf32>
    %cst_15 = arith.constant dense<0.000000e+00> : vector<6x6xf32>
    %14 = tpu.matmul %13, %6, %cst_15 {dimension_numbers = #tpu.dot_dimension_numbers<[1], [0], [0], [1], [0, 0, 1, 1], [], []>} : vector<6x300xf32>, vector<300x6xf32>, vector<6x6xf32> -> vector<6x6xf32>
    %cst_16 = arith.constant 2.000000e-02 : f32
    %15 = vector.broadcast %cst_16 : f32 to vector<6x6xf32>
    %16 = arith.mulf %14, %15 : vector<6x6xf32>
    %17 = arith.mulf %12, %12 : vector<6x6xf32>
    %18 = arith.subf %16, %17 : vector<6x6xf32>
    %cst_17 = arith.constant 0.000000e+00 : f32
    %19 = vector.broadcast %cst_17 : f32 to vector<6x6xf32>
    %20 = arith.maximumf %18, %19 : vector<6x6xf32>
    %cst_18 = arith.constant 9.99999974E-6 : f32
    %21 = vector.broadcast %cst_18 : f32 to vector<6x6xf32>
    %22 = arith.addf %20, %21 : vector<6x6xf32>
    %23 = math.rsqrt %22 : vector<6x6xf32>
    %cst_19 = arith.constant dense<0.000000e+00> : vector<6x300xf32>
    %24 = tpu.matmul %12, %0, %cst_19 {dimension_numbers = #tpu.dot_dimension_numbers<[1], [0], [0], [1], [0, 0, 1, 1], [], []>} : vector<6x6xf32>, vector<6x300xf32>, vector<6x300xf32> -> vector<6x300xf32>
    %cst_20 = arith.constant dense<0.000000e+00> : vector<6x300xf32>
    %25 = tpu.matmul %23, %0, %cst_20 {dimension_numbers = #tpu.dot_dimension_numbers<[1], [0], [0], [1], [0, 0, 1, 1], [], []>} : vector<6x6xf32>, vector<6x300xf32>, vector<6x300xf32> -> vector<6x300xf32>
    %26 = arith.subf %9, %24 : vector<6x300xf32>
    %27 = arith.mulf %26, %25 : vector<6x300xf32>
    %cst_21 = arith.constant 0.000000e+00 : f32
    %28 = vector.broadcast %cst_21 : f32 to vector<6x300xf32>
    %29 = arith.maximumf %27, %28 : vector<6x300xf32>
    %cst_22 = arith.constant dense<0.000000e+00> : vector<6x300xf32>
    %30 = tpu.matmul %29, %4, %cst_22 {dimension_numbers = #tpu.dot_dimension_numbers<[1], [0], [0], [1], [0, 0, 1, 1], [], []>} : vector<6x300xf32>, vector<300x300xf32>, vector<6x300xf32> -> vector<6x300xf32>
    %31 = vector.broadcast %5 : vector<1x300xf32> to vector<6x300xf32>
    %32 = arith.addf %30, %31 : vector<6x300xf32>
    %33 = arith.mulf %32, %0 : vector<6x300xf32>
    %cst_23 = arith.constant dense<0.000000e+00> : vector<300xf32>
    %34 = vector.multi_reduction <add>, %33, %cst_23 [0] : vector<6x300xf32> to vector<300xf32>
    %35 = vector.shape_cast %34 : vector<300xf32> to vector<1x300xf32>
    %c0_24 = arith.constant 0 : index
    %c0_25 = arith.constant 0 : index
    %36 = vector.load %arg8[%c0_24, %c0_25] : memref<1x300xf32, #tpu.memory_space<vmem>>, vector<1x300xf32>
    tpu.vector_store %arg8[%c0_24, %c0_25], %35 {strides = array<i32>} : memref<1x300xf32, #tpu.memory_space<vmem>>, vector<1x300xf32>,
    return
  }
  func.func @transform_0(%arg0: i32) -> (i32, i32) {
    %c0_i32 = arith.constant 0 : i32
    %c0_i32_0 = arith.constant 0 : i32
    %c0_i32_1 = arith.constant 0 : i32
    return %c0_i32, %c0_i32_0 : i32, i32
  }
  func.func @transform_1(%arg0: i32) -> (i32, i32) {
    %c0_i32 = arith.constant 0 : i32
    %c0_i32_0 = arith.constant 0 : i32
    %c0_i32_1 = arith.constant 0 : i32
    return %c0_i32, %c0_i32_0 : i32, i32
  }
  func.func @transform_2(%arg0: i32) -> (i32, i32) {
    %c0_i32 = arith.constant 0 : i32
    %c0_i32_0 = arith.constant 0 : i32
    %c0_i32_1 = arith.constant 0 : i32
    return %c0_i32, %c0_i32_0 : i32, i32
  }
  func.func @transform_3(%arg0: i32) -> (i32, i32) {
    %c0_i32 = arith.constant 0 : i32
    %c0_i32_0 = arith.constant 0 : i32
    %c0_i32_1 = arith.constant 0 : i32
    return %c0_i32, %c0_i32_0 : i32, i32
  }
  func.func @transform_4(%arg0: i32) -> (i32, i32) {
    %c0_i32 = arith.constant 0 : i32
    %c0_i32_0 = arith.constant 0 : i32
    %c0_i32_1 = arith.constant 0 : i32
    return %c0_i32, %c0_i32_0 : i32, i32
  }
  func.func @transform_5(%arg0: i32) -> (i32, i32) {
    %c0_i32 = arith.constant 0 : i32
    %c0_i32_0 = arith.constant 0 : i32
    %c0_i32_1 = arith.constant 0 : i32
    return %c0_i32, %c0_i32_0 : i32, i32
  }
  func.func @transform_6(%arg0: i32) -> (i32, i32) {
    %c0_i32 = arith.constant 0 : i32
    %c0_i32_0 = arith.constant 0 : i32
    %c0_i32_1 = arith.constant 0 : i32
    return %c0_i32, %c0_i32_0 : i32, i32
  }
  func.func @transform_7(%arg0: i32) -> (i32, i32) {
    %c0_i32 = arith.constant 0 : i32
    %c0_i32_0 = arith.constant 0 : i32
    %c0_i32_1 = arith.constant 0 : i32
    return %c0_i32, %c0_i32_0 : i32, i32
  }
}

</mosaic_0001>

<llo_original>
// kernel: eq.10
$region0: #{eq.10}
  %s0 = inlined_call_operand.vmem [shape: s32[6,50], index: 0, kind: input, shape index: {}]
  %s1 = inlined_call_operand.vmem [shape: s32[300], index: 1, kind: output, shape index: {}]
  $region1: #{eq.10} parent=0
    #allocation0 [shape = 'u8[4096]{0}', space=vmem, size = 0x1000, scoped, tag = 'scoped mem for output reshape']
    %v2 = vld [vmem:[%s0] sm:$0x1]
    %vm3 = vcmask 408576
    %4 = vst.msk [vmem:[#allocation0] sm:$0x1] %vm3, %v2
    %s5 = scalar_lea.vmem %s0, 5
    %v6 = vld [vmem:[%s5] sm:$0x1]
    %s7 = scalar_lea.vmem %s0, 5
    %v8 = vld [vmem:[%s7] sm:$0x1]
    %vm9 = vcmask 48128
    %v10 = vsel %vm9, %v8, %v6
    %11 = vrot.lane.b32.xlu0 %v10, 122
    %v12 = vpop.permute.xlu0 %11
    %vm13 = vcmask 359424
    %s14 = scalar_lea.vmem [#allocation0], 2
    %15 = vst.msk [vmem:[%s14] sm:$0x1] %vm13, %v12
    %vm16 = vcmask 1048528
    %s17 = scalar_lea.vmem [#allocation0], 1
    %18 = vst.msk [vmem:[%s17] sm:$0x1] %vm16, %v12
    %s19 = scalar_lea.vmem %s0, 2
    %v20 = vld [vmem:[%s19] sm:$0x1]
    %s21 = scalar_lea.vmem %s0, 2
    %v22 = vld [vmem:[%s21] sm:$0x1]
    %vm23 = vcmask 228352
    %v24 = vsel %vm23, %v22, %v20
    %25 = vrot.lane.b32.xlu0 %v24, 100
    %v26 = vpop.permute.xlu0 %25
    %vm27 = vcmask 179200
    %s28 = scalar_lea.vmem [#allocation0], 1
    %29 = vst.msk [vmem:[%s28] sm:$0x1] %vm27, %v26
    %vm30 = vcmask 1048352
    %31 = vst.msk [vmem:[#allocation0] sm:$0x1] %vm30, %v26
    %s32 = scalar_lea.vmem %s0, 4
    %v33 = vld [vmem:[%s32] sm:$0x1]
    %34 = vrot.lane.b32.xlu0 %v33, 72
    %v35 = vpop.permute.xlu0 %34
    %vm36 = vcmask 998976
    %s37 = scalar_lea.vmem [#allocation0], 1
    %38 = vst.msk [vmem:[%s37] sm:$0x1] %vm36, %v35
    %s39 = scalar_lea.vmem %s0, 1
    %v40 = vld [vmem:[%s39] sm:$0x1]
    %41 = vrot.lane.b32.xlu0 %v40, 50
    %v42 = vpop.permute.xlu0 %41
    %vm43 = vcmask 818576
    %44 = vst.msk [vmem:[#allocation0] sm:$0x1] %vm43, %v42
    %s45 = scalar_lea.vmem %s0, 3
    %v46 = vld [vmem:[%s45] sm:$0x1]
    %47 = vrot.lane.b32.xlu0 %v46, 22
    %v48 = vpop.permute.xlu0 %47
    %vm49 = vcmask 588976
    %s50 = scalar_lea.vmem [#allocation0], 1
    %51 = vst.msk [vmem:[%s50] sm:$0x1] %vm49, %v48
    %s53 = ssub.s32 16, 1
    %v54 = vld [vmem:[#allocation0] sm:%s53]
    %s56 = ssub.s32 16, 1
    %57 = vst [vmem:[%s1] sm:%s56] %v54

// kernel: pwnet_forward.2
$region0: #{pwnet_forward.2}
  #allocation0 [shape = 'u32[]', space=smem, size = 0x4, offset = 0x4, fixed_abs, tag = 'smem constant byte address 0x4 - core index']
  #allocation1 [shape = 'u32[72,128]{1,0:T(1,128)}', space=vmem, size = 0x9000, scoped, tag = 'internal scratch']
  %s0 = inlined_call_operand.vmem [shape: f32[6,1536], index: 0, kind: input, shape index: {}]
  %s1 = inlined_call_operand.vmem [shape: f32[1536,300], index: 1, kind: input, shape index: {}]
  %s2 = inlined_call_operand.vmem [shape: f32[1,300], index: 2, kind: input, shape index: {}]
  %s3 = inlined_call_operand.vmem [shape: f32[300,300], index: 3, kind: input, shape index: {}]
  %s4 = inlined_call_operand.vmem [shape: f32[1,300], index: 4, kind: input, shape index: {}]
  %s5 = inlined_call_operand.vmem [shape: f32[300,6], index: 5, kind: input, shape index: {}]
  %s6 = inlined_call_operand.vmem [shape: f32[6,300], index: 6, kind: input, shape index: {}]
  %s7 = inlined_call_operand.vmem [shape: f32[1,300], index: 7, kind: output, shape index: {}]
  %s8 = sld [smem:[#allocation0]]
  $region38: #{pwnet_forward.2} parent=0
    _
  %s10 = ssub.s32 1, %s8
  %s11 = scalar_select 0, %s10, %s8
  // Predicated region
  $region2: #{pwnet_forward.2} parent=0 // pred_check
    _
  $region3: #{pwnet_forward.2} parent=0 // pred_check_branch
    %13 = sbr.rel (0) target = $region5
  $region4: #{pwnet_forward.2} parent=0 // pred_region
    _
  $region5: #{pwnet_forward.2} parent=0 // pred_fallthru
    _
  // Predicated region
  $region6: #{pwnet_forward.2} parent=0 // pred_check
    _
  $region7: #{pwnet_forward.2} parent=0 // pred_check_branch
    %15 = sbr.rel (0) target = $region9
  $region8: #{pwnet_forward.2} parent=0 // pred_region
    _
  $region9: #{pwnet_forward.2} parent=0 // pred_fallthru
    _
  // Predicated region
  $region10: #{pwnet_forward.2} parent=0 // pred_check
    _
  $region11: #{pwnet_forward.2} parent=0 // pred_check_branch
    %17 = sbr.rel (0) target = $region13
  $region12: #{pwnet_forward.2} parent=0 // pred_region
    _
  $region13: #{pwnet_forward.2} parent=0 // pred_fallthru
    _
  // Predicated region
  $region14: #{pwnet_forward.2} parent=0 // pred_check
    _
  $region15: #{pwnet_forward.2} parent=0 // pred_check_branch
    %19 = sbr.rel (0) target = $region17
  $region16: #{pwnet_forward.2} parent=0 // pred_region
    _
  $region17: #{pwnet_forward.2} parent=0 // pred_fallthru
    _
  // Predicated region
  $region18: #{pwnet_forward.2} parent=0 // pred_check
    _
  $region19: #{pwnet_forward.2} parent=0 // pred_check_branch
    %21 = sbr.rel (0) target = $region21
  $region20: #{pwnet_forward.2} parent=0 // pred_region
    _
  $region21: #{pwnet_forward.2} parent=0 // pred_fallthru
    _
  // Predicated region
  $region22: #{pwnet_forward.2} parent=0 // pred_check
    _
  $region23: #{pwnet_forward.2} parent=0 // pred_check_branch
    %23 = sbr.rel (0) target = $region25
  $region24: #{pwnet_forward.2} parent=0 // pred_region
    _
  $region25: #{pwnet_forward.2} parent=0 // pred_fallthru
    _
  // Predicated region
  $region26: #{pwnet_forward.2} parent=0 // pred_check
    _
  $region27: #{pwnet_forward.2} parent=0 // pred_check_branch
    %25 = sbr.rel (0) target = $region29
  $region28: #{pwnet_forward.2} parent=0 // pred_region
    _
  $region29: #{pwnet_forward.2} parent=0 // pred_fallthru
    _
  %v26 = vld [vmem:[%s6] sm:$0x3f]
  %v27 = vld [vmem:[%s6 + $0x8] sm:$0x3f]
  %v28 = vld [vmem:[%s6 + $0x10] sm:$0x3f]
  %v29 = vld [vmem:[%s0] sm:$0x3f]
  %v30 = vld [vmem:[%s0 + $0x8] sm:$0x3f]
  %v31 = vld [vmem:[%s0 + $0x10] sm:$0x3f]
  %v32 = vld [vmem:[%s0 + $0x18] sm:$0x3f]
  %v33 = vld [vmem:[%s0 + $0x20] sm:$0x3f]
  %v34 = vld [vmem:[%s0 + $0x28] sm:$0x3f]
  %v35 = vld [vmem:[%s0 + $0x30] sm:$0x3f]
  %v36 = vld [vmem:[%s0 + $0x38] sm:$0x3f]
  %v37 = vld [vmem:[%s0 + $0x40] sm:$0x3f]
  %v38 = vld [vmem:[%s0 + $0x48] sm:$0x3f]
  %v39 = vld [vmem:[%s0 + $0x50] sm:$0x3f]
  %v40 = vld [vmem:[%s0 + $0x58] sm:$0x3f]
  %v41 = vld [vmem:[%s1] sm:$0xff]
  %v42 = vld [vmem:[%s1 + $0x8] sm:$0xff]
  %v43 = vld [vmem:[%s1 + $0x10] sm:$0xff]
  %v44 = vld [vmem:[%s1 + $0x18] sm:$0xff]
  %v45 = vld [vmem:[%s1 + $0x20] sm:$0xff]
  %v46 = vld [vmem:[%s1 + $0x28] sm:$0xff]
  %v47 = vld [vmem:[%s1 + $0x30] sm:$0xff]
  %v48 = vld [vmem:[%s1 + $0x38] sm:$0xff]
  %v49 = vld [vmem:[%s1 + $0x40] sm:$0xff]
  %v50 = vld [vmem:[%s1 + $0x48] sm:$0xff]
  %v51 = vld [vmem:[%s1 + $0x50] sm:$0xff]
  %v52 = vld [vmem:[%s1 + $0x58] sm:$0xff]
  %v53 = vld [vmem:[%s1 + $0x60] sm:$0xff]
  %v54 = vld [vmem:[%s1 + $0x68] sm:$0xff]
  %v55 = vld [vmem:[%s1 + $0x70] sm:$0xff]
  %v56 = vld [vmem:[%s1 + $0x78] sm:$0xff]
  %v57 = vld [vmem:[%s1 + $0x80] sm:$0xff]
  %v58 = vld [vmem:[%s1 + $0x88] sm:$0xff]
  %v59 = vld [vmem:[%s1 + $0x90] sm:$0xff]
  %v60 = vld [vmem:[%s1 + $0x98] sm:$0xff]
  %v61 = vld [vmem:[%s1 + $0xa0] sm:$0xff]
  %v62 = vld [vmem:[%s1 + $0xa8] sm:$0xff]
  %v63 = vld [vmem:[%s1 + $0xb0] sm:$0xff]
  %v64 = vld [vmem:[%s1 + $0xb8] sm:$0xff]
  %v65 = vld [vmem:[%s1 + $0xc0] sm:$0xff]
  %v66 = vld [vmem:[%s1 + $0xc8] sm:$0xff]
  %v67 = vld [vmem:[%s1 + $0xd0] sm:$0xff]
  %v68 = vld [vmem:[%s1 + $0xd8] sm:$0xff]
  %v69 = vld [vmem:[%s1 + $0xe0] sm:$0xff]
  %v70 = vld [vmem:[%s1 + $0xe8] sm:$0xff]
  %v71 = vld [vmem:[%s1 + $0xf0] sm:$0xff]
  %v72 = vld [vmem:[%s1 + $0xf8] sm:$0xff]
  %v73 = vld [vmem:[%s1 + $0x100] sm:$0xff]
  %v74 = vld [vmem:[%s1 + $0x108] sm:$0xff]
  %v75 = vld [vmem:[%s1 + $0x110] sm:$0xff]
  %v76 = vld [vmem:[%s1 + $0x118] sm:$0xff]
  %v77 = vld [vmem:[%s1 + $0x120] sm:$0xff]
  %v78 = vld [vmem:[%s1 + $0x128] sm:$0xff]
  %v79 = vld [vmem:[%s1 + $0x130] sm:$0xff]
  %v80 = vld [vmem:[%s1 + $0x138] sm:$0xff]
  %v81 = vld [vmem:[%s1 + $0x140] sm:$0xff]
  %v82 = vld [vmem:[%s1 + $0x148] sm:$0xff]
  %v83 = vld [vmem:[%s1 + $0x150] sm:$0xff]
  %v84 = vld [vmem:[%s1 + $0x158] sm:$0xff]
  %v85 = vld [vmem:[%s1 + $0x160] sm:$0xff]
  %v86 = vld [vmem:[%s1 + $0x168] sm:$0xff]
  %v87 = vld [vmem:[%s1 + $0x170] sm:$0xff]
  %v88 = vld [vmem:[%s1 + $0x178] sm:$0xff]
  %v89 = vld [vmem:[%s1 + $0x180] sm:$0xff]
  %v90 = vld [vmem:[%s1 + $0x188] sm:$0xff]
  %v91 = vld [vmem:[%s1 + $0x190] sm:$0xff]
  %v92 = vld [vmem:[%s1 + $0x198] sm:$0xff]
  %v93 = vld [vmem:[%s1 + $0x1a0] sm:$0xff]
  %v94 = vld [vmem:[%s1 + $0x1a8] sm:$0xff]
  %v95 = vld [vmem:[%s1 + $0x1b0] sm:$0xff]
  %v96 = vld [vmem:[%s1 + $0x1b8] sm:$0xff]
  %v97 = vld [vmem:[%s1 + $0x1c0] sm:$0xff]
  %v98 = vld [vmem:[%s1 + $0x1c8] sm:$0xff]
  %v99 = vld [vmem:[%s1 + $0x1d0] sm:$0xff]
  %v100 = vld [vmem:[%s1 + $0x1d8] sm:$0xff]
  %v101 = vld [vmem:[%s1 + $0x1e0] sm:$0xff]
  %v102 = vld [vmem:[%s1 + $0x1e8] sm:$0xff]
  %v103 = vld [vmem:[%s1 + $0x1f0] sm:$0xff]
  %v104 = vld [vmem:[%s1 + $0x1f8] sm:$0xff]
  %v105 = vld [vmem:[%s1 + $0x200] sm:$0xff]
  %v106 = vld [vmem:[%s1 + $0x208] sm:$0xff]
  %v107 = vld [vmem:[%s1 + $0x210] sm:$0xff]
  %v108 = vld [vmem:[%s1 + $0x218] sm:$0xff]
  %v109 = vld [vmem:[%s1 + $0x220] sm:$0xff]
  %v110 = vld [vmem:[%s1 + $0x228] sm:$0xff]
  %v111 = vld [vmem:[%s1 + $0x230] sm:$0xff]
  %v112 = vld [vmem:[%s1 + $0x238] sm:$0xff]
  %v113 = vld [vmem:[%s1 + $0x240] sm:$0xff]
  %v114 = vld [vmem:[%s1 + $0x248] sm:$0xff]
  %v115 = vld [vmem:[%s1 + $0x250] sm:$0xff]
  %v116 = vld [vmem:[%s1 + $0x258] sm:$0xff]
  %v117 = vld [vmem:[%s1 + $0x260] sm:$0xff]
  %v118 = vld [vmem:[%s1 + $0x268] sm:$0xff]
  %v119 = vld [vmem:[%s1 + $0x270] sm:$0xff]
  %v120 = vld [vmem:[%s1 + $0x278] sm:$0xff]
  %v121 = vld [vmem:[%s1 + $0x280] sm:$0xff]
  %v122 = vld [vmem:[%s1 + $0x288] sm:$0xff]
  %v123 = vld [vmem:[%s1 + $0x290] sm:$0xff]
  %v124 = vld [vmem:[%s1 + $0x298] sm:$0xff]
  %v125 = vld [vmem:[%s1 + $0x2a0] sm:$0xff]
  %v126 = vld [vmem:[%s1 + $0x2a8] sm:$0xff]
  %v127 = vld [vmem:[%s1 + $0x2b0] sm:$0xff]
  %v128 = vld [vmem:[%s1 + $0x2b8] sm:$0xff]
  %v129 = vld [vmem:[%s1 + $0x2c0] sm:$0xff]
  %v130 = vld [vmem:[%s1 + $0x2c8] sm:$0xff]
  %v131 = vld [vmem:[%s1 + $0x2d0] sm:$0xff]
  %v132 = vld [vmem:[%s1 + $0x2d8] sm:$0xff]
  %v133 = vld [vmem:[%s1 + $0x2e0] sm:$0xff]
  %v134 = vld [vmem:[%s1 + $0x2e8] sm:$0xff]
  %v135 = vld [vmem:[%s1 + $0x2f0] sm:$0xff]
  %v136 = vld [vmem:[%s1 + $0x2f8] sm:$0xff]
  %v137 = vld [vmem:[%s1 + $0x300] sm:$0xff]
  %v138 = vld [vmem:[%s1 + $0x308] sm:$0xff]
  %v139 = vld [vmem:[%s1 + $0x310] sm:$0xff]
  %v140 = vld [vmem:[%s1 + $0x318] sm:$0xff]
  %v141 = vld [vmem:[%s1 + $0x320] sm:$0xff]
  %v142 = vld [vmem:[%s1 + $0x328] sm:$0xff]
  %v143 = vld [vmem:[%s1 + $0x330] sm:$0xff]
  %v144 = vld [vmem:[%s1 + $0x338] sm:$0xff]
  %v145 = vld [vmem:[%s1 + $0x340] sm:$0xff]
  %v146 = vld [vmem:[%s1 + $0x348] sm:$0xff]
  %v147 = vld [vmem:[%s1 + $0x350] sm:$0xff]
  %v148 = vld [vmem:[%s1 + $0x358] sm:$0xff]
  %v149 = vld [vmem:[%s1 + $0x360] sm:$0xff]
  %v150 = vld [vmem:[%s1 + $0x368] sm:$0xff]
  %v151 = vld [vmem:[%s1 + $0x370] sm:$0xff]
  %v152 = vld [vmem:[%s1 + $0x378] sm:$0xff]
  %v153 = vld [vmem:[%s1 + $0x380] sm:$0xff]
  %v154 = vld [vmem:[%s1 + $0x388] sm:$0xff]
  %v155 = vld [vmem:[%s1 + $0x390] sm:$0xff]
  %v156 = vld [vmem:[%s1 + $0x398] sm:$0xff]
  %v157 = vld [vmem:[%s1 + $0x3a0] sm:$0xff]
  %v158 = vld [vmem:[%s1 + $0x3a8] sm:$0xff]
  %v159 = vld [vmem:[%s1 + $0x3b0] sm:$0xff]
  %v160 = vld [vmem:[%s1 + $0x3b8] sm:$0xff]
  %v161 = vld [vmem:[%s1 + $0x3c0] sm:$0xff]
  %v162 = vld [vmem:[%s1 + $0x3c8] sm:$0xff]
  %v163 = vld [vmem:[%s1 + $0x3d0] sm:$0xff]
  %v164 = vld [vmem:[%s1 + $0x3d8] sm:$0xff]
  %v165 = vld [vmem:[%s1 + $0x3e0] sm:$0xff]
  %v166 = vld [vmem:[%s1 + $0x3e8] sm:$0xff]
  %v167 = vld [vmem:[%s1 + $0x3f0] sm:$0xff]
  %v168 = vld [vmem:[%s1 + $0x3f8] sm:$0xff]
  %v169 = vld [vmem:[%s1 + $0x400] sm:$0xff]
  %v170 = vld [vmem:[%s1 + $0x408] sm:$0xff]
  %v171 = vld [vmem:[%s1 + $0x410] sm:$0xff]
  %v172 = vld [vmem:[%s1 + $0x418] sm:$0xff]
  %v173 = vld [vmem:[%s1 + $0x420] sm:$0xff]
  %v174 = vld [vmem:[%s1 + $0x428] sm:$0xff]
  %v175 = vld [vmem:[%s1 + $0x430] sm:$0xff]
  %v176 = vld [vmem:[%s1 + $0x438] sm:$0xff]
  %v177 = vld [vmem:[%s1 + $0x440] sm:$0xff]
  %v178 = vld [vmem:[%s1 + $0x448] sm:$0xff]
  %v179 = vld [vmem:[%s1 + $0x450] sm:$0xff]
  %v180 = vld [vmem:[%s1 + $0x458] sm:$0xff]
  %v181 = vld [vmem:[%s1 + $0x460] sm:$0xff]
  %v182 = vld [vmem:[%s1 + $0x468] sm:$0xff]
  %v183 = vld [vmem:[%s1 + $0x470] sm:$0xff]
  %v184 = vld [vmem:[%s1 + $0x478] sm:$0xff]
  %v185 = vld [vmem:[%s1 + $0x480] sm:$0xff]
  %v186 = vld [vmem:[%s1 + $0x488] sm:$0xff]
  %v187 = vld [vmem:[%s1 + $0x490] sm:$0xff]
  %v188 = vld [vmem:[%s1 + $0x498] sm:$0xff]
  %v189 = vld [vmem:[%s1 + $0x4a0] sm:$0xff]
  %v190 = vld [vmem:[%s1 + $0x4a8] sm:$0xff]
  %v191 = vld [vmem:[%s1 + $0x4b0] sm:$0xff]
  %v192 = vld [vmem:[%s1 + $0x4b8] sm:$0xff]
  %v193 = vld [vmem:[%s1 + $0x4c0] sm:$0xff]
  %v194 = vld [vmem:[%s1 + $0x4c8] sm:$0xff]
  %v195 = vld [vmem:[%s1 + $0x4d0] sm:$0xff]
  %v196 = vld [vmem:[%s1 + $0x4d8] sm:$0xff]
  %v197 = vld [vmem:[%s1 + $0x4e0] sm:$0xff]
  %v198 = vld [vmem:[%s1 + $0x4e8] sm:$0xff]
  %v199 = vld [vmem:[%s1 + $0x4f0] sm:$0xff]
  %v200 = vld [vmem:[%s1 + $0x4f8] sm:$0xff]
  %v201 = vld [vmem:[%s1 + $0x500] sm:$0xff]
  %v202 = vld [vmem:[%s1 + $0x508] sm:$0xff]
  %v203 = vld [vmem:[%s1 + $0x510] sm:$0xff]
  %v204 = vld [vmem:[%s1 + $0x518] sm:$0xff]
  %v205 = vld [vmem:[%s1 + $0x520] sm:$0xff]
  %v206 = vld [vmem:[%s1 + $0x528] sm:$0xff]
  %v207 = vld [vmem:[%s1 + $0x530] sm:$0xff]
  %v208 = vld [vmem:[%s1 + $0x538] sm:$0xff]
  %v209 = vld [vmem:[%s1 + $0x540] sm:$0xff]
  %v210 = vld [vmem:[%s1 + $0x548] sm:$0xff]
  %v211 = vld [vmem:[%s1 + $0x550] sm:$0xff]
  %v212 = vld [vmem:[%s1 + $0x558] sm:$0xff]
  %v213 = vld [vmem:[%s1 + $0x560] sm:$0xff]
  %v214 = vld [vmem:[%s1 + $0x568] sm:$0xff]
  %v215 = vld [vmem:[%s1 + $0x570] sm:$0xff]
  %v216 = vld [vmem:[%s1 + $0x578] sm:$0xff]
  %v217 = vld [vmem:[%s1 + $0x580] sm:$0xff]
  %v218 = vld [vmem:[%s1 + $0x588] sm:$0xff]
  %v219 = vld [vmem:[%s1 + $0x590] sm:$0xff]
  %v220 = vld [vmem:[%s1 + $0x598] sm:$0xff]
  %v221 = vld [vmem:[%s1 + $0x5a0] sm:$0xff]
  %v222 = vld [vmem:[%s1 + $0x5a8] sm:$0xff]
  %v223 = vld [vmem:[%s1 + $0x5b0] sm:$0xff]
  %v224 = vld [vmem:[%s1 + $0x5b8] sm:$0xff]
  %v225 = vld [vmem:[%s1 + $0x5c0] sm:$0xff]
  %v226 = vld [vmem:[%s1 + $0x5c8] sm:$0xff]
  %v227 = vld [vmem:[%s1 + $0x5d0] sm:$0xff]
  %v228 = vld [vmem:[%s1 + $0x5d8] sm:$0xff]
  %v229 = vld [vmem:[%s1 + $0x5e0] sm:$0xff]
  %v230 = vld [vmem:[%s1 + $0x5e8] sm:$0xff]
  %v231 = vld [vmem:[%s1 + $0x5f0] sm:$0xff]
  %v232 = vld [vmem:[%s1 + $0x5f8] sm:$0xff]
  %v233 = vld [vmem:[%s1 + $0x600] sm:$0xff]
  %v234 = vld [vmem:[%s1 + $0x608] sm:$0xff]
  %v235 = vld [vmem:[%s1 + $0x610] sm:$0xff]
  %v236 = vld [vmem:[%s1 + $0x618] sm:$0xff]
  %v237 = vld [vmem:[%s1 + $0x620] sm:$0xff]
  %v238 = vld [vmem:[%s1 + $0x628] sm:$0xff]
  %v239 = vld [vmem:[%s1 + $0x630] sm:$0xff]
  %v240 = vld [vmem:[%s1 + $0x638] sm:$0xff]
  %v241 = vld [vmem:[%s1 + $0x640] sm:$0xff]
  %v242 = vld [vmem:[%s1 + $0x648] sm:$0xff]
  %v243 = vld [vmem:[%s1 + $0x650] sm:$0xff]
  %v244 = vld [vmem:[%s1 + $0x658] sm:$0xff]
  %v245 = vld [vmem:[%s1 + $0x660] sm:$0xff]
  %v246 = vld [vmem:[%s1 + $0x668] sm:$0xff]
  %v247 = vld [vmem:[%s1 + $0x670] sm:$0xff]
  %v248 = vld [vmem:[%s1 + $0x678] sm:$0xff]
  %v249 = vld [vmem:[%s1 + $0x680] sm:$0xff]
  %v250 = vld [vmem:[%s1 + $0x688] sm:$0xff]
  %v251 = vld [vmem:[%s1 + $0x690] sm:$0xff]
  %v252 = vld [vmem:[%s1 + $0x698] sm:$0xff]
  %v253 = vld [vmem:[%s1 + $0x6a0] sm:$0xff]
  %v254 = vld [vmem:[%s1 + $0x6a8] sm:$0xff]
  %v255 = vld [vmem:[%s1 + $0x6b0] sm:$0xff]
  %v256 = vld [vmem:[%s1 + $0x6b8] sm:$0xff]
  %v257 = vld [vmem:[%s1 + $0x6c0] sm:$0xff]
  %v258 = vld [vmem:[%s1 + $0x6c8] sm:$0xff]
  %v259 = vld [vmem:[%s1 + $0x6d0] sm:$0xff]
  %v260 = vld [vmem:[%s1 + $0x6d8] sm:$0xff]
  %v261 = vld [vmem:[%s1 + $0x6e0] sm:$0xff]
  %v262 = vld [vmem:[%s1 + $0x6e8] sm:$0xff]
  %v263 = vld [vmem:[%s1 + $0x6f0] sm:$0xff]
  %v264 = vld [vmem:[%s1 + $0x6f8] sm:$0xff]
  %v265 = vld [vmem:[%s1 + $0x700] sm:$0xff]
  %v266 = vld [vmem:[%s1 + $0x708] sm:$0xff]
  %v267 = vld [vmem:[%s1 + $0x710] sm:$0xff]
  %v268 = vld [vmem:[%s1 + $0x718] sm:$0xff]
  %v269 = vld [vmem:[%s1 + $0x720] sm:$0xff]
  %v270 = vld [vmem:[%s1 + $0x728] sm:$0xff]
  %v271 = vld [vmem:[%s1 + $0x730] sm:$0xff]
  %v272 = vld [vmem:[%s1 + $0x738] sm:$0xff]
  %v273 = vld [vmem:[%s1 + $0x740] sm:$0xff]
  %v274 = vld [vmem:[%s1 + $0x748] sm:$0xff]
  %v275 = vld [vmem:[%s1 + $0x750] sm:$0xff]
  %v276 = vld [vmem:[%s1 + $0x758] sm:$0xff]
  %v277 = vld [vmem:[%s1 + $0x760] sm:$0xff]
  %v278 = vld [vmem:[%s1 + $0x768] sm:$0xff]
  %v279 = vld [vmem:[%s1 + $0x770] sm:$0xff]
  %v280 = vld [vmem:[%s1 + $0x778] sm:$0xff]
  %v281 = vld [vmem:[%s1 + $0x780] sm:$0xff]
  %v282 = vld [vmem:[%s1 + $0x788] sm:$0xff]
  %v283 = vld [vmem:[%s1 + $0x790] sm:$0xff]
  %v284 = vld [vmem:[%s1 + $0x798] sm:$0xff]
  %v285 = vld [vmem:[%s1 + $0x7a0] sm:$0xff]
  %v286 = vld [vmem:[%s1 + $0x7a8] sm:$0xff]
  %v287 = vld [vmem:[%s1 + $0x7b0] sm:$0xff]
  %v288 = vld [vmem:[%s1 + $0x7b8] sm:$0xff]
  %v289 = vld [vmem:[%s1 + $0x7c0] sm:$0xff]
  %v290 = vld [vmem:[%s1 + $0x7c8] sm:$0xff]
  %v291 = vld [vmem:[%s1 + $0x7d0] sm:$0xff]
  %v292 = vld [vmem:[%s1 + $0x7d8] sm:$0xff]
  %v293 = vld [vmem:[%s1 + $0x7e0] sm:$0xff]
  %v294 = vld [vmem:[%s1 + $0x7e8] sm:$0xff]
  %v295 = vld [vmem:[%s1 + $0x7f0] sm:$0xff]
  %v296 = vld [vmem:[%s1 + $0x7f8] sm:$0xff]
  %v297 = vld [vmem:[%s1 + $0x800] sm:$0xff]
  %v298 = vld [vmem:[%s1 + $0x808] sm:$0xff]
  %v299 = vld [vmem:[%s1 + $0x810] sm:$0xff]
  %v300 = vld [vmem:[%s1 + $0x818] sm:$0xff]
  %v301 = vld [vmem:[%s1 + $0x820] sm:$0xff]
  %v302 = vld [vmem:[%s1 + $0x828] sm:$0xff]
  %v303 = vld [vmem:[%s1 + $0x830] sm:$0xff]
  %v304 = vld [vmem:[%s1 + $0x838] sm:$0xff]
  %v305 = vld [vmem:[%s1 + $0x840] sm:$0xff]
  %v306 = vld [vmem:[%s1 + $0x848] sm:$0xff]
  %v307 = vld [vmem:[%s1 + $0x850] sm:$0xff]
  %v308 = vld [vmem:[%s1 + $0x858] sm:$0xff]
  %v309 = vld [vmem:[%s1 + $0x860] sm:$0xff]
  %v310 = vld [vmem:[%s1 + $0x868] sm:$0xff]
  %v311 = vld [vmem:[%s1 + $0x870] sm:$0xff]
  %v312 = vld [vmem:[%s1 + $0x878] sm:$0xff]
  %v313 = vld [vmem:[%s1 + $0x880] sm:$0xff]
  %v314 = vld [vmem:[%s1 + $0x888] sm:$0xff]
  %v315 = vld [vmem:[%s1 + $0x890] sm:$0xff]
  %v316 = vld [vmem:[%s1 + $0x898] sm:$0xff]
  %v317 = vld [vmem:[%s1 + $0x8a0] sm:$0xff]
  %v318 = vld [vmem:[%s1 + $0x8a8] sm:$0xff]
  %v319 = vld [vmem:[%s1 + $0x8b0] sm:$0xff]
  %v320 = vld [vmem:[%s1 + $0x8b8] sm:$0xff]
  %v321 = vld [vmem:[%s1 + $0x8c0] sm:$0xff]
  %v322 = vld [vmem:[%s1 + $0x8c8] sm:$0xff]
  %v323 = vld [vmem:[%s1 + $0x8d0] sm:$0xff]
  %v324 = vld [vmem:[%s1 + $0x8d8] sm:$0xff]
  %v325 = vld [vmem:[%s1 + $0x8e0] sm:$0xff]
  %v326 = vld [vmem:[%s1 + $0x8e8] sm:$0xff]
  %v327 = vld [vmem:[%s1 + $0x8f0] sm:$0xff]
  %v328 = vld [vmem:[%s1 + $0x8f8] sm:$0xff]
  %v329 = vld [vmem:[%s1 + $0x900] sm:$0xff]
  %v330 = vld [vmem:[%s1 + $0x908] sm:$0xff]
  %v331 = vld [vmem:[%s1 + $0x910] sm:$0xff]
  %v332 = vld [vmem:[%s1 + $0x918] sm:$0xff]
  %v333 = vld [vmem:[%s1 + $0x920] sm:$0xff]
  %v334 = vld [vmem:[%s1 + $0x928] sm:$0xff]
  %v335 = vld [vmem:[%s1 + $0x930] sm:$0xff]
  %v336 = vld [vmem:[%s1 + $0x938] sm:$0xff]
  %v337 = vld [vmem:[%s1 + $0x940] sm:$0xff]
  %v338 = vld [vmem:[%s1 + $0x948] sm:$0xff]
  %v339 = vld [vmem:[%s1 + $0x950] sm:$0xff]
  %v340 = vld [vmem:[%s1 + $0x958] sm:$0xff]
  %v341 = vld [vmem:[%s1 + $0x960] sm:$0xff]
  %v342 = vld [vmem:[%s1 + $0x968] sm:$0xff]
  %v343 = vld [vmem:[%s1 + $0x970] sm:$0xff]
  %v344 = vld [vmem:[%s1 + $0x978] sm:$0xff]
  %v345 = vld [vmem:[%s1 + $0x980] sm:$0xff]
  %v346 = vld [vmem:[%s1 + $0x988] sm:$0xff]
  %v347 = vld [vmem:[%s1 + $0x990] sm:$0xff]
  %v348 = vld [vmem:[%s1 + $0x998] sm:$0xff]
  %v349 = vld [vmem:[%s1 + $0x9a0] sm:$0xff]
  %v350 = vld [vmem:[%s1 + $0x9a8] sm:$0xff]
  %v351 = vld [vmem:[%s1 + $0x9b0] sm:$0xff]
  %v352 = vld [vmem:[%s1 + $0x9b8] sm:$0xff]
  %v353 = vld [vmem:[%s1 + $0x9c0] sm:$0xff]
  %v354 = vld [vmem:[%s1 + $0x9c8] sm:$0xff]
  %v355 = vld [vmem:[%s1 + $0x9d0] sm:$0xff]
  %v356 = vld [vmem:[%s1 + $0x9d8] sm:$0xff]
  %v357 = vld [vmem:[%s1 + $0x9e0] sm:$0xff]
  %v358 = vld [vmem:[%s1 + $0x9e8] sm:$0xff]
  %v359 = vld [vmem:[%s1 + $0x9f0] sm:$0xff]
  %v360 = vld [vmem:[%s1 + $0x9f8] sm:$0xff]
  %v361 = vld [vmem:[%s1 + $0xa00] sm:$0xff]
  %v362 = vld [vmem:[%s1 + $0xa08] sm:$0xff]
  %v363 = vld [vmem:[%s1 + $0xa10] sm:$0xff]
  %v364 = vld [vmem:[%s1 + $0xa18] sm:$0xff]
  %v365 = vld [vmem:[%s1 + $0xa20] sm:$0xff]
  %v366 = vld [vmem:[%s1 + $0xa28] sm:$0xff]
  %v367 = vld [vmem:[%s1 + $0xa30] sm:$0xff]
  %v368 = vld [vmem:[%s1 + $0xa38] sm:$0xff]
  %v369 = vld [vmem:[%s1 + $0xa40] sm:$0xff]
  %v370 = vld [vmem:[%s1 + $0xa48] sm:$0xff]
  %v371 = vld [vmem:[%s1 + $0xa50] sm:$0xff]
  %v372 = vld [vmem:[%s1 + $0xa58] sm:$0xff]
  %v373 = vld [vmem:[%s1 + $0xa60] sm:$0xff]
  %v374 = vld [vmem:[%s1 + $0xa68] sm:$0xff]
  %v375 = vld [vmem:[%s1 + $0xa70] sm:$0xff]
  %v376 = vld [vmem:[%s1 + $0xa78] sm:$0xff]
  %v377 = vld [vmem:[%s1 + $0xa80] sm:$0xff]
  %v378 = vld [vmem:[%s1 + $0xa88] sm:$0xff]
  %v379 = vld [vmem:[%s1 + $0xa90] sm:$0xff]
  %v380 = vld [vmem:[%s1 + $0xa98] sm:$0xff]
  %v381 = vld [vmem:[%s1 + $0xaa0] sm:$0xff]
  %v382 = vld [vmem:[%s1 + $0xaa8] sm:$0xff]
  %v383 = vld [vmem:[%s1 + $0xab0] sm:$0xff]
  %v384 = vld [vmem:[%s1 + $0xab8] sm:$0xff]
  %v385 = vld [vmem:[%s1 + $0xac0] sm:$0xff]
  %v386 = vld [vmem:[%s1 + $0xac8] sm:$0xff]
  %v387 = vld [vmem:[%s1 + $0xad0] sm:$0xff]
  %v388 = vld [vmem:[%s1 + $0xad8] sm:$0xff]
  %v389 = vld [vmem:[%s1 + $0xae0] sm:$0xff]
  %v390 = vld [vmem:[%s1 + $0xae8] sm:$0xff]
  %v391 = vld [vmem:[%s1 + $0xaf0] sm:$0xff]
  %v392 = vld [vmem:[%s1 + $0xaf8] sm:$0xff]
  %v393 = vld [vmem:[%s1 + $0xb00] sm:$0xff]
  %v394 = vld [vmem:[%s1 + $0xb08] sm:$0xff]
  %v395 = vld [vmem:[%s1 + $0xb10] sm:$0xff]
  %v396 = vld [vmem:[%s1 + $0xb18] sm:$0xff]
  %v397 = vld [vmem:[%s1 + $0xb20] sm:$0xff]
  %v398 = vld [vmem:[%s1 + $0xb28] sm:$0xff]
  %v399 = vld [vmem:[%s1 + $0xb30] sm:$0xff]
  %v400 = vld [vmem:[%s1 + $0xb38] sm:$0xff]
  %v401 = vld [vmem:[%s1 + $0xb40] sm:$0xff]
  %v402 = vld [vmem:[%s1 + $0xb48] sm:$0xff]
  %v403 = vld [vmem:[%s1 + $0xb50] sm:$0xff]
  %v404 = vld [vmem:[%s1 + $0xb58] sm:$0xff]
  %v405 = vld [vmem:[%s1 + $0xb60] sm:$0xff]
  %v406 = vld [vmem:[%s1 + $0xb68] sm:$0xff]
  %v407 = vld [vmem:[%s1 + $0xb70] sm:$0xff]
  %v408 = vld [vmem:[%s1 + $0xb78] sm:$0xff]
  %v409 = vld [vmem:[%s1 + $0xb80] sm:$0xff]
  %v410 = vld [vmem:[%s1 + $0xb88] sm:$0xff]
  %v411 = vld [vmem:[%s1 + $0xb90] sm:$0xff]
  %v412 = vld [vmem:[%s1 + $0xb98] sm:$0xff]
  %v413 = vld [vmem:[%s1 + $0xba0] sm:$0xff]
  %v414 = vld [vmem:[%s1 + $0xba8] sm:$0xff]
  %v415 = vld [vmem:[%s1 + $0xbb0] sm:$0xff]
  %v416 = vld [vmem:[%s1 + $0xbb8] sm:$0xff]
  %v417 = vld [vmem:[%s1 + $0xbc0] sm:$0xff]
  %v418 = vld [vmem:[%s1 + $0xbc8] sm:$0xff]
  %v419 = vld [vmem:[%s1 + $0xbd0] sm:$0xff]
  %v420 = vld [vmem:[%s1 + $0xbd8] sm:$0xff]
  %v421 = vld [vmem:[%s1 + $0xbe0] sm:$0xff]
  %v422 = vld [vmem:[%s1 + $0xbe8] sm:$0xff]
  %v423 = vld [vmem:[%s1 + $0xbf0] sm:$0xff]
  %v424 = vld [vmem:[%s1 + $0xbf8] sm:$0xff]
  %v425 = vld [vmem:[%s1 + $0xc00] sm:$0xff]
  %v426 = vld [vmem:[%s1 + $0xc08] sm:$0xff]
  %v427 = vld [vmem:[%s1 + $0xc10] sm:$0xff]
  %v428 = vld [vmem:[%s1 + $0xc18] sm:$0xff]
  %v429 = vld [vmem:[%s1 + $0xc20] sm:$0xff]
  %v430 = vld [vmem:[%s1 + $0xc28] sm:$0xff]
  %v431 = vld [vmem:[%s1 + $0xc30] sm:$0xff]
  %v432 = vld [vmem:[%s1 + $0xc38] sm:$0xff]
  %v433 = vld [vmem:[%s1 + $0xc40] sm:$0xff]
  %v434 = vld [vmem:[%s1 + $0xc48] sm:$0xff]
  %v435 = vld [vmem:[%s1 + $0xc50] sm:$0xff]
  %v436 = vld [vmem:[%s1 + $0xc58] sm:$0xff]
  %v437 = vld [vmem:[%s1 + $0xc60] sm:$0xff]
  %v438 = vld [vmem:[%s1 + $0xc68] sm:$0xff]
  %v439 = vld [vmem:[%s1 + $0xc70] sm:$0xff]
  %v440 = vld [vmem:[%s1 + $0xc78] sm:$0xff]
  %v441 = vld [vmem:[%s1 + $0xc80] sm:$0xff]
  %v442 = vld [vmem:[%s1 + $0xc88] sm:$0xff]
  %v443 = vld [vmem:[%s1 + $0xc90] sm:$0xff]
  %v444 = vld [vmem:[%s1 + $0xc98] sm:$0xff]
  %v445 = vld [vmem:[%s1 + $0xca0] sm:$0xff]
  %v446 = vld [vmem:[%s1 + $0xca8] sm:$0xff]
  %v447 = vld [vmem:[%s1 + $0xcb0] sm:$0xff]
  %v448 = vld [vmem:[%s1 + $0xcb8] sm:$0xff]
  %v449 = vld [vmem:[%s1 + $0xcc0] sm:$0xff]
  %v450 = vld [vmem:[%s1 + $0xcc8] sm:$0xff]
  %v451 = vld [vmem:[%s1 + $0xcd0] sm:$0xff]
  %v452 = vld [vmem:[%s1 + $0xcd8] sm:$0xff]
  %v453 = vld [vmem:[%s1 + $0xce0] sm:$0xff]
  %v454 = vld [vmem:[%s1 + $0xce8] sm:$0xff]
  %v455 = vld [vmem:[%s1 + $0xcf0] sm:$0xff]
  %v456 = vld [vmem:[%s1 + $0xcf8] sm:$0xff]
  %v457 = vld [vmem:[%s1 + $0xd00] sm:$0xff]
  %v458 = vld [vmem:[%s1 + $0xd08] sm:$0xff]
  %v459 = vld [vmem:[%s1 + $0xd10] sm:$0xff]
  %v460 = vld [vmem:[%s1 + $0xd18] sm:$0xff]
  %v461 = vld [vmem:[%s1 + $0xd20] sm:$0xff]
  %v462 = vld [vmem:[%s1 + $0xd28] sm:$0xff]
  %v463 = vld [vmem:[%s1 + $0xd30] sm:$0xff]
  %v464 = vld [vmem:[%s1 + $0xd38] sm:$0xff]
  %v465 = vld [vmem:[%s1 + $0xd40] sm:$0xff]
  %v466 = vld [vmem:[%s1 + $0xd48] sm:$0xff]
  %v467 = vld [vmem:[%s1 + $0xd50] sm:$0xff]
  %v468 = vld [vmem:[%s1 + $0xd58] sm:$0xff]
  %v469 = vld [vmem:[%s1 + $0xd60] sm:$0xff]
  %v470 = vld [vmem:[%s1 + $0xd68] sm:$0xff]
  %v471 = vld [vmem:[%s1 + $0xd70] sm:$0xff]
  %v472 = vld [vmem:[%s1 + $0xd78] sm:$0xff]
  %v473 = vld [vmem:[%s1 + $0xd80] sm:$0xff]
  %v474 = vld [vmem:[%s1 + $0xd88] sm:$0xff]
  %v475 = vld [vmem:[%s1 + $0xd90] sm:$0xff]
  %v476 = vld [vmem:[%s1 + $0xd98] sm:$0xff]
  %v477 = vld [vmem:[%s1 + $0xda0] sm:$0xff]
  %v478 = vld [vmem:[%s1 + $0xda8] sm:$0xff]
  %v479 = vld [vmem:[%s1 + $0xdb0] sm:$0xff]
  %v480 = vld [vmem:[%s1 + $0xdb8] sm:$0xff]
  %v481 = vld [vmem:[%s1 + $0xdc0] sm:$0xff]
  %v482 = vld [vmem:[%s1 + $0xdc8] sm:$0xff]
  %v483 = vld [vmem:[%s1 + $0xdd0] sm:$0xff]
  %v484 = vld [vmem:[%s1 + $0xdd8] sm:$0xff]
  %v485 = vld [vmem:[%s1 + $0xde0] sm:$0xff]
  %v486 = vld [vmem:[%s1 + $0xde8] sm:$0xff]
  %v487 = vld [vmem:[%s1 + $0xdf0] sm:$0xff]
  %v488 = vld [vmem:[%s1 + $0xdf8] sm:$0xff]
  %v489 = vld [vmem:[%s1 + $0xe00] sm:$0xff]
  %v490 = vld [vmem:[%s1 + $0xe08] sm:$0xff]
  %v491 = vld [vmem:[%s1 + $0xe10] sm:$0xff]
  %v492 = vld [vmem:[%s1 + $0xe18] sm:$0xff]
  %v493 = vld [vmem:[%s1 + $0xe20] sm:$0xff]
  %v494 = vld [vmem:[%s1 + $0xe28] sm:$0xff]
  %v495 = vld [vmem:[%s1 + $0xe30] sm:$0xff]
  %v496 = vld [vmem:[%s1 + $0xe38] sm:$0xff]
  %v497 = vld [vmem:[%s1 + $0xe40] sm:$0xff]
  %v498 = vld [vmem:[%s1 + $0xe48] sm:$0xff]
  %v499 = vld [vmem:[%s1 + $0xe50] sm:$0xff]
  %v500 = vld [vmem:[%s1 + $0xe58] sm:$0xff]
  %v501 = vld [vmem:[%s1 + $0xe60] sm:$0xff]
  %v502 = vld [vmem:[%s1 + $0xe68] sm:$0xff]
  %v503 = vld [vmem:[%s1 + $0xe70] sm:$0xff]
  %v504 = vld [vmem:[%s1 + $0xe78] sm:$0xff]
  %v505 = vld [vmem:[%s1 + $0xe80] sm:$0xff]
  %v506 = vld [vmem:[%s1 + $0xe88] sm:$0xff]
  %v507 = vld [vmem:[%s1 + $0xe90] sm:$0xff]
  %v508 = vld [vmem:[%s1 + $0xe98] sm:$0xff]
  %v509 = vld [vmem:[%s1 + $0xea0] sm:$0xff]
  %v510 = vld [vmem:[%s1 + $0xea8] sm:$0xff]
  %v511 = vld [vmem:[%s1 + $0xeb0] sm:$0xff]
  %v512 = vld [vmem:[%s1 + $0xeb8] sm:$0xff]
  %v513 = vld [vmem:[%s1 + $0xec0] sm:$0xff]
  %v514 = vld [vmem:[%s1 + $0xec8] sm:$0xff]
  %v515 = vld [vmem:[%s1 + $0xed0] sm:$0xff]
  %v516 = vld [vmem:[%s1 + $0xed8] sm:$0xff]
  %v517 = vld [vmem:[%s1 + $0xee0] sm:$0xff]
  %v518 = vld [vmem:[%s1 + $0xee8] sm:$0xff]
  %v519 = vld [vmem:[%s1 + $0xef0] sm:$0xff]
  %v520 = vld [vmem:[%s1 + $0xef8] sm:$0xff]
  %v521 = vld [vmem:[%s1 + $0xf00] sm:$0xff]
  %v522 = vld [vmem:[%s1 + $0xf08] sm:$0xff]
  %v523 = vld [vmem:[%s1 + $0xf10] sm:$0xff]
  %v524 = vld [vmem:[%s1 + $0xf18] sm:$0xff]
  %v525 = vld [vmem:[%s1 + $0xf20] sm:$0xff]
  %v526 = vld [vmem:[%s1 + $0xf28] sm:$0xff]
  %v527 = vld [vmem:[%s1 + $0xf30] sm:$0xff]
  %v528 = vld [vmem:[%s1 + $0xf38] sm:$0xff]
  %v529 = vld [vmem:[%s1 + $0xf40] sm:$0xff]
  %v530 = vld [vmem:[%s1 + $0xf48] sm:$0xff]
  %v531 = vld [vmem:[%s1 + $0xf50] sm:$0xff]
  %v532 = vld [vmem:[%s1 + $0xf58] sm:$0xff]
  %v533 = vld [vmem:[%s1 + $0xf60] sm:$0xff]
  %v534 = vld [vmem:[%s1 + $0xf68] sm:$0xff]
  %v535 = vld [vmem:[%s1 + $0xf70] sm:$0xff]
  %v536 = vld [vmem:[%s1 + $0xf78] sm:$0xff]
  %v537 = vld [vmem:[%s1 + $0xf80] sm:$0xff]
  %v538 = vld [vmem:[%s1 + $0xf88] sm:$0xff]
  %v539 = vld [vmem:[%s1 + $0xf90] sm:$0xff]
  %v540 = vld [vmem:[%s1 + $0xf98] sm:$0xff]
  %v541 = vld [vmem:[%s1 + $0xfa0] sm:$0xff]
  %v542 = vld [vmem:[%s1 + $0xfa8] sm:$0xff]
  %v543 = vld [vmem:[%s1 + $0xfb0] sm:$0xff]
  %v544 = vld [vmem:[%s1 + $0xfb8] sm:$0xff]
  %v545 = vld [vmem:[%s1 + $0xfc0] sm:$0xff]
  %v546 = vld [vmem:[%s1 + $0xfc8] sm:$0xff]
  %v547 = vld [vmem:[%s1 + $0xfd0] sm:$0xff]
  %v548 = vld [vmem:[%s1 + $0xfd8] sm:$0xff]
  %v549 = vld [vmem:[%s1 + $0xfe0] sm:$0xff]
  %v550 = vld [vmem:[%s1 + $0xfe8] sm:$0xff]
  %v551 = vld [vmem:[%s1 + $0xff0] sm:$0xff]
  %v552 = vld [vmem:[%s1 + $0xff8] sm:$0xff]
  %v553 = vld [vmem:[%s1 + $0x1000] sm:$0xff]
  %v554 = vld [vmem:[%s1 + $0x1008] sm:$0xff]
  %v555 = vld [vmem:[%s1 + $0x1010] sm:$0xff]
  %v556 = vld [vmem:[%s1 + $0x1018] sm:$0xff]
  %v557 = vld [vmem:[%s1 + $0x1020] sm:$0xff]
  %v558 = vld [vmem:[%s1 + $0x1028] sm:$0xff]
  %v559 = vld [vmem:[%s1 + $0x1030] sm:$0xff]
  %v560 = vld [vmem:[%s1 + $0x1038] sm:$0xff]
  %v561 = vld [vmem:[%s1 + $0x1040] sm:$0xff]
  %v562 = vld [vmem:[%s1 + $0x1048] sm:$0xff]
  %v563 = vld [vmem:[%s1 + $0x1050] sm:$0xff]
  %v564 = vld [vmem:[%s1 + $0x1058] sm:$0xff]
  %v565 = vld [vmem:[%s1 + $0x1060] sm:$0xff]
  %v566 = vld [vmem:[%s1 + $0x1068] sm:$0xff]
  %v567 = vld [vmem:[%s1 + $0x1070] sm:$0xff]
  %v568 = vld [vmem:[%s1 + $0x1078] sm:$0xff]
  %v569 = vld [vmem:[%s1 + $0x1080] sm:$0xff]
  %v570 = vld [vmem:[%s1 + $0x1088] sm:$0xff]
  %v571 = vld [vmem:[%s1 + $0x1090] sm:$0xff]
  %v572 = vld [vmem:[%s1 + $0x1098] sm:$0xff]
  %v573 = vld [vmem:[%s1 + $0x10a0] sm:$0xff]
  %v574 = vld [vmem:[%s1 + $0x10a8] sm:$0xff]
  %v575 = vld [vmem:[%s1 + $0x10b0] sm:$0xff]
  %v576 = vld [vmem:[%s1 + $0x10b8] sm:$0xff]
  %v577 = vld [vmem:[%s1 + $0x10c0] sm:$0xff]
  %v578 = vld [vmem:[%s1 + $0x10c8] sm:$0xff]
  %v579 = vld [vmem:[%s1 + $0x10d0] sm:$0xff]
  %v580 = vld [vmem:[%s1 + $0x10d8] sm:$0xff]
  %v581 = vld [vmem:[%s1 + $0x10e0] sm:$0xff]
  %v582 = vld [vmem:[%s1 + $0x10e8] sm:$0xff]
  %v583 = vld [vmem:[%s1 + $0x10f0] sm:$0xff]
  %v584 = vld [vmem:[%s1 + $0x10f8] sm:$0xff]
  %v585 = vld [vmem:[%s1 + $0x1100] sm:$0xff]
  %v586 = vld [vmem:[%s1 + $0x1108] sm:$0xff]
  %v587 = vld [vmem:[%s1 + $0x1110] sm:$0xff]
  %v588 = vld [vmem:[%s1 + $0x1118] sm:$0xff]
  %v589 = vld [vmem:[%s1 + $0x1120] sm:$0xff]
  %v590 = vld [vmem:[%s1 + $0x1128] sm:$0xff]
  %v591 = vld [vmem:[%s1 + $0x1130] sm:$0xff]
  %v592 = vld [vmem:[%s1 + $0x1138] sm:$0xff]
  %v593 = vld [vmem:[%s1 + $0x1140] sm:$0xff]
  %v594 = vld [vmem:[%s1 + $0x1148] sm:$0xff]
  %v595 = vld [vmem:[%s1 + $0x1150] sm:$0xff]
  %v596 = vld [vmem:[%s1 + $0x1158] sm:$0xff]
  %v597 = vld [vmem:[%s1 + $0x1160] sm:$0xff]
  %v598 = vld [vmem:[%s1 + $0x1168] sm:$0xff]
  %v599 = vld [vmem:[%s1 + $0x1170] sm:$0xff]
  %v600 = vld [vmem:[%s1 + $0x1178] sm:$0xff]
  %v601 = vld [vmem:[%s1 + $0x1180] sm:$0xff]
  %v602 = vld [vmem:[%s1 + $0x1188] sm:$0xff]
  %v603 = vld [vmem:[%s1 + $0x1190] sm:$0xff]
  %v604 = vld [vmem:[%s1 + $0x1198] sm:$0xff]
  %v605 = vld [vmem:[%s1 + $0x11a0] sm:$0xff]
  %v606 = vld [vmem:[%s1 + $0x11a8] sm:$0xff]
  %v607 = vld [vmem:[%s1 + $0x11b0] sm:$0xff]
  %v608 = vld [vmem:[%s1 + $0x11b8] sm:$0xff]
  %v609 = vld [vmem:[%s1 + $0x11c0] sm:$0xff]
  %v610 = vld [vmem:[%s1 + $0x11c8] sm:$0xff]
  %v611 = vld [vmem:[%s1 + $0x11d0] sm:$0xff]
  %v612 = vld [vmem:[%s1 + $0x11d8] sm:$0xff]
  %v613 = vld [vmem:[%s1 + $0x11e0] sm:$0xff]
  %v614 = vld [vmem:[%s1 + $0x11e8] sm:$0xff]
  %v615 = vld [vmem:[%s1 + $0x11f0] sm:$0xff]
  %v616 = vld [vmem:[%s1 + $0x11f8] sm:$0xff]
  %v617 = vld [vmem:[%s2] sm:$0x7]
  %v618 = vld [vmem:[%s3] sm:$0xff]
  %v619 = vld [vmem:[%s3 + $0x8] sm:$0xff]
  %v620 = vld [vmem:[%s3 + $0x10] sm:$0xff]
  %v621 = vld [vmem:[%s3 + $0x18] sm:$0xff]
  %v622 = vld [vmem:[%s3 + $0x20] sm:$0xff]
  %v623 = vld [vmem:[%s3 + $0x28] sm:$0xff]
  %v624 = vld [vmem:[%s3 + $0x30] sm:$0xff]
  %v625 = vld [vmem:[%s3 + $0x38] sm:$0xff]
  %v626 = vld [vmem:[%s3 + $0x40] sm:$0xff]
  %v627 = vld [vmem:[%s3 + $0x48] sm:$0xff]
  %v628 = vld [vmem:[%s3 + $0x50] sm:$0xff]
  %v629 = vld [vmem:[%s3 + $0x58] sm:$0xff]
  %v630 = vld [vmem:[%s3 + $0x60] sm:$0xff]
  %v631 = vld [vmem:[%s3 + $0x68] sm:$0xff]
  %v632 = vld [vmem:[%s3 + $0x70] sm:$0xff]
  %v633 = vld [vmem:[%s3 + $0x78] sm:$0xff]
  %v634 = vld [vmem:[%s3 + $0x80] sm:$0xff]
  %v635 = vld [vmem:[%s3 + $0x88] sm:$0xff]
  %v636 = vld [vmem:[%s3 + $0x90] sm:$0xff]
  %v637 = vld [vmem:[%s3 + $0x98] sm:$0xff]
  %v638 = vld [vmem:[%s3 + $0xa0] sm:$0xff]
  %v639 = vld [vmem:[%s3 + $0xa8] sm:$0xff]
  %v640 = vld [vmem:[%s3 + $0xb0] sm:$0xff]
  %v641 = vld [vmem:[%s3 + $0xb8] sm:$0xff]
  %v642 = vld [vmem:[%s3 + $0xc0] sm:$0xff]
  %v643 = vld [vmem:[%s3 + $0xc8] sm:$0xff]
  %v644 = vld [vmem:[%s3 + $0xd0] sm:$0xff]
  %v645 = vld [vmem:[%s3 + $0xd8] sm:$0xff]
  %v646 = vld [vmem:[%s3 + $0xe0] sm:$0xff]
  %v647 = vld [vmem:[%s3 + $0xe8] sm:$0xff]
  %v648 = vld [vmem:[%s3 + $0xf0] sm:$0xff]
  %v649 = vld [vmem:[%s3 + $0xf8] sm:$0xff]
  %v650 = vld [vmem:[%s3 + $0x100] sm:$0xff]
  %v651 = vld [vmem:[%s3 + $0x108] sm:$0xff]
  %v652 = vld [vmem:[%s3 + $0x110] sm:$0xff]
  %v653 = vld [vmem:[%s3 + $0x118] sm:$0xff]
  %v654 = vld [vmem:[%s3 + $0x120] sm:$0xff]
  %v655 = vld [vmem:[%s3 + $0x128] sm:$0xff]
  %v656 = vld [vmem:[%s3 + $0x130] sm:$0xff]
  %v657 = vld [vmem:[%s3 + $0x138] sm:$0xff]
  %v658 = vld [vmem:[%s3 + $0x140] sm:$0xff]
  %v659 = vld [vmem:[%s3 + $0x148] sm:$0xff]
  %v660 = vld [vmem:[%s3 + $0x150] sm:$0xff]
  %v661 = vld [vmem:[%s3 + $0x158] sm:$0xff]
  %v662 = vld [vmem:[%s3 + $0x160] sm:$0xff]
  %v663 = vld [vmem:[%s3 + $0x168] sm:$0xff]
  %v664 = vld [vmem:[%s3 + $0x170] sm:$0xff]
  %v665 = vld [vmem:[%s3 + $0x178] sm:$0xff]
  %v666 = vld [vmem:[%s3 + $0x180] sm:$0xff]
  %v667 = vld [vmem:[%s3 + $0x188] sm:$0xff]
  %v668 = vld [vmem:[%s3 + $0x190] sm:$0xff]
  %v669 = vld [vmem:[%s3 + $0x198] sm:$0xff]
  %v670 = vld [vmem:[%s3 + $0x1a0] sm:$0xff]
  %v671 = vld [vmem:[%s3 + $0x1a8] sm:$0xff]
  %v672 = vld [vmem:[%s3 + $0x1b0] sm:$0xff]
  %v673 = vld [vmem:[%s3 + $0x1b8] sm:$0xff]
  %v674 = vld [vmem:[%s3 + $0x1c0] sm:$0xff]
  %v675 = vld [vmem:[%s3 + $0x1c8] sm:$0xff]
  %v676 = vld [vmem:[%s3 + $0x1d0] sm:$0xff]
  %v677 = vld [vmem:[%s3 + $0x1d8] sm:$0xff]
  %v678 = vld [vmem:[%s3 + $0x1e0] sm:$0xff]
  %v679 = vld [vmem:[%s3 + $0x1e8] sm:$0xff]
  %v680 = vld [vmem:[%s3 + $0x1f0] sm:$0xff]
  %v681 = vld [vmem:[%s3 + $0x1f8] sm:$0xff]
  %v682 = vld [vmem:[%s3 + $0x200] sm:$0xff]
  %v683 = vld [vmem:[%s3 + $0x208] sm:$0xff]
  %v684 = vld [vmem:[%s3 + $0x210] sm:$0xff]
  %v685 = vld [vmem:[%s3 + $0x218] sm:$0xff]
  %v686 = vld [vmem:[%s3 + $0x220] sm:$0xff]
  %v687 = vld [vmem:[%s3 + $0x228] sm:$0xff]
  %v688 = vld [vmem:[%s3 + $0x230] sm:$0xff]
  %v689 = vld [vmem:[%s3 + $0x238] sm:$0xff]
  %v690 = vld [vmem:[%s3 + $0x240] sm:$0xff]
  %v691 = vld [vmem:[%s3 + $0x248] sm:$0xff]
  %v692 = vld [vmem:[%s3 + $0x250] sm:$0xff]
  %v693 = vld [vmem:[%s3 + $0x258] sm:$0xff]
  %v694 = vld [vmem:[%s3 + $0x260] sm:$0xff]
  %v695 = vld [vmem:[%s3 + $0x268] sm:$0xff]
  %v696 = vld [vmem:[%s3 + $0x270] sm:$0xff]
  %v697 = vld [vmem:[%s3 + $0x278] sm:$0xff]
  %v698 = vld [vmem:[%s3 + $0x280] sm:$0xff]
  %v699 = vld [vmem:[%s3 + $0x288] sm:$0xff]
  %v700 = vld [vmem:[%s3 + $0x290] sm:$0xff]
  %v701 = vld [vmem:[%s3 + $0x298] sm:$0xff]
  %v702 = vld [vmem:[%s3 + $0x2a0] sm:$0xff]
  %v703 = vld [vmem:[%s3 + $0x2a8] sm:$0xff]
  %v704 = vld [vmem:[%s3 + $0x2b0] sm:$0xff]
  %v705 = vld [vmem:[%s3 + $0x2b8] sm:$0xff]
  %v706 = vld [vmem:[%s3 + $0x2c0] sm:$0xff]
  %v707 = vld [vmem:[%s3 + $0x2c8] sm:$0xff]
  %v708 = vld [vmem:[%s3 + $0x2d0] sm:$0xff]
  %v709 = vld [vmem:[%s3 + $0x2d8] sm:$0xff]
  %v710 = vld [vmem:[%s3 + $0x2e0] sm:$0xff]
  %v711 = vld [vmem:[%s3 + $0x2e8] sm:$0xff]
  %v712 = vld [vmem:[%s3 + $0x2f0] sm:$0xff]
  %v713 = vld [vmem:[%s3 + $0x2f8] sm:$0xff]
  %v714 = vld [vmem:[%s3 + $0x300] sm:$0xff]
  %v715 = vld [vmem:[%s3 + $0x308] sm:$0xff]
  %v716 = vld [vmem:[%s3 + $0x310] sm:$0xff]
  %v717 = vld [vmem:[%s3 + $0x318] sm:$0xff]
  %v718 = vld [vmem:[%s3 + $0x320] sm:$0xff]
  %v719 = vld [vmem:[%s3 + $0x328] sm:$0xff]
  %v720 = vld [vmem:[%s3 + $0x330] sm:$0xff]
  %v721 = vld [vmem:[%s3 + $0x338] sm:$0xff]
  %v722 = vld [vmem:[%s3 + $0x340] sm:$0xff]
  %v723 = vld [vmem:[%s3 + $0x348] sm:$0xff]
  %v724 = vld [vmem:[%s3 + $0x350] sm:$0xff]
  %v725 = vld [vmem:[%s3 + $0x358] sm:$0xff]
  %v726 = vld [vmem:[%s3 + $0x360] sm:$0xff]
  %v727 = vld [vmem:[%s3 + $0x368] sm:$0xff]
  %v728 = vld [vmem:[%s3 + $0x370] sm:$0xff]
  %v729 = vld [vmem:[%s3 + $0x378] sm:$0xf]
  %v730 = vld [vmem:[%s3 + $0x380] sm:$0xf]
  %v731 = vld [vmem:[%s3 + $0x388] sm:$0xf]
  %v732 = vld [vmem:[%s4] sm:$0x7]
  %v733 = vld [vmem:[%s5] sm:$0xff]
  %v734 = vld [vmem:[%s5 + $0x8] sm:$0xff]
  %v735 = vld [vmem:[%s5 + $0x10] sm:$0xff]
  %v736 = vld [vmem:[%s5 + $0x18] sm:$0xff]
  %v737 = vld [vmem:[%s5 + $0x20] sm:$0xff]
  %v738 = vld [vmem:[%s5 + $0x28] sm:$0xff]
  %v739 = vld [vmem:[%s5 + $0x30] sm:$0xff]
  %v740 = vld [vmem:[%s5 + $0x38] sm:$0xff]
  %v741 = vld [vmem:[%s5 + $0x40] sm:$0xff]
  %v742 = vld [vmem:[%s5 + $0x48] sm:$0xff]
  %v743 = vld [vmem:[%s5 + $0x50] sm:$0xff]
  %v744 = vld [vmem:[%s5 + $0x58] sm:$0xff]
  %v745 = vld [vmem:[%s5 + $0x60] sm:$0xff]
  %v746 = vld [vmem:[%s5 + $0x68] sm:$0xff]
  %v747 = vld [vmem:[%s5 + $0x70] sm:$0xff]
  %v748 = vld [vmem:[%s5 + $0x78] sm:$0xff]
  %v749 = vld [vmem:[%s5 + $0x80] sm:$0xff]
  %v750 = vld [vmem:[%s5 + $0x88] sm:$0xff]
  %v751 = vld [vmem:[%s5 + $0x90] sm:$0xff]
  %v752 = vld [vmem:[%s5 + $0x98] sm:$0xff]
  %v753 = vld [vmem:[%s5 + $0xa0] sm:$0xff]
  %v754 = vld [vmem:[%s5 + $0xa8] sm:$0xff]
  %v755 = vld [vmem:[%s5 + $0xb0] sm:$0xff]
  %v756 = vld [vmem:[%s5 + $0xb8] sm:$0xff]
  %v757 = vld [vmem:[%s5 + $0xc0] sm:$0xff]
  %v758 = vld [vmem:[%s5 + $0xc8] sm:$0xff]
  %v759 = vld [vmem:[%s5 + $0xd0] sm:$0xff]
  %v760 = vld [vmem:[%s5 + $0xd8] sm:$0xff]
  %v761 = vld [vmem:[%s5 + $0xe0] sm:$0xff]
  %v762 = vld [vmem:[%s5 + $0xe8] sm:$0xff]
  %v763 = vld [vmem:[%s5 + $0xf0] sm:$0xff]
  %v764 = vld [vmem:[%s5 + $0xf8] sm:$0xff]
  %v765 = vld [vmem:[%s5 + $0x100] sm:$0xff]
  %v766 = vld [vmem:[%s5 + $0x108] sm:$0xff]
  %v767 = vld [vmem:[%s5 + $0x110] sm:$0xff]
  %v768 = vld [vmem:[%s5 + $0x118] sm:$0xff]
  %v769 = vld [vmem:[%s5 + $0x120] sm:$0xff]
  %v770 = vld [vmem:[%s5 + $0x128] sm:$0xf]
  %v772 = vperm.slane %v617, 0
  %v773 = vperm.slane %v617, 1
  %v774 = vperm.slane %v617, 2
  %778 = vmatpush.msra.mxu0 %v86
  %779 = vmatpush.msra.mxu0 %v83
  %780 = vmatpush.msra.mxu0 %v80
  %781 = vmatpush.msra.mxu0 %v77
  %782 = vmatpush.msra.mxu0 %v74
  %783 = vmatpush.msra.mxu0 %v71
  %784 = vmatpush.msra.mxu0 %v68
  %785 = vmatpush.msra.mxu0 %v65
  %786 = vmatpush.msra.mxu0 %v62
  %787 = vmatpush.msra.mxu0 %v59
  %788 = vmatpush.msra.mxu0 %v56
  %789 = vmatpush.msra.mxu0 %v53
  %790 = vmatpush.msra.mxu0 %v50
  %791 = vmatpush.msra.mxu0 %v47
  %792 = vmatpush.msra.mxu0 %v44
  %793 = vmatpush.msra.mxu0 %v41
  %794 = vmatmul.f32.gmra.mxu0 %v29
  %v795 = vpop.f32.mrf.mxu0
  %v796 = vadd.f32 %v772, %v795
  %797 = vdwg.mxu0
  %798 = vmatpush.msra.mxu0 %v134
  %799 = vmatpush.msra.mxu0 %v131
  %800 = vmatpush.msra.mxu0 %v128
  %801 = vmatpush.msra.mxu0 %v125
  %802 = vmatpush.msra.mxu0 %v122
  %803 = vmatpush.msra.mxu0 %v119
  %804 = vmatpush.msra.mxu0 %v116
  %805 = vmatpush.msra.mxu0 %v113
  %806 = vmatpush.msra.mxu0 %v110
  %807 = vmatpush.msra.mxu0 %v107
  %808 = vmatpush.msra.mxu0 %v104
  %809 = vmatpush.msra.mxu0 %v101
  %810 = vmatpush.msra.mxu0 %v98
  %811 = vmatpush.msra.mxu0 %v95
  %812 = vmatpush.msra.mxu0 %v92
  %813 = vmatpush.msra.mxu0 %v89
  %814 = vmatmul.f32.gmra.mxu0 %v30
  %v815 = vpop.f32.mrf.mxu0
  %v816 = vadd.f32 %v796, %v815
  %817 = vdwg.mxu0
  %818 = vmatpush.msra.mxu0 %v182
  %819 = vmatpush.msra.mxu0 %v179
  %820 = vmatpush.msra.mxu0 %v176
  %821 = vmatpush.msra.mxu0 %v173
  %822 = vmatpush.msra.mxu0 %v170
  %823 = vmatpush.msra.mxu0 %v167
  %824 = vmatpush.msra.mxu0 %v164
  %825 = vmatpush.msra.mxu0 %v161
  %826 = vmatpush.msra.mxu0 %v158
  %827 = vmatpush.msra.mxu0 %v155
  %828 = vmatpush.msra.mxu0 %v152
  %829 = vmatpush.msra.mxu0 %v149
  %830 = vmatpush.msra.mxu0 %v146
  %831 = vmatpush.msra.mxu0 %v143
  %832 = vmatpush.msra.mxu0 %v140
  %833 = vmatpush.msra.mxu0 %v137
  %834 = vmatmul.f32.gmra.mxu0 %v31
  %v835 = vpop.f32.mrf.mxu0
  %v836 = vadd.f32 %v816, %v835
  %837 = vdwg.mxu0
  %838 = vmatpush.msra.mxu0 %v230
  %839 = vmatpush.msra.mxu0 %v227
  %840 = vmatpush.msra.mxu0 %v224
  %841 = vmatpush.msra.mxu0 %v221
  %842 = vmatpush.msra.mxu0 %v218
  %843 = vmatpush.msra.mxu0 %v215
  %844 = vmatpush.msra.mxu0 %v212
  %845 = vmatpush.msra.mxu0 %v209
  %846 = vmatpush.msra.mxu0 %v206
  %847 = vmatpush.msra.mxu0 %v203
  %848 = vmatpush.msra.mxu0 %v200
  %849 = vmatpush.msra.mxu0 %v197
  %850 = vmatpush.msra.mxu0 %v194
  %851 = vmatpush.msra.mxu0 %v191
  %852 = vmatpush.msra.mxu0 %v188
  %853 = vmatpush.msra.mxu0 %v185
  %854 = vmatmul.f32.gmra.mxu0 %v32
  %v855 = vpop.f32.mrf.mxu0
  %v856 = vadd.f32 %v836, %v855
  %857 = vdwg.mxu0
  %858 = vmatpush.msra.mxu0 %v278
  %859 = vmatpush.msra.mxu0 %v275
  %860 = vmatpush.msra.mxu0 %v272
  %861 = vmatpush.msra.mxu0 %v269
  %862 = vmatpush.msra.mxu0 %v266
  %863 = vmatpush.msra.mxu0 %v263
  %864 = vmatpush.msra.mxu0 %v260
  %865 = vmatpush.msra.mxu0 %v257
  %866 = vmatpush.msra.mxu0 %v254
  %867 = vmatpush.msra.mxu0 %v251
  %868 = vmatpush.msra.mxu0 %v248
  %869 = vmatpush.msra.mxu0 %v245
  %870 = vmatpush.msra.mxu0 %v242
  %871 = vmatpush.msra.mxu0 %v239
  %872 = vmatpush.msra.mxu0 %v236
  %873 = vmatpush.msra.mxu0 %v233
  %874 = vmatmul.f32.gmra.mxu0 %v33
  %v875 = vpop.f32.mrf.mxu0
  %v876 = vadd.f32 %v856, %v875
  %877 = vdwg.mxu0
  %878 = vmatpush.msra.mxu0 %v326
  %879 = vmatpush.msra.mxu0 %v323
  %880 = vmatpush.msra.mxu0 %v320
  %881 = vmatpush.msra.mxu0 %v317
  %882 = vmatpush.msra.mxu0 %v314
  %883 = vmatpush.msra.mxu0 %v311
  %884 = vmatpush.msra.mxu0 %v308
  %885 = vmatpush.msra.mxu0 %v305
  %886 = vmatpush.msra.mxu0 %v302
  %887 = vmatpush.msra.mxu0 %v299
  %888 = vmatpush.msra.mxu0 %v296
  %889 = vmatpush.msra.mxu0 %v293
  %890 = vmatpush.msra.mxu0 %v290
  %891 = vmatpush.msra.mxu0 %v287
  %892 = vmatpush.msra.mxu0 %v284
  %893 = vmatpush.msra.mxu0 %v281
  %894 = vmatmul.f32.gmra.mxu0 %v34
  %v895 = vpop.f32.mrf.mxu0
  %v896 = vadd.f32 %v876, %v895
  %897 = vdwg.mxu0
  %898 = vmatpush.msra.mxu0 %v374
  %899 = vmatpush.msra.mxu0 %v371
  %900 = vmatpush.msra.mxu0 %v368
  %901 = vmatpush.msra.mxu0 %v365
  %902 = vmatpush.msra.mxu0 %v362
  %903 = vmatpush.msra.mxu0 %v359
  %904 = vmatpush.msra.mxu0 %v356
  %905 = vmatpush.msra.mxu0 %v353
  %906 = vmatpush.msra.mxu0 %v350
  %907 = vmatpush.msra.mxu0 %v347
  %908 = vmatpush.msra.mxu0 %v344
  %909 = vmatpush.msra.mxu0 %v341
  %910 = vmatpush.msra.mxu0 %v338
  %911 = vmatpush.msra.mxu0 %v335
  %912 = vmatpush.msra.mxu0 %v332
  %913 = vmatpush.msra.mxu0 %v329
  %914 = vmatmul.f32.gmra.mxu0 %v35
  %v915 = vpop.f32.mrf.mxu0
  %v916 = vadd.f32 %v896, %v915
  %917 = vdwg.mxu0
  %918 = vmatpush.msra.mxu0 %v422
  %919 = vmatpush.msra.mxu0 %v419
  %920 = vmatpush.msra.mxu0 %v416
  %921 = vmatpush.msra.mxu0 %v413
  %922 = vmatpush.msra.mxu0 %v410
  %923 = vmatpush.msra.mxu0 %v407
  %924 = vmatpush.msra.mxu0 %v404
  %925 = vmatpush.msra.mxu0 %v401
  %926 = vmatpush.msra.mxu0 %v398
  %927 = vmatpush.msra.mxu0 %v395
  %928 = vmatpush.msra.mxu0 %v392
  %929 = vmatpush.msra.mxu0 %v389
  %930 = vmatpush.msra.mxu0 %v386
  %931 = vmatpush.msra.mxu0 %v383
  %932 = vmatpush.msra.mxu0 %v380
  %933 = vmatpush.msra.mxu0 %v377
  %934 = vmatmul.f32.gmra.mxu0 %v36
  %v935 = vpop.f32.mrf.mxu0
  %v936 = vadd.f32 %v916, %v935
  %937 = vdwg.mxu0
  %938 = vmatpush.msra.mxu0 %v470
  %939 = vmatpush.msra.mxu0 %v467
  %940 = vmatpush.msra.mxu0 %v464
  %941 = vmatpush.msra.mxu0 %v461
  %942 = vmatpush.msra.mxu0 %v458
  %943 = vmatpush.msra.mxu0 %v455
  %944 = vmatpush.msra.mxu0 %v452
  %945 = vmatpush.msra.mxu0 %v449
  %946 = vmatpush.msra.mxu0 %v446
  %947 = vmatpush.msra.mxu0 %v443
  %948 = vmatpush.msra.mxu0 %v440
  %949 = vmatpush.msra.mxu0 %v437
  %950 = vmatpush.msra.mxu0 %v434
  %951 = vmatpush.msra.mxu0 %v431
  %952 = vmatpush.msra.mxu0 %v428
  %953 = vmatpush.msra.mxu0 %v425
  %954 = vmatmul.f32.gmra.mxu0 %v37
  %v955 = vpop.f32.mrf.mxu0
  %v956 = vadd.f32 %v936, %v955
  %957 = vdwg.mxu0
  %958 = vmatpush.msra.mxu0 %v518
  %959 = vmatpush.msra.mxu0 %v515
  %960 = vmatpush.msra.mxu0 %v512
  %961 = vmatpush.msra.mxu0 %v509
  %962 = vmatpush.msra.mxu0 %v506
  %963 = vmatpush.msra.mxu0 %v503
  %964 = vmatpush.msra.mxu0 %v500
  %965 = vmatpush.msra.mxu0 %v497
  %966 = vmatpush.msra.mxu0 %v494
  %967 = vmatpush.msra.mxu0 %v491
  %968 = vmatpush.msra.mxu0 %v488
  %969 = vmatpush.msra.mxu0 %v485
  %970 = vmatpush.msra.mxu0 %v482
  %971 = vmatpush.msra.mxu0 %v479
  %972 = vmatpush.msra.mxu0 %v476
  %973 = vmatpush.msra.mxu0 %v473
  %974 = vmatmul.f32.gmra.mxu0 %v38
  %v975 = vpop.f32.mrf.mxu0
  %v976 = vadd.f32 %v956, %v975
  %977 = vdwg.mxu0
  %978 = vmatpush.msra.mxu0 %v566
  %979 = vmatpush.msra.mxu0 %v563
  %980 = vmatpush.msra.mxu0 %v560
  %981 = vmatpush.msra.mxu0 %v557
  %982 = vmatpush.msra.mxu0 %v554
  %983 = vmatpush.msra.mxu0 %v551
  %984 = vmatpush.msra.mxu0 %v548
  %985 = vmatpush.msra.mxu0 %v545
  %986 = vmatpush.msra.mxu0 %v542
  %987 = vmatpush.msra.mxu0 %v539
  %988 = vmatpush.msra.mxu0 %v536
  %989 = vmatpush.msra.mxu0 %v533
  %990 = vmatpush.msra.mxu0 %v530
  %991 = vmatpush.msra.mxu0 %v527
  %992 = vmatpush.msra.mxu0 %v524
  %993 = vmatpush.msra.mxu0 %v521
  %994 = vmatmul.f32.gmra.mxu0 %v39
  %v995 = vpop.f32.mrf.mxu0
  %v996 = vadd.f32 %v976, %v995
  %997 = vdwg.mxu0
  %998 = vmatpush.msra.mxu0 %v614
  %999 = vmatpush.msra.mxu0 %v611
  %1000 = vmatpush.msra.mxu0 %v608
  %1001 = vmatpush.msra.mxu0 %v605
  %1002 = vmatpush.msra.mxu0 %v602
  %1003 = vmatpush.msra.mxu0 %v599
  %1004 = vmatpush.msra.mxu0 %v596
  %1005 = vmatpush.msra.mxu0 %v593
  %1006 = vmatpush.msra.mxu0 %v590
  %1007 = vmatpush.msra.mxu0 %v587
  %1008 = vmatpush.msra.mxu0 %v584
  %1009 = vmatpush.msra.mxu0 %v581
  %1010 = vmatpush.msra.mxu0 %v578
  %1011 = vmatpush.msra.mxu0 %v575
  %1012 = vmatpush.msra.mxu0 %v572
  %1013 = vmatpush.msra.mxu0 %v569
  %1014 = vmatmul.f32.gmra.mxu0 %v40
  %v1015 = vpop.f32.mrf.mxu0
  %v1016 = vadd.f32 %v996, %v1015
  %1017 = vdwg.mxu0
  %1018 = vmatpush.msra.mxu0 %v87
  %1019 = vmatpush.msra.mxu0 %v84
  %1020 = vmatpush.msra.mxu0 %v81
  %1021 = vmatpush.msra.mxu0 %v78
  %1022 = vmatpush.msra.mxu0 %v75
  %1023 = vmatpush.msra.mxu0 %v72
  %1024 = vmatpush.msra.mxu0 %v69
  %1025 = vmatpush.msra.mxu0 %v66
  %1026 = vmatpush.msra.mxu0 %v63
  %1027 = vmatpush.msra.mxu0 %v60
  %1028 = vmatpush.msra.mxu0 %v57
  %1029 = vmatpush.msra.mxu0 %v54
  %1030 = vmatpush.msra.mxu0 %v51
  %1031 = vmatpush.msra.mxu0 %v48
  %1032 = vmatpush.msra.mxu0 %v45
  %1033 = vmatpush.msra.mxu0 %v42
  %1034 = vmatmul.f32.gmra.mxu0 %v29
  %v1035 = vpop.f32.mrf.mxu0
  %v1036 = vadd.f32 %v773, %v1035
  %1037 = vdwg.mxu0
  %1038 = vmatpush.msra.mxu0 %v135
  %1039 = vmatpush.msra.mxu0 %v132
  %1040 = vmatpush.msra.mxu0 %v129
  %1041 = vmatpush.msra.mxu0 %v126
  %1042 = vmatpush.msra.mxu0 %v123
  %1043 = vmatpush.msra.mxu0 %v120
  %1044 = vmatpush.msra.mxu0 %v117
  %1045 = vmatpush.msra.mxu0 %v114
  %1046 = vmatpush.msra.mxu0 %v111
  %1047 = vmatpush.msra.mxu0 %v108
  %1048 = vmatpush.msra.mxu0 %v105
  %1049 = vmatpush.msra.mxu0 %v102
  %1050 = vmatpush.msra.mxu0 %v99
  %1051 = vmatpush.msra.mxu0 %v96
  %1052 = vmatpush.msra.mxu0 %v93
  %1053 = vmatpush.msra.mxu0 %v90
  %1054 = vmatmul.f32.gmra.mxu0 %v30
  %v1055 = vpop.f32.mrf.mxu0
  %v1056 = vadd.f32 %v1036, %v1055
  %1057 = vdwg.mxu0
  %1058 = vmatpush.msra.mxu0 %v183
  %1059 = vmatpush.msra.mxu0 %v180
  %1060 = vmatpush.msra.mxu0 %v177
  %1061 = vmatpush.msra.mxu0 %v174
  %1062 = vmatpush.msra.mxu0 %v171
  %1063 = vmatpush.msra.mxu0 %v168
  %1064 = vmatpush.msra.mxu0 %v165
  %1065 = vmatpush.msra.mxu0 %v162
  %1066 = vmatpush.msra.mxu0 %v159
  %1067 = vmatpush.msra.mxu0 %v156
  %1068 = vmatpush.msra.mxu0 %v153
  %1069 = vmatpush.msra.mxu0 %v150
  %1070 = vmatpush.msra.mxu0 %v147
  %1071 = vmatpush.msra.mxu0 %v144
  %1072 = vmatpush.msra.mxu0 %v141
  %1073 = vmatpush.msra.mxu0 %v138
  %1074 = vmatmul.f32.gmra.mxu0 %v31
  %v1075 = vpop.f32.mrf.mxu0
  %v1076 = vadd.f32 %v1056, %v1075
  %1077 = vdwg.mxu0
  %1078 = vmatpush.msra.mxu0 %v231
  %1079 = vmatpush.msra.mxu0 %v228
  %1080 = vmatpush.msra.mxu0 %v225
  %1081 = vmatpush.msra.mxu0 %v222
  %1082 = vmatpush.msra.mxu0 %v219
  %1083 = vmatpush.msra.mxu0 %v216
  %1084 = vmatpush.msra.mxu0 %v213
  %1085 = vmatpush.msra.mxu0 %v210
  %1086 = vmatpush.msra.mxu0 %v207
  %1087 = vmatpush.msra.mxu0 %v204
  %1088 = vmatpush.msra.mxu0 %v201
  %1089 = vmatpush.msra.mxu0 %v198
  %1090 = vmatpush.msra.mxu0 %v195
  %1091 = vmatpush.msra.mxu0 %v192
  %1092 = vmatpush.msra.mxu0 %v189
  %1093 = vmatpush.msra.mxu0 %v186
  %1094 = vmatmul.f32.gmra.mxu0 %v32
  %v1095 = vpop.f32.mrf.mxu0
  %v1096 = vadd.f32 %v1076, %v1095
  %1097 = vdwg.mxu0
  %1098 = vmatpush.msra.mxu0 %v279
  %1099 = vmatpush.msra.mxu0 %v276
  %1100 = vmatpush.msra.mxu0 %v273
  %1101 = vmatpush.msra.mxu0 %v270
  %1102 = vmatpush.msra.mxu0 %v267
  %1103 = vmatpush.msra.mxu0 %v264
  %1104 = vmatpush.msra.mxu0 %v261
  %1105 = vmatpush.msra.mxu0 %v258
  %1106 = vmatpush.msra.mxu0 %v255
  %1107 = vmatpush.msra.mxu0 %v252
  %1108 = vmatpush.msra.mxu0 %v249
  %1109 = vmatpush.msra.mxu0 %v246
  %1110 = vmatpush.msra.mxu0 %v243
  %1111 = vmatpush.msra.mxu0 %v240
  %1112 = vmatpush.msra.mxu0 %v237
  %1113 = vmatpush.msra.mxu0 %v234
  %1114 = vmatmul.f32.gmra.mxu0 %v33
  %v1115 = vpop.f32.mrf.mxu0
  %v1116 = vadd.f32 %v1096, %v1115
  %1117 = vdwg.mxu0
  %1118 = vmatpush.msra.mxu0 %v327
  %1119 = vmatpush.msra.mxu0 %v324
  %1120 = vmatpush.msra.mxu0 %v321
  %1121 = vmatpush.msra.mxu0 %v318
  %1122 = vmatpush.msra.mxu0 %v315
  %1123 = vmatpush.msra.mxu0 %v312
  %1124 = vmatpush.msra.mxu0 %v309
  %1125 = vmatpush.msra.mxu0 %v306
  %1126 = vmatpush.msra.mxu0 %v303
  %1127 = vmatpush.msra.mxu0 %v300
  %1128 = vmatpush.msra.mxu0 %v297
  %1129 = vmatpush.msra.mxu0 %v294
  %1130 = vmatpush.msra.mxu0 %v291
  %1131 = vmatpush.msra.mxu0 %v288
  %1132 = vmatpush.msra.mxu0 %v285
  %1133 = vmatpush.msra.mxu0 %v282
  %1134 = vmatmul.f32.gmra.mxu0 %v34
  %v1135 = vpop.f32.mrf.mxu0
  %v1136 = vadd.f32 %v1116, %v1135
  %1137 = vdwg.mxu0
  %1138 = vmatpush.msra.mxu0 %v375
  %1139 = vmatpush.msra.mxu0 %v372
  %1140 = vmatpush.msra.mxu0 %v369
  %1141 = vmatpush.msra.mxu0 %v366
  %1142 = vmatpush.msra.mxu0 %v363
  %1143 = vmatpush.msra.mxu0 %v360
  %1144 = vmatpush.msra.mxu0 %v357
  %1145 = vmatpush.msra.mxu0 %v354
  %1146 = vmatpush.msra.mxu0 %v351
  %1147 = vmatpush.msra.mxu0 %v348
  %1148 = vmatpush.msra.mxu0 %v345
  %1149 = vmatpush.msra.mxu0 %v342
  %1150 = vmatpush.msra.mxu0 %v339
  %1151 = vmatpush.msra.mxu0 %v336
  %1152 = vmatpush.msra.mxu0 %v333
  %1153 = vmatpush.msra.mxu0 %v330
  %1154 = vmatmul.f32.gmra.mxu0 %v35
  %v1155 = vpop.f32.mrf.mxu0
  %v1156 = vadd.f32 %v1136, %v1155
  %1157 = vdwg.mxu0
  %1158 = vmatpush.msra.mxu0 %v423
  %1159 = vmatpush.msra.mxu0 %v420
  %1160 = vmatpush.msra.mxu0 %v417
  %1161 = vmatpush.msra.mxu0 %v414
  %1162 = vmatpush.msra.mxu0 %v411
  %1163 = vmatpush.msra.mxu0 %v408
  %1164 = vmatpush.msra.mxu0 %v405
  %1165 = vmatpush.msra.mxu0 %v402
  %1166 = vmatpush.msra.mxu0 %v399
  %1167 = vmatpush.msra.mxu0 %v396
  %1168 = vmatpush.msra.mxu0 %v393
  %1169 = vmatpush.msra.mxu0 %v390
  %1170 = vmatpush.msra.mxu0 %v387
  %1171 = vmatpush.msra.mxu0 %v384
  %1172 = vmatpush.msra.mxu0 %v381
  %1173 = vmatpush.msra.mxu0 %v378
  %1174 = vmatmul.f32.gmra.mxu0 %v36
  %v1175 = vpop.f32.mrf.mxu0
  %v1176 = vadd.f32 %v1156, %v1175
  %1177 = vdwg.mxu0
  %1178 = vmatpush.msra.mxu0 %v471
  %1179 = vmatpush.msra.mxu0 %v468
  %1180 = vmatpush.msra.mxu0 %v465
  %1181 = vmatpush.msra.mxu0 %v462
  %1182 = vmatpush.msra.mxu0 %v459
  %1183 = vmatpush.msra.mxu0 %v456
  %1184 = vmatpush.msra.mxu0 %v453
  %1185 = vmatpush.msra.mxu0 %v450
  %1186 = vmatpush.msra.mxu0 %v447
  %1187 = vmatpush.msra.mxu0 %v444
  %1188 = vmatpush.msra.mxu0 %v441
  %1189 = vmatpush.msra.mxu0 %v438
  %1190 = vmatpush.msra.mxu0 %v435
  %1191 = vmatpush.msra.mxu0 %v432
  %1192 = vmatpush.msra.mxu0 %v429
  %1193 = vmatpush.msra.mxu0 %v426
  %1194 = vmatmul.f32.gmra.mxu0 %v37
  %v1195 = vpop.f32.mrf.mxu0
  %v1196 = vadd.f32 %v1176, %v1195
  %1197 = vdwg.mxu0
  %1198 = vmatpush.msra.mxu0 %v519
  %1199 = vmatpush.msra.mxu0 %v516
  %1200 = vmatpush.msra.mxu0 %v513
  %1201 = vmatpush.msra.mxu0 %v510
  %1202 = vmatpush.msra.mxu0 %v507
  %1203 = vmatpush.msra.mxu0 %v504
  %1204 = vmatpush.msra.mxu0 %v501
  %1205 = vmatpush.msra.mxu0 %v498
  %1206 = vmatpush.msra.mxu0 %v495
  %1207 = vmatpush.msra.mxu0 %v492
  %1208 = vmatpush.msra.mxu0 %v489
  %1209 = vmatpush.msra.mxu0 %v486
  %1210 = vmatpush.msra.mxu0 %v483
  %1211 = vmatpush.msra.mxu0 %v480
  %1212 = vmatpush.msra.mxu0 %v477
  %1213 = vmatpush.msra.mxu0 %v474
  %1214 = vmatmul.f32.gmra.mxu0 %v38
  %v1215 = vpop.f32.mrf.mxu0
  %v1216 = vadd.f32 %v1196, %v1215
  %1217 = vdwg.mxu0
  %1218 = vmatpush.msra.mxu0 %v567
  %1219 = vmatpush.msra.mxu0 %v564
  %1220 = vmatpush.msra.mxu0 %v561
  %1221 = vmatpush.msra.mxu0 %v558
  %1222 = vmatpush.msra.mxu0 %v555
  %1223 = vmatpush.msra.mxu0 %v552
  %1224 = vmatpush.msra.mxu0 %v549
  %1225 = vmatpush.msra.mxu0 %v546
  %1226 = vmatpush.msra.mxu0 %v543
  %1227 = vmatpush.msra.mxu0 %v540
  %1228 = vmatpush.msra.mxu0 %v537
  %1229 = vmatpush.msra.mxu0 %v534
  %1230 = vmatpush.msra.mxu0 %v531
  %1231 = vmatpush.msra.mxu0 %v528
  %1232 = vmatpush.msra.mxu0 %v525
  %1233 = vmatpush.msra.mxu0 %v522
  %1234 = vmatmul.f32.gmra.mxu0 %v39
  %v1235 = vpop.f32.mrf.mxu0
  %v1236 = vadd.f32 %v1216, %v1235
  %1237 = vdwg.mxu0
  %1238 = vmatpush.msra.mxu0 %v615
  %1239 = vmatpush.msra.mxu0 %v612
  %1240 = vmatpush.msra.mxu0 %v609
  %1241 = vmatpush.msra.mxu0 %v606
  %1242 = vmatpush.msra.mxu0 %v603
  %1243 = vmatpush.msra.mxu0 %v600
  %1244 = vmatpush.msra.mxu0 %v597
  %1245 = vmatpush.msra.mxu0 %v594
  %1246 = vmatpush.msra.mxu0 %v591
  %1247 = vmatpush.msra.mxu0 %v588
  %1248 = vmatpush.msra.mxu0 %v585
  %1249 = vmatpush.msra.mxu0 %v582
  %1250 = vmatpush.msra.mxu0 %v579
  %1251 = vmatpush.msra.mxu0 %v576
  %1252 = vmatpush.msra.mxu0 %v573
  %1253 = vmatpush.msra.mxu0 %v570
  %1254 = vmatmul.f32.gmra.mxu0 %v40
  %v1255 = vpop.f32.mrf.mxu0
  %v1256 = vadd.f32 %v1236, %v1255
  %1257 = vdwg.mxu0
  %1258 = vmatpush.msra.mxu0 %v88
  %1259 = vmatpush.msra.mxu0 %v85
  %1260 = vmatpush.msra.mxu0 %v82
  %1261 = vmatpush.msra.mxu0 %v79
  %1262 = vmatpush.msra.mxu0 %v76
  %1263 = vmatpush.msra.mxu0 %v73
  %1264 = vmatpush.msra.mxu0 %v70
  %1265 = vmatpush.msra.mxu0 %v67
  %1266 = vmatpush.msra.mxu0 %v64
  %1267 = vmatpush.msra.mxu0 %v61
  %1268 = vmatpush.msra.mxu0 %v58
  %1269 = vmatpush.msra.mxu0 %v55
  %1270 = vmatpush.msra.mxu0 %v52
  %1271 = vmatpush.msra.mxu0 %v49
  %1272 = vmatpush.msra.mxu0 %v46
  %1273 = vmatpush.msra.mxu0 %v43
  %1274 = vmatmul.f32.gmra.mxu0 %v29
  %v1275 = vpop.f32.mrf.mxu0
  %v1276 = vadd.f32 %v774, %v1275
  %1277 = vdwg.mxu0
  %1278 = vmatpush.msra.mxu0 %v136
  %1279 = vmatpush.msra.mxu0 %v133
  %1280 = vmatpush.msra.mxu0 %v130
  %1281 = vmatpush.msra.mxu0 %v127
  %1282 = vmatpush.msra.mxu0 %v124
  %1283 = vmatpush.msra.mxu0 %v121
  %1284 = vmatpush.msra.mxu0 %v118
  %1285 = vmatpush.msra.mxu0 %v115
  %1286 = vmatpush.msra.mxu0 %v112
  %1287 = vmatpush.msra.mxu0 %v109
  %1288 = vmatpush.msra.mxu0 %v106
  %1289 = vmatpush.msra.mxu0 %v103
  %1290 = vmatpush.msra.mxu0 %v100
  %1291 = vmatpush.msra.mxu0 %v97
  %1292 = vmatpush.msra.mxu0 %v94
  %1293 = vmatpush.msra.mxu0 %v91
  %1294 = vmatmul.f32.gmra.mxu0 %v30
  %v1295 = vpop.f32.mrf.mxu0
  %v1296 = vadd.f32 %v1276, %v1295
  %1297 = vdwg.mxu0
  %1298 = vmatpush.msra.mxu0 %v184
  %1299 = vmatpush.msra.mxu0 %v181
  %1300 = vmatpush.msra.mxu0 %v178
  %1301 = vmatpush.msra.mxu0 %v175
  %1302 = vmatpush.msra.mxu0 %v172
  %1303 = vmatpush.msra.mxu0 %v169
  %1304 = vmatpush.msra.mxu0 %v166
  %1305 = vmatpush.msra.mxu0 %v163
  %1306 = vmatpush.msra.mxu0 %v160
  %1307 = vmatpush.msra.mxu0 %v157
  %1308 = vmatpush.msra.mxu0 %v154
  %1309 = vmatpush.msra.mxu0 %v151
  %1310 = vmatpush.msra.mxu0 %v148
  %1311 = vmatpush.msra.mxu0 %v145
  %1312 = vmatpush.msra.mxu0 %v142
  %1313 = vmatpush.msra.mxu0 %v139
  %1314 = vmatmul.f32.gmra.mxu0 %v31
  %v1315 = vpop.f32.mrf.mxu0
  %v1316 = vadd.f32 %v1296, %v1315
  %1317 = vdwg.mxu0
  %1318 = vmatpush.msra.mxu0 %v232
  %1319 = vmatpush.msra.mxu0 %v229
  %1320 = vmatpush.msra.mxu0 %v226
  %1321 = vmatpush.msra.mxu0 %v223
  %1322 = vmatpush.msra.mxu0 %v220
  %1323 = vmatpush.msra.mxu0 %v217
  %1324 = vmatpush.msra.mxu0 %v214
  %1325 = vmatpush.msra.mxu0 %v211
  %1326 = vmatpush.msra.mxu0 %v208
  %1327 = vmatpush.msra.mxu0 %v205
  %1328 = vmatpush.msra.mxu0 %v202
  %1329 = vmatpush.msra.mxu0 %v199
  %1330 = vmatpush.msra.mxu0 %v196
  %1331 = vmatpush.msra.mxu0 %v193
  %1332 = vmatpush.msra.mxu0 %v190
  %1333 = vmatpush.msra.mxu0 %v187
  %1334 = vmatmul.f32.gmra.mxu0 %v32
  %v1335 = vpop.f32.mrf.mxu0
  %v1336 = vadd.f32 %v1316, %v1335
  %1337 = vdwg.mxu0
  %1338 = vmatpush.msra.mxu0 %v280
  %1339 = vmatpush.msra.mxu0 %v277
  %1340 = vmatpush.msra.mxu0 %v274
  %1341 = vmatpush.msra.mxu0 %v271
  %1342 = vmatpush.msra.mxu0 %v268
  %1343 = vmatpush.msra.mxu0 %v265
  %1344 = vmatpush.msra.mxu0 %v262
  %1345 = vmatpush.msra.mxu0 %v259
  %1346 = vmatpush.msra.mxu0 %v256
  %1347 = vmatpush.msra.mxu0 %v253
  %1348 = vmatpush.msra.mxu0 %v250
  %1349 = vmatpush.msra.mxu0 %v247
  %1350 = vmatpush.msra.mxu0 %v244
  %1351 = vmatpush.msra.mxu0 %v241
  %1352 = vmatpush.msra.mxu0 %v238
  %1353 = vmatpush.msra.mxu0 %v235
  %1354 = vmatmul.f32.gmra.mxu0 %v33
  %v1355 = vpop.f32.mrf.mxu0
  %v1356 = vadd.f32 %v1336, %v1355
  %1357 = vdwg.mxu0
  %1358 = vmatpush.msra.mxu0 %v328
  %1359 = vmatpush.msra.mxu0 %v325
  %1360 = vmatpush.msra.mxu0 %v322
  %1361 = vmatpush.msra.mxu0 %v319
  %1362 = vmatpush.msra.mxu0 %v316
  %1363 = vmatpush.msra.mxu0 %v313
  %1364 = vmatpush.msra.mxu0 %v310
  %1365 = vmatpush.msra.mxu0 %v307
  %1366 = vmatpush.msra.mxu0 %v304
  %1367 = vmatpush.msra.mxu0 %v301
  %1368 = vmatpush.msra.mxu0 %v298
  %1369 = vmatpush.msra.mxu0 %v295
  %1370 = vmatpush.msra.mxu0 %v292
  %1371 = vmatpush.msra.mxu0 %v289
  %1372 = vmatpush.msra.mxu0 %v286
  %1373 = vmatpush.msra.mxu0 %v283
  %1374 = vmatmul.f32.gmra.mxu0 %v34
  %v1375 = vpop.f32.mrf.mxu0
  %v1376 = vadd.f32 %v1356, %v1375
  %1377 = vdwg.mxu0
  %1378 = vmatpush.msra.mxu0 %v376
  %1379 = vmatpush.msra.mxu0 %v373
  %1380 = vmatpush.msra.mxu0 %v370
  %1381 = vmatpush.msra.mxu0 %v367
  %1382 = vmatpush.msra.mxu0 %v364
  %1383 = vmatpush.msra.mxu0 %v361
  %1384 = vmatpush.msra.mxu0 %v358
  %1385 = vmatpush.msra.mxu0 %v355
  %1386 = vmatpush.msra.mxu0 %v352
  %1387 = vmatpush.msra.mxu0 %v349
  %1388 = vmatpush.msra.mxu0 %v346
  %1389 = vmatpush.msra.mxu0 %v343
  %1390 = vmatpush.msra.mxu0 %v340
  %1391 = vmatpush.msra.mxu0 %v337
  %1392 = vmatpush.msra.mxu0 %v334
  %1393 = vmatpush.msra.mxu0 %v331
  %1394 = vmatmul.f32.gmra.mxu0 %v35
  %v1395 = vpop.f32.mrf.mxu0
  %v1396 = vadd.f32 %v1376, %v1395
  %1397 = vdwg.mxu0
  %1398 = vmatpush.msra.mxu0 %v424
  %1399 = vmatpush.msra.mxu0 %v421
  %1400 = vmatpush.msra.mxu0 %v418
  %1401 = vmatpush.msra.mxu0 %v415
  %1402 = vmatpush.msra.mxu0 %v412
  %1403 = vmatpush.msra.mxu0 %v409
  %1404 = vmatpush.msra.mxu0 %v406
  %1405 = vmatpush.msra.mxu0 %v403
  %1406 = vmatpush.msra.mxu0 %v400
  %1407 = vmatpush.msra.mxu0 %v397
  %1408 = vmatpush.msra.mxu0 %v394
  %1409 = vmatpush.msra.mxu0 %v391
  %1410 = vmatpush.msra.mxu0 %v388
  %1411 = vmatpush.msra.mxu0 %v385
  %1412 = vmatpush.msra.mxu0 %v382
  %1413 = vmatpush.msra.mxu0 %v379
  %1414 = vmatmul.f32.gmra.mxu0 %v36
  %v1415 = vpop.f32.mrf.mxu0
  %v1416 = vadd.f32 %v1396, %v1415
  %1417 = vdwg.mxu0
  %1418 = vmatpush.msra.mxu0 %v472
  %1419 = vmatpush.msra.mxu0 %v469
  %1420 = vmatpush.msra.mxu0 %v466
  %1421 = vmatpush.msra.mxu0 %v463
  %1422 = vmatpush.msra.mxu0 %v460
  %1423 = vmatpush.msra.mxu0 %v457
  %1424 = vmatpush.msra.mxu0 %v454
  %1425 = vmatpush.msra.mxu0 %v451
  %1426 = vmatpush.msra.mxu0 %v448
  %1427 = vmatpush.msra.mxu0 %v445
  %1428 = vmatpush.msra.mxu0 %v442
  %1429 = vmatpush.msra.mxu0 %v439
  %1430 = vmatpush.msra.mxu0 %v436
  %1431 = vmatpush.msra.mxu0 %v433
  %1432 = vmatpush.msra.mxu0 %v430
  %1433 = vmatpush.msra.mxu0 %v427
  %1434 = vmatmul.f32.gmra.mxu0 %v37
  %v1435 = vpop.f32.mrf.mxu0
  %v1436 = vadd.f32 %v1416, %v1435
  %1437 = vdwg.mxu0
  %1438 = vmatpush.msra.mxu0 %v520
  %1439 = vmatpush.msra.mxu0 %v517
  %1440 = vmatpush.msra.mxu0 %v514
  %1441 = vmatpush.msra.mxu0 %v511
  %1442 = vmatpush.msra.mxu0 %v508
  %1443 = vmatpush.msra.mxu0 %v505
  %1444 = vmatpush.msra.mxu0 %v502
  %1445 = vmatpush.msra.mxu0 %v499
  %1446 = vmatpush.msra.mxu0 %v496
  %1447 = vmatpush.msra.mxu0 %v493
  %1448 = vmatpush.msra.mxu0 %v490
  %1449 = vmatpush.msra.mxu0 %v487
  %1450 = vmatpush.msra.mxu0 %v484
  %1451 = vmatpush.msra.mxu0 %v481
  %1452 = vmatpush.msra.mxu0 %v478
  %1453 = vmatpush.msra.mxu0 %v475
  %1454 = vmatmul.f32.gmra.mxu0 %v38
  %v1455 = vpop.f32.mrf.mxu0
  %v1456 = vadd.f32 %v1436, %v1455
  %1457 = vdwg.mxu0
  %1458 = vmatpush.msra.mxu0 %v568
  %1459 = vmatpush.msra.mxu0 %v565
  %1460 = vmatpush.msra.mxu0 %v562
  %1461 = vmatpush.msra.mxu0 %v559
  %1462 = vmatpush.msra.mxu0 %v556
  %1463 = vmatpush.msra.mxu0 %v553
  %1464 = vmatpush.msra.mxu0 %v550
  %1465 = vmatpush.msra.mxu0 %v547
  %1466 = vmatpush.msra.mxu0 %v544
  %1467 = vmatpush.msra.mxu0 %v541
  %1468 = vmatpush.msra.mxu0 %v538
  %1469 = vmatpush.msra.mxu0 %v535
  %1470 = vmatpush.msra.mxu0 %v532
  %1471 = vmatpush.msra.mxu0 %v529
  %1472 = vmatpush.msra.mxu0 %v526
  %1473 = vmatpush.msra.mxu0 %v523
  %1474 = vmatmul.f32.gmra.mxu0 %v39
  %v1475 = vpop.f32.mrf.mxu0
  %v1476 = vadd.f32 %v1456, %v1475
  %1477 = vdwg.mxu0
  %1478 = vmatpush.msra.mxu0 %v616
  %1479 = vmatpush.msra.mxu0 %v613
  %1480 = vmatpush.msra.mxu0 %v610
  %1481 = vmatpush.msra.mxu0 %v607
  %1482 = vmatpush.msra.mxu0 %v604
  %1483 = vmatpush.msra.mxu0 %v601
  %1484 = vmatpush.msra.mxu0 %v598
  %1485 = vmatpush.msra.mxu0 %v595
  %1486 = vmatpush.msra.mxu0 %v592
  %1487 = vmatpush.msra.mxu0 %v589
  %1488 = vmatpush.msra.mxu0 %v586
  %1489 = vmatpush.msra.mxu0 %v583
  %1490 = vmatpush.msra.mxu0 %v580
  %1491 = vmatpush.msra.mxu0 %v577
  %1492 = vmatpush.msra.mxu0 %v574
  %1493 = vmatpush.msra.mxu0 %v571
  %1494 = vmatmul.f32.gmra.mxu0 %v40
  %v1495 = vpop.f32.mrf.mxu0
  %v1496 = vadd.f32 %v1476, %v1495
  %1497 = vdwg.mxu0
  %vm1498 = vcmask 359424
  %v1500 = vsel %vm1498, %v1496, 0
  %vm1502 = vcmask 1043456
  %v1504 = vsel %vm1502, %v770, 0
  %1506 = vmatpush.msra.mxu0 %v748
  %1507 = vmatpush.msra.mxu0 %v747
  %1508 = vmatpush.msra.mxu0 %v746
  %1509 = vmatpush.msra.mxu0 %v745
  %1510 = vmatpush.msra.mxu0 %v744
  %1511 = vmatpush.msra.mxu0 %v743
  %1512 = vmatpush.msra.mxu0 %v742
  %1513 = vmatpush.msra.mxu0 %v741
  %1514 = vmatpush.msra.mxu0 %v740
  %1515 = vmatpush.msra.mxu0 %v739
  %1516 = vmatpush.msra.mxu0 %v738
  %1517 = vmatpush.msra.mxu0 %v737
  %1518 = vmatpush.msra.mxu0 %v736
  %1519 = vmatpush.msra.mxu0 %v735
  %1520 = vmatpush.msra.mxu0 %v734
  %1521 = vmatpush.msra.mxu0 %v733
  %1522 = vmatmul.f32.gmra.mxu0 %v1016
  %v1523 = vpop.f32.mrf.mxu0
  %v1524 = vadd.f32 0.0, %v1523
  %1525 = vdwg.mxu0
  %1526 = vmatpush.msra.mxu0 %v764
  %1527 = vmatpush.msra.mxu0 %v763
  %1528 = vmatpush.msra.mxu0 %v762
  %1529 = vmatpush.msra.mxu0 %v761
  %1530 = vmatpush.msra.mxu0 %v760
  %1531 = vmatpush.msra.mxu0 %v759
  %1532 = vmatpush.msra.mxu0 %v758
  %1533 = vmatpush.msra.mxu0 %v757
  %1534 = vmatpush.msra.mxu0 %v756
  %1535 = vmatpush.msra.mxu0 %v755
  %1536 = vmatpush.msra.mxu0 %v754
  %1537 = vmatpush.msra.mxu0 %v753
  %1538 = vmatpush.msra.mxu0 %v752
  %1539 = vmatpush.msra.mxu0 %v751
  %1540 = vmatpush.msra.mxu0 %v750
  %1541 = vmatpush.msra.mxu0 %v749
  %1542 = vmatmul.f32.gmra.mxu0 %v1256
  %v1543 = vpop.f32.mrf.mxu0
  %v1544 = vadd.f32 %v1524, %v1543
  %1545 = vdwg.mxu0
  %1546 = vmatpush.msra.mxu0 0.0
  %1547 = vmatpush.msra.mxu0 0.0
  %1548 = vmatpush.msra.mxu0 0.0
  %1549 = vmatpush.msra.mxu0 0.0
  %1550 = vmatpush.msra.mxu0 0.0
  %1551 = vmatpush.msra.mxu0 0.0
  %1552 = vmatpush.msra.mxu0 0.0
  %1553 = vmatpush.msra.mxu0 0.0
  %1554 = vmatpush.msra.mxu0 0.0
  %1555 = vmatpush.msra.mxu0 0.0
  %1556 = vmatpush.msra.mxu0 %v1504
  %1557 = vmatpush.msra.mxu0 %v769
  %1558 = vmatpush.msra.mxu0 %v768
  %1559 = vmatpush.msra.mxu0 %v767
  %1560 = vmatpush.msra.mxu0 %v766
  %1561 = vmatpush.msra.mxu0 %v765
  %1562 = vmatmul.f32.gmra.mxu0 %v1500
  %v1563 = vpop.f32.mrf.mxu0
  %v1564 = vadd.f32 %v1544, %v1563
  %1565 = vdwg.mxu0
  %v1566 = vmul.f32 %v1564, 0.02
  %v1567 = vmul.f32 %v1016, %v1016
  %v1568 = vmul.f32 %v1256, %v1256
  %v1569 = vmul.f32 %v1496, %v1496
  %v1571 = vsel %vm1498, %v1569, 0
  %1573 = vmatpush.msra.mxu0 %v748
  %1574 = vmatpush.msra.mxu0 %v747
  %1575 = vmatpush.msra.mxu0 %v746
  %1576 = vmatpush.msra.mxu0 %v745
  %1577 = vmatpush.msra.mxu0 %v744
  %1578 = vmatpush.msra.mxu0 %v743
  %1579 = vmatpush.msra.mxu0 %v742
  %1580 = vmatpush.msra.mxu0 %v741
  %1581 = vmatpush.msra.mxu0 %v740
  %1582 = vmatpush.msra.mxu0 %v739
  %1583 = vmatpush.msra.mxu0 %v738
  %1584 = vmatpush.msra.mxu0 %v737
  %1585 = vmatpush.msra.mxu0 %v736
  %1586 = vmatpush.msra.mxu0 %v735
  %1587 = vmatpush.msra.mxu0 %v734
  %1588 = vmatpush.msra.mxu0 %v733
  %1589 = vmatmul.f32.gmra.mxu0 %v1567
  %v1590 = vpop.f32.mrf.mxu0
  %v1591 = vadd.f32 0.0, %v1590
  %1592 = vdwg.mxu0
  %1593 = vmatpush.msra.mxu0 %v764
  %1594 = vmatpush.msra.mxu0 %v763
  %1595 = vmatpush.msra.mxu0 %v762
  %1596 = vmatpush.msra.mxu0 %v761
  %1597 = vmatpush.msra.mxu0 %v760
  %1598 = vmatpush.msra.mxu0 %v759
  %1599 = vmatpush.msra.mxu0 %v758
  %1600 = vmatpush.msra.mxu0 %v757
  %1601 = vmatpush.msra.mxu0 %v756
  %1602 = vmatpush.msra.mxu0 %v755
  %1603 = vmatpush.msra.mxu0 %v754
  %1604 = vmatpush.msra.mxu0 %v753
  %1605 = vmatpush.msra.mxu0 %v752
  %1606 = vmatpush.msra.mxu0 %v751
  %1607 = vmatpush.msra.mxu0 %v750
  %1608 = vmatpush.msra.mxu0 %v749
  %1609 = vmatmul.f32.gmra.mxu0 %v1568
  %v1610 = vpop.f32.mrf.mxu0
  %v1611 = vadd.f32 %v1591, %v1610
  %1612 = vdwg.mxu0
  %1613 = vmatpush.msra.mxu0 0.0
  %1614 = vmatpush.msra.mxu0 0.0
  %1615 = vmatpush.msra.mxu0 0.0
  %1616 = vmatpush.msra.mxu0 0.0
  %1617 = vmatpush.msra.mxu0 0.0
  %1618 = vmatpush.msra.mxu0 0.0
  %1619 = vmatpush.msra.mxu0 0.0
  %1620 = vmatpush.msra.mxu0 0.0
  %1621 = vmatpush.msra.mxu0 0.0
  %1622 = vmatpush.msra.mxu0 0.0
  %1623 = vmatpush.msra.mxu0 %v1504
  %1624 = vmatpush.msra.mxu0 %v769
  %1625 = vmatpush.msra.mxu0 %v768
  %1626 = vmatpush.msra.mxu0 %v767
  %1627 = vmatpush.msra.mxu0 %v766
  %1628 = vmatpush.msra.mxu0 %v765
  %1629 = vmatmul.f32.gmra.mxu0 %v1571
  %v1630 = vpop.f32.mrf.mxu0
  %v1631 = vadd.f32 %v1611, %v1630
  %1632 = vdwg.mxu0
  %v1633 = vmul.f32 %v1631, 0.02
  %v1634 = vmul.f32 %v1566, %v1566
  %v1635 = vsub.f32 %v1633, %v1634
  %v1636 = vmax.f32 %v1635, 0.0
  %v1637 = vadd.f32 %v1636, 1e-05
  %v1638 = vrsqrt.pop %v1637
  %v1639 = vmul.f32 %v1638, %v1637
  %v1640 = vmul.f32 %v1639, %v1638
  %v1641 = vmul.f32 0.5, %v1640
  %v1642 = vsub.f32 1.5, %v1641
  %v1643 = vmul.f32 %v1638, %v1642
  %vm1644 = vweird.f32 %v1637
  %vm1645 = vweird.f32 %v1638
  %vm1646 = vmor %vm1644, %vm1645
  %v1647 = vsel %vm1646, %v1638, %v1643
  %vm1648 = vcmask 48128
  %v1650 = vsel %vm1648, %v1566, 0
  %vm1652 = vcmask 1045504
  %v1654 = vsel %vm1652, %v26, 0
  %v1657 = vsel %vm1652, %v27, 0
  %v1660 = vsel %vm1652, %v28, 0
  %1662 = vmatpush.msra.mxu0 0.0
  %1663 = vmatpush.msra.mxu0 0.0
  %1664 = vmatpush.msra.mxu0 0.0
  %1665 = vmatpush.msra.mxu0 0.0
  %1666 = vmatpush.msra.mxu0 0.0
  %1667 = vmatpush.msra.mxu0 0.0
  %1668 = vmatpush.msra.mxu0 0.0
  %1669 = vmatpush.msra.mxu0 0.0
  %1670 = vmatpush.msra.mxu0 0.0
  %1671 = vmatpush.msra.mxu0 0.0
  %1672 = vmatpush.msra.mxu0 0.0
  %1673 = vmatpush.msra.mxu0 0.0
  %1674 = vmatpush.msra.mxu0 0.0
  %1675 = vmatpush.msra.mxu0 0.0
  %1676 = vmatpush.msra.mxu0 0.0
  %1677 = vmatpush.msra.mxu0 %v1654
  %1678 = vmatmul.f32.gmra.mxu0 %v1650
  %v1679 = vpop.f32.mrf.mxu0
  %v1680 = vadd.f32 0.0, %v1679
  %1681 = vdwg.mxu0
  %1682 = vmatpush.msra.mxu0 0.0
  %1683 = vmatpush.msra.mxu0 0.0
  %1684 = vmatpush.msra.mxu0 0.0
  %1685 = vmatpush.msra.mxu0 0.0
  %1686 = vmatpush.msra.mxu0 0.0
  %1687 = vmatpush.msra.mxu0 0.0
  %1688 = vmatpush.msra.mxu0 0.0
  %1689 = vmatpush.msra.mxu0 0.0
  %1690 = vmatpush.msra.mxu0 0.0
  %1691 = vmatpush.msra.mxu0 0.0
  %1692 = vmatpush.msra.mxu0 0.0
  %1693 = vmatpush.msra.mxu0 0.0
  %1694 = vmatpush.msra.mxu0 0.0
  %1695 = vmatpush.msra.mxu0 0.0
  %1696 = vmatpush.msra.mxu0 0.0
  %1697 = vmatpush.msra.mxu0 %v1657
  %1698 = vmatmul.f32.gmra.mxu0 %v1650
  %v1699 = vpop.f32.mrf.mxu0
  %v1700 = vadd.f32 0.0, %v1699
  %1701 = vdwg.mxu0
  %1702 = vmatpush.msra.mxu0 0.0
  %1703 = vmatpush.msra.mxu0 0.0
  %1704 = vmatpush.msra.mxu0 0.0
  %1705 = vmatpush.msra.mxu0 0.0
  %1706 = vmatpush.msra.mxu0 0.0
  %1707 = vmatpush.msra.mxu0 0.0
  %1708 = vmatpush.msra.mxu0 0.0
  %1709 = vmatpush.msra.mxu0 0.0
  %1710 = vmatpush.msra.mxu0 0.0
  %1711 = vmatpush.msra.mxu0 0.0
  %1712 = vmatpush.msra.mxu0 0.0
  %1713 = vmatpush.msra.mxu0 0.0
  %1714 = vmatpush.msra.mxu0 0.0
  %1715 = vmatpush.msra.mxu0 0.0
  %1716 = vmatpush.msra.mxu0 0.0
  %1717 = vmatpush.msra.mxu0 %v1660
  %1718 = vmatmul.f32.gmra.mxu0 %v1650
  %v1719 = vpop.f32.mrf.mxu0
  %v1720 = vadd.f32 0.0, %v1719
  %1721 = vdwg.mxu0
  %v1723 = vsel %vm1648, %v1647, 0
  %1725 = vmatpush.msra.mxu0 0.0
  %1726 = vmatpush.msra.mxu0 0.0
  %1727 = vmatpush.msra.mxu0 0.0
  %1728 = vmatpush.msra.mxu0 0.0
  %1729 = vmatpush.msra.mxu0 0.0
  %1730 = vmatpush.msra.mxu0 0.0
  %1731 = vmatpush.msra.mxu0 0.0
  %1732 = vmatpush.msra.mxu0 0.0
  %1733 = vmatpush.msra.mxu0 0.0
  %1734 = vmatpush.msra.mxu0 0.0
  %1735 = vmatpush.msra.mxu0 0.0
  %1736 = vmatpush.msra.mxu0 0.0
  %1737 = vmatpush.msra.mxu0 0.0
  %1738 = vmatpush.msra.mxu0 0.0
  %1739 = vmatpush.msra.mxu0 0.0
  %1740 = vmatpush.msra.mxu0 %v1654
  %1741 = vmatmul.f32.gmra.mxu0 %v1723
  %v1742 = vpop.f32.mrf.mxu0
  %v1743 = vadd.f32 0.0, %v1742
  %1744 = vdwg.mxu0
  %1745 = vmatpush.msra.mxu0 0.0
  %1746 = vmatpush.msra.mxu0 0.0
  %1747 = vmatpush.msra.mxu0 0.0
  %1748 = vmatpush.msra.mxu0 0.0
  %1749 = vmatpush.msra.mxu0 0.0
  %1750 = vmatpush.msra.mxu0 0.0
  %1751 = vmatpush.msra.mxu0 0.0
  %1752 = vmatpush.msra.mxu0 0.0
  %1753 = vmatpush.msra.mxu0 0.0
  %1754 = vmatpush.msra.mxu0 0.0
  %1755 = vmatpush.msra.mxu0 0.0
  %1756 = vmatpush.msra.mxu0 0.0
  %1757 = vmatpush.msra.mxu0 0.0
  %1758 = vmatpush.msra.mxu0 0.0
  %1759 = vmatpush.msra.mxu0 0.0
  %1760 = vmatpush.msra.mxu0 %v1657
  %1761 = vmatmul.f32.gmra.mxu0 %v1723
  %v1762 = vpop.f32.mrf.mxu0
  %v1763 = vadd.f32 0.0, %v1762
  %1764 = vdwg.mxu0
  %1765 = vmatpush.msra.mxu0 0.0
  %1766 = vmatpush.msra.mxu0 0.0
  %1767 = vmatpush.msra.mxu0 0.0
  %1768 = vmatpush.msra.mxu0 0.0
  %1769 = vmatpush.msra.mxu0 0.0
  %1770 = vmatpush.msra.mxu0 0.0
  %1771 = vmatpush.msra.mxu0 0.0
  %1772 = vmatpush.msra.mxu0 0.0
  %1773 = vmatpush.msra.mxu0 0.0
  %1774 = vmatpush.msra.mxu0 0.0
  %1775 = vmatpush.msra.mxu0 0.0
  %1776 = vmatpush.msra.mxu0 0.0
  %1777 = vmatpush.msra.mxu0 0.0
  %1778 = vmatpush.msra.mxu0 0.0
  %1779 = vmatpush.msra.mxu0 0.0
  %1780 = vmatpush.msra.mxu0 %v1660
  %1781 = vmatmul.f32.gmra.mxu0 %v1723
  %v1782 = vpop.f32.mrf.mxu0
  %v1783 = vadd.f32 0.0, %v1782
  %1784 = vdwg.mxu0
  %v1785 = vsub.f32 %v1016, %v1680
  %v1786 = vsub.f32 %v1256, %v1700
  %v1787 = vsub.f32 %v1496, %v1720
  %v1788 = vmul.f32 %v1785, %v1743
  %v1789 = vmul.f32 %v1786, %v1763
  %v1790 = vmul.f32 %v1787, %v1783
  %v1791 = vmax.f32 %v1788, 0.0
  %v1792 = vmax.f32 %v1789, 0.0
  %v1793 = vmax.f32 %v1790, 0.0
  %v1795 = vperm.slane %v732, 0
  %v1796 = vperm.slane %v732, 1
  %v1797 = vperm.slane %v732, 2
  %v1802 = vsel %vm1498, %v1793, 0
  %v1805 = vsel %vm1502, %v729, 0
  %v1808 = vsel %vm1502, %v730, 0
  %v1811 = vsel %vm1502, %v731, 0
  %1813 = vmatpush.msra.mxu0 %v663
  %1814 = vmatpush.msra.mxu0 %v660
  %1815 = vmatpush.msra.mxu0 %v657
  %1816 = vmatpush.msra.mxu0 %v654
  %1817 = vmatpush.msra.mxu0 %v651
  %1818 = vmatpush.msra.mxu0 %v648
  %1819 = vmatpush.msra.mxu0 %v645
  %1820 = vmatpush.msra.mxu0 %v642
  %1821 = vmatpush.msra.mxu0 %v639
  %1822 = vmatpush.msra.mxu0 %v636
  %1823 = vmatpush.msra.mxu0 %v633
  %1824 = vmatpush.msra.mxu0 %v630
  %1825 = vmatpush.msra.mxu0 %v627
  %1826 = vmatpush.msra.mxu0 %v624
  %1827 = vmatpush.msra.mxu0 %v621
  %1828 = vmatpush.msra.mxu0 %v618
  %1829 = vmatmul.f32.gmra.mxu0 %v1791
  %v1830 = vpop.f32.mrf.mxu0
  %v1831 = vadd.f32 %v1795, %v1830
  %1832 = vdwg.mxu0
  %1833 = vmatpush.msra.mxu0 %v711
  %1834 = vmatpush.msra.mxu0 %v708
  %1835 = vmatpush.msra.mxu0 %v705
  %1836 = vmatpush.msra.mxu0 %v702
  %1837 = vmatpush.msra.mxu0 %v699
  %1838 = vmatpush.msra.mxu0 %v696
  %1839 = vmatpush.msra.mxu0 %v693
  %1840 = vmatpush.msra.mxu0 %v690
  %1841 = vmatpush.msra.mxu0 %v687
  %1842 = vmatpush.msra.mxu0 %v684
  %1843 = vmatpush.msra.mxu0 %v681
  %1844 = vmatpush.msra.mxu0 %v678
  %1845 = vmatpush.msra.mxu0 %v675
  %1846 = vmatpush.msra.mxu0 %v672
  %1847 = vmatpush.msra.mxu0 %v669
  %1848 = vmatpush.msra.mxu0 %v666
  %1849 = vmatmul.f32.gmra.mxu0 %v1792
  %v1850 = vpop.f32.mrf.mxu0
  %v1851 = vadd.f32 %v1831, %v1850
  %1852 = vdwg.mxu0
  %1853 = vmatpush.msra.mxu0 0.0
  %1854 = vmatpush.msra.mxu0 0.0
  %1855 = vmatpush.msra.mxu0 0.0
  %1856 = vmatpush.msra.mxu0 0.0
  %1857 = vmatpush.msra.mxu0 0.0
  %1858 = vmatpush.msra.mxu0 0.0
  %1859 = vmatpush.msra.mxu0 0.0
  %1860 = vmatpush.msra.mxu0 0.0
  %1861 = vmatpush.msra.mxu0 0.0
  %1862 = vmatpush.msra.mxu0 0.0
  %1863 = vmatpush.msra.mxu0 %v1805
  %1864 = vmatpush.msra.mxu0 %v726
  %1865 = vmatpush.msra.mxu0 %v723
  %1866 = vmatpush.msra.mxu0 %v720
  %1867 = vmatpush.msra.mxu0 %v717
  %1868 = vmatpush.msra.mxu0 %v714
  %1869 = vmatmul.f32.gmra.mxu0 %v1802
  %v1870 = vpop.f32.mrf.mxu0
  %v1871 = vadd.f32 %v1851, %v1870
  %1872 = vdwg.mxu0
  %1873 = vmatpush.msra.mxu0 %v664
  %1874 = vmatpush.msra.mxu0 %v661
  %1875 = vmatpush.msra.mxu0 %v658
  %1876 = vmatpush.msra.mxu0 %v655
  %1877 = vmatpush.msra.mxu0 %v652
  %1878 = vmatpush.msra.mxu0 %v649
  %1879 = vmatpush.msra.mxu0 %v646
  %1880 = vmatpush.msra.mxu0 %v643
  %1881 = vmatpush.msra.mxu0 %v640
  %1882 = vmatpush.msra.mxu0 %v637
  %1883 = vmatpush.msra.mxu0 %v634
  %1884 = vmatpush.msra.mxu0 %v631
  %1885 = vmatpush.msra.mxu0 %v628
  %1886 = vmatpush.msra.mxu0 %v625
  %1887 = vmatpush.msra.mxu0 %v622
  %1888 = vmatpush.msra.mxu0 %v619
  %1889 = vmatmul.f32.gmra.mxu0 %v1791
  %v1890 = vpop.f32.mrf.mxu0
  %v1891 = vadd.f32 %v1796, %v1890
  %1892 = vdwg.mxu0
  %1893 = vmatpush.msra.mxu0 %v712
  %1894 = vmatpush.msra.mxu0 %v709
  %1895 = vmatpush.msra.mxu0 %v706
  %1896 = vmatpush.msra.mxu0 %v703
  %1897 = vmatpush.msra.mxu0 %v700
  %1898 = vmatpush.msra.mxu0 %v697
  %1899 = vmatpush.msra.mxu0 %v694
  %1900 = vmatpush.msra.mxu0 %v691
  %1901 = vmatpush.msra.mxu0 %v688
  %1902 = vmatpush.msra.mxu0 %v685
  %1903 = vmatpush.msra.mxu0 %v682
  %1904 = vmatpush.msra.mxu0 %v679
  %1905 = vmatpush.msra.mxu0 %v676
  %1906 = vmatpush.msra.mxu0 %v673
  %1907 = vmatpush.msra.mxu0 %v670
  %1908 = vmatpush.msra.mxu0 %v667
  %1909 = vmatmul.f32.gmra.mxu0 %v1792
  %v1910 = vpop.f32.mrf.mxu0
  %v1911 = vadd.f32 %v1891, %v1910
  %1912 = vdwg.mxu0
  %1913 = vmatpush.msra.mxu0 0.0
  %1914 = vmatpush.msra.mxu0 0.0
  %1915 = vmatpush.msra.mxu0 0.0
  %1916 = vmatpush.msra.mxu0 0.0
  %1917 = vmatpush.msra.mxu0 0.0
  %1918 = vmatpush.msra.mxu0 0.0
  %1919 = vmatpush.msra.mxu0 0.0
  %1920 = vmatpush.msra.mxu0 0.0
  %1921 = vmatpush.msra.mxu0 0.0
  %1922 = vmatpush.msra.mxu0 0.0
  %1923 = vmatpush.msra.mxu0 %v1808
  %1924 = vmatpush.msra.mxu0 %v727
  %1925 = vmatpush.msra.mxu0 %v724
  %1926 = vmatpush.msra.mxu0 %v721
  %1927 = vmatpush.msra.mxu0 %v718
  %1928 = vmatpush.msra.mxu0 %v715
  %1929 = vmatmul.f32.gmra.mxu0 %v1802
  %v1930 = vpop.f32.mrf.mxu0
  %v1931 = vadd.f32 %v1911, %v1930
  %1932 = vdwg.mxu0
  %1933 = vmatpush.msra.mxu0 %v665
  %1934 = vmatpush.msra.mxu0 %v662
  %1935 = vmatpush.msra.mxu0 %v659
  %1936 = vmatpush.msra.mxu0 %v656
  %1937 = vmatpush.msra.mxu0 %v653
  %1938 = vmatpush.msra.mxu0 %v650
  %1939 = vmatpush.msra.mxu0 %v647
  %1940 = vmatpush.msra.mxu0 %v644
  %1941 = vmatpush.msra.mxu0 %v641
  %1942 = vmatpush.msra.mxu0 %v638
  %1943 = vmatpush.msra.mxu0 %v635
  %1944 = vmatpush.msra.mxu0 %v632
  %1945 = vmatpush.msra.mxu0 %v629
  %1946 = vmatpush.msra.mxu0 %v626
  %1947 = vmatpush.msra.mxu0 %v623
  %1948 = vmatpush.msra.mxu0 %v620
  %1949 = vmatmul.f32.gmra.mxu0 %v1791
  %v1950 = vpop.f32.mrf.mxu0
  %v1951 = vadd.f32 %v1797, %v1950
  %1952 = vdwg.mxu0
  %1953 = vmatpush.msra.mxu0 %v713
  %1954 = vmatpush.msra.mxu0 %v710
  %1955 = vmatpush.msra.mxu0 %v707
  %1956 = vmatpush.msra.mxu0 %v704
  %1957 = vmatpush.msra.mxu0 %v701
  %1958 = vmatpush.msra.mxu0 %v698
  %1959 = vmatpush.msra.mxu0 %v695
  %1960 = vmatpush.msra.mxu0 %v692
  %1961 = vmatpush.msra.mxu0 %v689
  %1962 = vmatpush.msra.mxu0 %v686
  %1963 = vmatpush.msra.mxu0 %v683
  %1964 = vmatpush.msra.mxu0 %v680
  %1965 = vmatpush.msra.mxu0 %v677
  %1966 = vmatpush.msra.mxu0 %v674
  %1967 = vmatpush.msra.mxu0 %v671
  %1968 = vmatpush.msra.mxu0 %v668
  %1969 = vmatmul.f32.gmra.mxu0 %v1792
  %v1970 = vpop.f32.mrf.mxu0
  %v1971 = vadd.f32 %v1951, %v1970
  %1972 = vdwg.mxu0
  %1973 = vmatpush.msra.mxu0 0.0
  %1974 = vmatpush.msra.mxu0 0.0
  %1975 = vmatpush.msra.mxu0 0.0
  %1976 = vmatpush.msra.mxu0 0.0
  %1977 = vmatpush.msra.mxu0 0.0
  %1978 = vmatpush.msra.mxu0 0.0
  %1979 = vmatpush.msra.mxu0 0.0
  %1980 = vmatpush.msra.mxu0 0.0
  %1981 = vmatpush.msra.mxu0 0.0
  %1982 = vmatpush.msra.mxu0 0.0
  %1983 = vmatpush.msra.mxu0 %v1811
  %1984 = vmatpush.msra.mxu0 %v728
  %1985 = vmatpush.msra.mxu0 %v725
  %1986 = vmatpush.msra.mxu0 %v722
  %1987 = vmatpush.msra.mxu0 %v719
  %1988 = vmatpush.msra.mxu0 %v716
  %1989 = vmatmul.f32.gmra.mxu0 %v1802
  %v1990 = vpop.f32.mrf.mxu0
  %v1991 = vadd.f32 %v1971, %v1990
  %1992 = vdwg.mxu0
  %v1993 = vmul.f32 %v1871, %v26
  %v1994 = vmul.f32 %v1931, %v27
  %v1995 = vmul.f32 %v1991, %v28
  %v1996 = vsel %vm1652, %v1993, 0.0
  %v1997 = vrot.slane %v1996, 4
  %v1998 = vadd.f32 %v1996, %v1997
  %v1999 = vrot.slane %v1998, 2
  %v2000 = vadd.f32 %v1998, %v1999
  %v2001 = vrot.slane %v2000, 1
  %v2002 = vadd.f32 %v2000, %v2001
  %v2003 = vsel %vm1652, %v1994, 0.0
  %v2004 = vrot.slane %v2003, 4
  %v2005 = vadd.f32 %v2003, %v2004
  %v2006 = vrot.slane %v2005, 2
  %v2007 = vadd.f32 %v2005, %v2006
  %v2008 = vrot.slane %v2007, 1
  %v2009 = vadd.f32 %v2007, %v2008
  %vm2010 = vcmask 357376
  %v2011 = vsel %vm2010, %v1995, 0.0
  %v2012 = vrot.slane %v2011, 4
  %v2013 = vadd.f32 %v2011, %v2012
  %v2014 = vrot.slane %v2013, 2
  %v2015 = vadd.f32 %v2013, %v2014
  %v2016 = vrot.slane %v2015, 1
  %v2017 = vadd.f32 %v2015, %v2016
  %v2021 = vrot.slane %v2009, 7
  %v2022 = vrot.slane %v2017, 6
  %vm2023 = vcmask 1040384
  %v2024 = vsel %vm2023, %v2002, %v2021
  %vm2025 = vcmask 1041408
  %v2026 = vsel %vm2025, %v2024, %v2022
  %v2028 = vlaneseq
  %vm2029 = vcmp.ge.s32.totalorder %v2028, 0
  %vm2030 = vcmp.lt.s32.totalorder %v2028, 300
  %vm2031 = vmand %vm2029, %vm2030
  %2032 = vst.msk [vmem:[%s7] sm:$0x7] %vm2031, %v2026
  // Predicated region
  $region30: #{pwnet_forward.2} parent=0 // pred_check
    _
  $region31: #{pwnet_forward.2} parent=0 // pred_check_branch
    %2034 = sbr.rel (0) target = $region33
  $region32: #{pwnet_forward.2} parent=0 // pred_region
    _
  $region33: #{pwnet_forward.2} parent=0 // pred_fallthru
    _
  // Predicated region
  $region34: #{pwnet_forward.2} parent=0 // pred_check
    _
  $region35: #{pwnet_forward.2} parent=0 // pred_check_branch
    %2036 = sbr.rel (0) target = $region37
  $region36: #{pwnet_forward.2} parent=0 // pred_region
    _
  $region37: #{pwnet_forward.2} parent=0 // pred_fallthru
    _

// kernel: pwnet_forward.3
$region0: #{pwnet_forward.3}
  #allocation0 [shape = 'u32[]', space=smem, size = 0x4, offset = 0x4, fixed_abs, tag = 'smem constant byte address 0x4 - core index']
  #allocation1 [shape = 'u32[72,128]{1,0:T(1,128)}', space=vmem, size = 0x9000, scoped, tag = 'internal scratch']
  %s0 = inlined_call_operand.vmem [shape: f32[2,1536], index: 0, kind: input, shape index: {}]
  %s1 = inlined_call_operand.vmem [shape: f32[1536,300], index: 1, kind: input, shape index: {}]
  %s2 = inlined_call_operand.vmem [shape: f32[1,300], index: 2, kind: input, shape index: {}]
  %s3 = inlined_call_operand.vmem [shape: f32[300,300], index: 3, kind: input, shape index: {}]
  %s4 = inlined_call_operand.vmem [shape: f32[1,300], index: 4, kind: input, shape index: {}]
  %s5 = inlined_call_operand.vmem [shape: f32[300,6], index: 5, kind: input, shape index: {}]
  %s6 = inlined_call_operand.vmem [shape: f32[6,300], index: 6, kind: input, shape index: {}]
  %s7 = inlined_call_operand.vmem [shape: f32[1,300], index: 7, kind: input, shape index: {}]
  %s8 = inlined_call_operand.vmem [shape: f32[6,6], index: 8, kind: input, shape index: {}]
  %s9 = inlined_call_operand.hbm [shape: f32[2,6], index: 9, kind: output, shape index: {}]
  %s10 = sld [smem:[#allocation0]]
  $region46: #{pwnet_forward.3} parent=0
    _
  %s12 = ssub.s32 1, %s10
  %s13 = scalar_select 0, %s12, %s10
  $region1: #{pwnet_forward.3} parent=0
    #allocation2 [shape = 'u8[1024]{0}', space=vmem, size = 0x400, scoped, tag = 'output window, operand 0, single buffered']
    #allocation3 [shape = 's32[1]{0}', space=sflag, size = 0x4, scoped, tag = 'scoped memory for pwnet_forward.3']
    %14 = vsyncpa [#allocation3], 0
    // Predicated region
    $region2: #{pwnet_forward.3} parent=1 // pred_check
      _
    $region3: #{pwnet_forward.3} parent=1 // pred_check_branch
      %16 = sbr.rel (0) target = $region5
    $region4: #{pwnet_forward.3} parent=1 // pred_region
      _
    $region5: #{pwnet_forward.3} parent=1 // pred_fallthru
      _
    // Predicated region
    $region6: #{pwnet_forward.3} parent=1 // pred_check
      _
    $region7: #{pwnet_forward.3} parent=1 // pred_check_branch
      %18 = sbr.rel (0) target = $region9
    $region8: #{pwnet_forward.3} parent=1 // pred_region
      _
    $region9: #{pwnet_forward.3} parent=1 // pred_fallthru
      _
    // Predicated region
    $region10: #{pwnet_forward.3} parent=1 // pred_check
      _
    $region11: #{pwnet_forward.3} parent=1 // pred_check_branch
      %20 = sbr.rel (0) target = $region13
    $region12: #{pwnet_forward.3} parent=1 // pred_region
      _
    $region13: #{pwnet_forward.3} parent=1 // pred_fallthru
      _
    // Predicated region
    $region14: #{pwnet_forward.3} parent=1 // pred_check
      _
    $region15: #{pwnet_forward.3} parent=1 // pred_check_branch
      %22 = sbr.rel (0) target = $region17
    $region16: #{pwnet_forward.3} parent=1 // pred_region
      _
    $region17: #{pwnet_forward.3} parent=1 // pred_fallthru
      _
    // Predicated region
    $region18: #{pwnet_forward.3} parent=1 // pred_check
      _
    $region19: #{pwnet_forward.3} parent=1 // pred_check_branch
      %24 = sbr.rel (0) target = $region21
    $region20: #{pwnet_forward.3} parent=1 // pred_region
      _
    $region21: #{pwnet_forward.3} parent=1 // pred_fallthru
      _
    // Predicated region
    $region22: #{pwnet_forward.3} parent=1 // pred_check
      _
    $region23: #{pwnet_forward.3} parent=1 // pred_check_branch
      %26 = sbr.rel (0) target = $region25
    $region24: #{pwnet_forward.3} parent=1 // pred_region
      _
    $region25: #{pwnet_forward.3} parent=1 // pred_fallthru
      _
    // Predicated region
    $region26: #{pwnet_forward.3} parent=1 // pred_check
      _
    $region27: #{pwnet_forward.3} parent=1 // pred_check_branch
      %28 = sbr.rel (0) target = $region29
    $region28: #{pwnet_forward.3} parent=1 // pred_region
      _
    $region29: #{pwnet_forward.3} parent=1 // pred_fallthru
      _
    // Predicated region
    $region30: #{pwnet_forward.3} parent=1 // pred_check
      _
    $region31: #{pwnet_forward.3} parent=1 // pred_check_branch
      %30 = sbr.rel (0) target = $region33
    $region32: #{pwnet_forward.3} parent=1 // pred_region
      _
    $region33: #{pwnet_forward.3} parent=1 // pred_fallthru
      _
    // Predicated region
    $region34: #{pwnet_forward.3} parent=1 // pred_check
      _
    $region35: #{pwnet_forward.3} parent=1 // pred_check_branch
      %32 = sbr.rel (0) target = $region37
    $region36: #{pwnet_forward.3} parent=1 // pred_region
      _
    $region37: #{pwnet_forward.3} parent=1 // pred_fallthru
      _
    %v33 = vld [vmem:[%s5] sm:$0xff]
    %v34 = vld [vmem:[%s5 + $0x8] sm:$0xff]
    %v35 = vld [vmem:[%s5 + $0x10] sm:$0xff]
    %v36 = vld [vmem:[%s5 + $0x18] sm:$0xff]
    %v37 = vld [vmem:[%s5 + $0x20] sm:$0xff]
    %v38 = vld [vmem:[%s5 + $0x28] sm:$0xff]
    %v39 = vld [vmem:[%s5 + $0x30] sm:$0xff]
    %v40 = vld [vmem:[%s5 + $0x38] sm:$0xff]
    %v41 = vld [vmem:[%s5 + $0x40] sm:$0xff]
    %v42 = vld [vmem:[%s5 + $0x48] sm:$0xff]
    %v43 = vld [vmem:[%s5 + $0x50] sm:$0xff]
    %v44 = vld [vmem:[%s5 + $0x58] sm:$0xff]
    %v45 = vld [vmem:[%s5 + $0x60] sm:$0xff]
    %v46 = vld [vmem:[%s5 + $0x68] sm:$0xff]
    %v47 = vld [vmem:[%s5 + $0x70] sm:$0xff]
    %v48 = vld [vmem:[%s5 + $0x78] sm:$0xff]
    %v49 = vld [vmem:[%s5 + $0x80] sm:$0xff]
    %v50 = vld [vmem:[%s5 + $0x88] sm:$0xff]
    %v51 = vld [vmem:[%s5 + $0x90] sm:$0xff]
    %v52 = vld [vmem:[%s5 + $0x98] sm:$0xff]
    %v53 = vld [vmem:[%s5 + $0xa0] sm:$0xff]
    %v54 = vld [vmem:[%s5 + $0xa8] sm:$0xff]
    %v55 = vld [vmem:[%s5 + $0xb0] sm:$0xff]
    %v56 = vld [vmem:[%s5 + $0xb8] sm:$0xff]
    %v57 = vld [vmem:[%s5 + $0xc0] sm:$0xff]
    %v58 = vld [vmem:[%s5 + $0xc8] sm:$0xff]
    %v59 = vld [vmem:[%s5 + $0xd0] sm:$0xff]
    %v60 = vld [vmem:[%s5 + $0xd8] sm:$0xff]
    %v61 = vld [vmem:[%s5 + $0xe0] sm:$0xff]
    %v62 = vld [vmem:[%s5 + $0xe8] sm:$0xff]
    %v63 = vld [vmem:[%s5 + $0xf0] sm:$0xff]
    %v64 = vld [vmem:[%s5 + $0xf8] sm:$0xff]
    %v65 = vld [vmem:[%s5 + $0x100] sm:$0xff]
    %v66 = vld [vmem:[%s5 + $0x108] sm:$0xff]
    %v67 = vld [vmem:[%s5 + $0x110] sm:$0xff]
    %v68 = vld [vmem:[%s5 + $0x118] sm:$0xff]
    %v69 = vld [vmem:[%s5 + $0x120] sm:$0xff]
    %v70 = vld [vmem:[%s5 + $0x128] sm:$0xf]
    %v71 = vld [vmem:[%s0] sm:$0xff]
    %v72 = vld [vmem:[%s0 + $0x8] sm:$0xff]
    %v73 = vld [vmem:[%s0 + $0x10] sm:$0xff]
    %v74 = vld [vmem:[%s1] sm:$0xff]
    %v75 = vld [vmem:[%s1 + $0x8] sm:$0xff]
    %v76 = vld [vmem:[%s1 + $0x10] sm:$0xff]
    %v77 = vld [vmem:[%s1 + $0x18] sm:$0xff]
    %v78 = vld [vmem:[%s1 + $0x20] sm:$0xff]
    %v79 = vld [vmem:[%s1 + $0x28] sm:$0xff]
    %v80 = vld [vmem:[%s1 + $0x30] sm:$0xff]
    %v81 = vld [vmem:[%s1 + $0x38] sm:$0xff]
    %v82 = vld [vmem:[%s1 + $0x40] sm:$0xff]
    %v83 = vld [vmem:[%s1 + $0x48] sm:$0xff]
    %v84 = vld [vmem:[%s1 + $0x50] sm:$0xff]
    %v85 = vld [vmem:[%s1 + $0x58] sm:$0xff]
    %v86 = vld [vmem:[%s1 + $0x60] sm:$0xff]
    %v87 = vld [vmem:[%s1 + $0x68] sm:$0xff]
    %v88 = vld [vmem:[%s1 + $0x70] sm:$0xff]
    %v89 = vld [vmem:[%s1 + $0x78] sm:$0xff]
    %v90 = vld [vmem:[%s1 + $0x80] sm:$0xff]
    %v91 = vld [vmem:[%s1 + $0x88] sm:$0xff]
    %v92 = vld [vmem:[%s1 + $0x90] sm:$0xff]
    %v93 = vld [vmem:[%s1 + $0x98] sm:$0xff]
    %v94 = vld [vmem:[%s1 + $0xa0] sm:$0xff]
    %v95 = vld [vmem:[%s1 + $0xa8] sm:$0xff]
    %v96 = vld [vmem:[%s1 + $0xb0] sm:$0xff]
    %v97 = vld [vmem:[%s1 + $0xb8] sm:$0xff]
    %v98 = vld [vmem:[%s1 + $0xc0] sm:$0xff]
    %v99 = vld [vmem:[%s1 + $0xc8] sm:$0xff]
    %v100 = vld [vmem:[%s1 + $0xd0] sm:$0xff]
    %v101 = vld [vmem:[%s1 + $0xd8] sm:$0xff]
    %v102 = vld [vmem:[%s1 + $0xe0] sm:$0xff]
    %v103 = vld [vmem:[%s1 + $0xe8] sm:$0xff]
    %v104 = vld [vmem:[%s1 + $0xf0] sm:$0xff]
    %v105 = vld [vmem:[%s1 + $0xf8] sm:$0xff]
    %v106 = vld [vmem:[%s1 + $0x100] sm:$0xff]
    %v107 = vld [vmem:[%s1 + $0x108] sm:$0xff]
    %v108 = vld [vmem:[%s1 + $0x110] sm:$0xff]
    %v109 = vld [vmem:[%s1 + $0x118] sm:$0xff]
    %v110 = vld [vmem:[%s1 + $0x120] sm:$0xff]
    %v111 = vld [vmem:[%s1 + $0x128] sm:$0xff]
    %v112 = vld [vmem:[%s1 + $0x130] sm:$0xff]
    %v113 = vld [vmem:[%s1 + $0x138] sm:$0xff]
    %v114 = vld [vmem:[%s1 + $0x140] sm:$0xff]
    %v115 = vld [vmem:[%s1 + $0x148] sm:$0xff]
    %v116 = vld [vmem:[%s1 + $0x150] sm:$0xff]
    %v117 = vld [vmem:[%s1 + $0x158] sm:$0xff]
    %v118 = vld [vmem:[%s1 + $0x160] sm:$0xff]
    %v119 = vld [vmem:[%s1 + $0x168] sm:$0xff]
    %v120 = vld [vmem:[%s1 + $0x170] sm:$0xff]
    %v121 = vld [vmem:[%s1 + $0x178] sm:$0xff]
    %v122 = vld [vmem:[%s1 + $0x180] sm:$0xff]
    %v123 = vld [vmem:[%s1 + $0x188] sm:$0xff]
    %v124 = vld [vmem:[%s1 + $0x190] sm:$0xff]
    %v125 = vld [vmem:[%s1 + $0x198] sm:$0xff]
    %v126 = vld [vmem:[%s1 + $0x1a0] sm:$0xff]
    %v127 = vld [vmem:[%s1 + $0x1a8] sm:$0xff]
    %v128 = vld [vmem:[%s1 + $0x1b0] sm:$0xff]
    %v129 = vld [vmem:[%s1 + $0x1b8] sm:$0xff]
    %v130 = vld [vmem:[%s1 + $0x1c0] sm:$0xff]
    %v131 = vld [vmem:[%s1 + $0x1c8] sm:$0xff]
    %v132 = vld [vmem:[%s1 + $0x1d0] sm:$0xff]
    %v133 = vld [vmem:[%s1 + $0x1d8] sm:$0xff]
    %v134 = vld [vmem:[%s1 + $0x1e0] sm:$0xff]
    %v135 = vld [vmem:[%s1 + $0x1e8] sm:$0xff]
    %v136 = vld [vmem:[%s1 + $0x1f0] sm:$0xff]
    %v137 = vld [vmem:[%s1 + $0x1f8] sm:$0xff]
    %v138 = vld [vmem:[%s1 + $0x200] sm:$0xff]
    %v139 = vld [vmem:[%s1 + $0x208] sm:$0xff]
    %v140 = vld [vmem:[%s1 + $0x210] sm:$0xff]
    %v141 = vld [vmem:[%s1 + $0x218] sm:$0xff]
    %v142 = vld [vmem:[%s1 + $0x220] sm:$0xff]
    %v143 = vld [vmem:[%s1 + $0x228] sm:$0xff]
    %v144 = vld [vmem:[%s1 + $0x230] sm:$0xff]
    %v145 = vld [vmem:[%s1 + $0x238] sm:$0xff]
    %v146 = vld [vmem:[%s1 + $0x240] sm:$0xff]
    %v147 = vld [vmem:[%s1 + $0x248] sm:$0xff]
    %v148 = vld [vmem:[%s1 + $0x250] sm:$0xff]
    %v149 = vld [vmem:[%s1 + $0x258] sm:$0xff]
    %v150 = vld [vmem:[%s1 + $0x260] sm:$0xff]
    %v151 = vld [vmem:[%s1 + $0x268] sm:$0xff]
    %v152 = vld [vmem:[%s1 + $0x270] sm:$0xff]
    %v153 = vld [vmem:[%s1 + $0x278] sm:$0xff]
    %v154 = vld [vmem:[%s1 + $0x280] sm:$0xff]
    %v155 = vld [vmem:[%s1 + $0x288] sm:$0xff]
    %v156 = vld [vmem:[%s1 + $0x290] sm:$0xff]
    %v157 = vld [vmem:[%s1 + $0x298] sm:$0xff]
    %v158 = vld [vmem:[%s1 + $0x2a0] sm:$0xff]
    %v159 = vld [vmem:[%s1 + $0x2a8] sm:$0xff]
    %v160 = vld [vmem:[%s1 + $0x2b0] sm:$0xff]
    %v161 = vld [vmem:[%s1 + $0x2b8] sm:$0xff]
    %v162 = vld [vmem:[%s1 + $0x2c0] sm:$0xff]
    %v163 = vld [vmem:[%s1 + $0x2c8] sm:$0xff]
    %v164 = vld [vmem:[%s1 + $0x2d0] sm:$0xff]
    %v165 = vld [vmem:[%s1 + $0x2d8] sm:$0xff]
    %v166 = vld [vmem:[%s1 + $0x2e0] sm:$0xff]
    %v167 = vld [vmem:[%s1 + $0x2e8] sm:$0xff]
    %v168 = vld [vmem:[%s1 + $0x2f0] sm:$0xff]
    %v169 = vld [vmem:[%s1 + $0x2f8] sm:$0xff]
    %v170 = vld [vmem:[%s1 + $0x300] sm:$0xff]
    %v171 = vld [vmem:[%s1 + $0x308] sm:$0xff]
    %v172 = vld [vmem:[%s1 + $0x310] sm:$0xff]
    %v173 = vld [vmem:[%s1 + $0x318] sm:$0xff]
    %v174 = vld [vmem:[%s1 + $0x320] sm:$0xff]
    %v175 = vld [vmem:[%s1 + $0x328] sm:$0xff]
    %v176 = vld [vmem:[%s1 + $0x330] sm:$0xff]
    %v177 = vld [vmem:[%s1 + $0x338] sm:$0xff]
    %v178 = vld [vmem:[%s1 + $0x340] sm:$0xff]
    %v179 = vld [vmem:[%s1 + $0x348] sm:$0xff]
    %v180 = vld [vmem:[%s1 + $0x350] sm:$0xff]
    %v181 = vld [vmem:[%s1 + $0x358] sm:$0xff]
    %v182 = vld [vmem:[%s1 + $0x360] sm:$0xff]
    %v183 = vld [vmem:[%s1 + $0x368] sm:$0xff]
    %v184 = vld [vmem:[%s1 + $0x370] sm:$0xff]
    %v185 = vld [vmem:[%s1 + $0x378] sm:$0xff]
    %v186 = vld [vmem:[%s1 + $0x380] sm:$0xff]
    %v187 = vld [vmem:[%s1 + $0x388] sm:$0xff]
    %v188 = vld [vmem:[%s1 + $0x390] sm:$0xff]
    %v189 = vld [vmem:[%s1 + $0x398] sm:$0xff]
    %v190 = vld [vmem:[%s1 + $0x3a0] sm:$0xff]
    %v191 = vld [vmem:[%s1 + $0x3a8] sm:$0xff]
    %v192 = vld [vmem:[%s1 + $0x3b0] sm:$0xff]
    %v193 = vld [vmem:[%s1 + $0x3b8] sm:$0xff]
    %v194 = vld [vmem:[%s1 + $0x3c0] sm:$0xff]
    %v195 = vld [vmem:[%s1 + $0x3c8] sm:$0xff]
    %v196 = vld [vmem:[%s1 + $0x3d0] sm:$0xff]
    %v197 = vld [vmem:[%s1 + $0x3d8] sm:$0xff]
    %v198 = vld [vmem:[%s1 + $0x3e0] sm:$0xff]
    %v199 = vld [vmem:[%s1 + $0x3e8] sm:$0xff]
    %v200 = vld [vmem:[%s1 + $0x3f0] sm:$0xff]
    %v201 = vld [vmem:[%s1 + $0x3f8] sm:$0xff]
    %v202 = vld [vmem:[%s1 + $0x400] sm:$0xff]
    %v203 = vld [vmem:[%s1 + $0x408] sm:$0xff]
    %v204 = vld [vmem:[%s1 + $0x410] sm:$0xff]
    %v205 = vld [vmem:[%s1 + $0x418] sm:$0xff]
    %v206 = vld [vmem:[%s1 + $0x420] sm:$0xff]
    %v207 = vld [vmem:[%s1 + $0x428] sm:$0xff]
    %v208 = vld [vmem:[%s1 + $0x430] sm:$0xff]
    %v209 = vld [vmem:[%s1 + $0x438] sm:$0xff]
    %v210 = vld [vmem:[%s1 + $0x440] sm:$0xff]
    %v211 = vld [vmem:[%s1 + $0x448] sm:$0xff]
    %v212 = vld [vmem:[%s1 + $0x450] sm:$0xff]
    %v213 = vld [vmem:[%s1 + $0x458] sm:$0xff]
    %v214 = vld [vmem:[%s1 + $0x460] sm:$0xff]
    %v215 = vld [vmem:[%s1 + $0x468] sm:$0xff]
    %v216 = vld [vmem:[%s1 + $0x470] sm:$0xff]
    %v217 = vld [vmem:[%s1 + $0x478] sm:$0xff]
    %v218 = vld [vmem:[%s1 + $0x480] sm:$0xff]
    %v219 = vld [vmem:[%s1 + $0x488] sm:$0xff]
    %v220 = vld [vmem:[%s1 + $0x490] sm:$0xff]
    %v221 = vld [vmem:[%s1 + $0x498] sm:$0xff]
    %v222 = vld [vmem:[%s1 + $0x4a0] sm:$0xff]
    %v223 = vld [vmem:[%s1 + $0x4a8] sm:$0xff]
    %v224 = vld [vmem:[%s1 + $0x4b0] sm:$0xff]
    %v225 = vld [vmem:[%s1 + $0x4b8] sm:$0xff]
    %v226 = vld [vmem:[%s1 + $0x4c0] sm:$0xff]
    %v227 = vld [vmem:[%s1 + $0x4c8] sm:$0xff]
    %v228 = vld [vmem:[%s1 + $0x4d0] sm:$0xff]
    %v229 = vld [vmem:[%s1 + $0x4d8] sm:$0xff]
    %v230 = vld [vmem:[%s1 + $0x4e0] sm:$0xff]
    %v231 = vld [vmem:[%s1 + $0x4e8] sm:$0xff]
    %v232 = vld [vmem:[%s1 + $0x4f0] sm:$0xff]
    %v233 = vld [vmem:[%s1 + $0x4f8] sm:$0xff]
    %v234 = vld [vmem:[%s1 + $0x500] sm:$0xff]
    %v235 = vld [vmem:[%s1 + $0x508] sm:$0xff]
    %v236 = vld [vmem:[%s1 + $0x510] sm:$0xff]
    %v237 = vld [vmem:[%s1 + $0x518] sm:$0xff]
    %v238 = vld [vmem:[%s1 + $0x520] sm:$0xff]
    %v239 = vld [vmem:[%s1 + $0x528] sm:$0xff]
    %v240 = vld [vmem:[%s1 + $0x530] sm:$0xff]
    %v241 = vld [vmem:[%s1 + $0x538] sm:$0xff]
    %v242 = vld [vmem:[%s1 + $0x540] sm:$0xff]
    %v243 = vld [vmem:[%s1 + $0x548] sm:$0xff]
    %v244 = vld [vmem:[%s1 + $0x550] sm:$0xff]
    %v245 = vld [vmem:[%s1 + $0x558] sm:$0xff]
    %v246 = vld [vmem:[%s1 + $0x560] sm:$0xff]
    %v247 = vld [vmem:[%s1 + $0x568] sm:$0xff]
    %v248 = vld [vmem:[%s1 + $0x570] sm:$0xff]
    %v249 = vld [vmem:[%s1 + $0x578] sm:$0xff]
    %v250 = vld [vmem:[%s1 + $0x580] sm:$0xff]
    %v251 = vld [vmem:[%s1 + $0x588] sm:$0xff]
    %v252 = vld [vmem:[%s1 + $0x590] sm:$0xff]
    %v253 = vld [vmem:[%s1 + $0x598] sm:$0xff]
    %v254 = vld [vmem:[%s1 + $0x5a0] sm:$0xff]
    %v255 = vld [vmem:[%s1 + $0x5a8] sm:$0xff]
    %v256 = vld [vmem:[%s1 + $0x5b0] sm:$0xff]
    %v257 = vld [vmem:[%s1 + $0x5b8] sm:$0xff]
    %v258 = vld [vmem:[%s1 + $0x5c0] sm:$0xff]
    %v259 = vld [vmem:[%s1 + $0x5c8] sm:$0xff]
    %v260 = vld [vmem:[%s1 + $0x5d0] sm:$0xff]
    %v261 = vld [vmem:[%s1 + $0x5d8] sm:$0xff]
    %v262 = vld [vmem:[%s1 + $0x5e0] sm:$0xff]
    %v263 = vld [vmem:[%s1 + $0x5e8] sm:$0xff]
    %v264 = vld [vmem:[%s1 + $0x5f0] sm:$0xff]
    %v265 = vld [vmem:[%s1 + $0x5f8] sm:$0xff]
    %v266 = vld [vmem:[%s1 + $0x600] sm:$0xff]
    %v267 = vld [vmem:[%s1 + $0x608] sm:$0xff]
    %v268 = vld [vmem:[%s1 + $0x610] sm:$0xff]
    %v269 = vld [vmem:[%s1 + $0x618] sm:$0xff]
    %v270 = vld [vmem:[%s1 + $0x620] sm:$0xff]
    %v271 = vld [vmem:[%s1 + $0x628] sm:$0xff]
    %v272 = vld [vmem:[%s1 + $0x630] sm:$0xff]
    %v273 = vld [vmem:[%s1 + $0x638] sm:$0xff]
    %v274 = vld [vmem:[%s1 + $0x640] sm:$0xff]
    %v275 = vld [vmem:[%s1 + $0x648] sm:$0xff]
    %v276 = vld [vmem:[%s1 + $0x650] sm:$0xff]
    %v277 = vld [vmem:[%s1 + $0x658] sm:$0xff]
    %v278 = vld [vmem:[%s1 + $0x660] sm:$0xff]
    %v279 = vld [vmem:[%s1 + $0x668] sm:$0xff]
    %v280 = vld [vmem:[%s1 + $0x670] sm:$0xff]
    %v281 = vld [vmem:[%s1 + $0x678] sm:$0xff]
    %v282 = vld [vmem:[%s1 + $0x680] sm:$0xff]
    %v283 = vld [vmem:[%s1 + $0x688] sm:$0xff]
    %v284 = vld [vmem:[%s1 + $0x690] sm:$0xff]
    %v285 = vld [vmem:[%s1 + $0x698] sm:$0xff]
    %v286 = vld [vmem:[%s1 + $0x6a0] sm:$0xff]
    %v287 = vld [vmem:[%s1 + $0x6a8] sm:$0xff]
    %v288 = vld [vmem:[%s1 + $0x6b0] sm:$0xff]
    %v289 = vld [vmem:[%s1 + $0x6b8] sm:$0xff]
    %v290 = vld [vmem:[%s1 + $0x6c0] sm:$0xff]
    %v291 = vld [vmem:[%s1 + $0x6c8] sm:$0xff]
    %v292 = vld [vmem:[%s1 + $0x6d0] sm:$0xff]
    %v293 = vld [vmem:[%s1 + $0x6d8] sm:$0xff]
    %v294 = vld [vmem:[%s1 + $0x6e0] sm:$0xff]
    %v295 = vld [vmem:[%s1 + $0x6e8] sm:$0xff]
    %v296 = vld [vmem:[%s1 + $0x6f0] sm:$0xff]
    %v297 = vld [vmem:[%s1 + $0x6f8] sm:$0xff]
    %v298 = vld [vmem:[%s1 + $0x700] sm:$0xff]
    %v299 = vld [vmem:[%s1 + $0x708] sm:$0xff]
    %v300 = vld [vmem:[%s1 + $0x710] sm:$0xff]
    %v301 = vld [vmem:[%s1 + $0x718] sm:$0xff]
    %v302 = vld [vmem:[%s1 + $0x720] sm:$0xff]
    %v303 = vld [vmem:[%s1 + $0x728] sm:$0xff]
    %v304 = vld [vmem:[%s1 + $0x730] sm:$0xff]
    %v305 = vld [vmem:[%s1 + $0x738] sm:$0xff]
    %v306 = vld [vmem:[%s1 + $0x740] sm:$0xff]
    %v307 = vld [vmem:[%s1 + $0x748] sm:$0xff]
    %v308 = vld [vmem:[%s1 + $0x750] sm:$0xff]
    %v309 = vld [vmem:[%s1 + $0x758] sm:$0xff]
    %v310 = vld [vmem:[%s1 + $0x760] sm:$0xff]
    %v311 = vld [vmem:[%s1 + $0x768] sm:$0xff]
    %v312 = vld [vmem:[%s1 + $0x770] sm:$0xff]
    %v313 = vld [vmem:[%s1 + $0x778] sm:$0xff]
    %v314 = vld [vmem:[%s1 + $0x780] sm:$0xff]
    %v315 = vld [vmem:[%s1 + $0x788] sm:$0xff]
    %v316 = vld [vmem:[%s1 + $0x790] sm:$0xff]
    %v317 = vld [vmem:[%s1 + $0x798] sm:$0xff]
    %v318 = vld [vmem:[%s1 + $0x7a0] sm:$0xff]
    %v319 = vld [vmem:[%s1 + $0x7a8] sm:$0xff]
    %v320 = vld [vmem:[%s1 + $0x7b0] sm:$0xff]
    %v321 = vld [vmem:[%s1 + $0x7b8] sm:$0xff]
    %v322 = vld [vmem:[%s1 + $0x7c0] sm:$0xff]
    %v323 = vld [vmem:[%s1 + $0x7c8] sm:$0xff]
    %v324 = vld [vmem:[%s1 + $0x7d0] sm:$0xff]
    %v325 = vld [vmem:[%s1 + $0x7d8] sm:$0xff]
    %v326 = vld [vmem:[%s1 + $0x7e0] sm:$0xff]
    %v327 = vld [vmem:[%s1 + $0x7e8] sm:$0xff]
    %v328 = vld [vmem:[%s1 + $0x7f0] sm:$0xff]
    %v329 = vld [vmem:[%s1 + $0x7f8] sm:$0xff]
    %v330 = vld [vmem:[%s1 + $0x800] sm:$0xff]
    %v331 = vld [vmem:[%s1 + $0x808] sm:$0xff]
    %v332 = vld [vmem:[%s1 + $0x810] sm:$0xff]
    %v333 = vld [vmem:[%s1 + $0x818] sm:$0xff]
    %v334 = vld [vmem:[%s1 + $0x820] sm:$0xff]
    %v335 = vld [vmem:[%s1 + $0x828] sm:$0xff]
    %v336 = vld [vmem:[%s1 + $0x830] sm:$0xff]
    %v337 = vld [vmem:[%s1 + $0x838] sm:$0xff]
    %v338 = vld [vmem:[%s1 + $0x840] sm:$0xff]
    %v339 = vld [vmem:[%s1 + $0x848] sm:$0xff]
    %v340 = vld [vmem:[%s1 + $0x850] sm:$0xff]
    %v341 = vld [vmem:[%s1 + $0x858] sm:$0xff]
    %v342 = vld [vmem:[%s1 + $0x860] sm:$0xff]
    %v343 = vld [vmem:[%s1 + $0x868] sm:$0xff]
    %v344 = vld [vmem:[%s1 + $0x870] sm:$0xff]
    %v345 = vld [vmem:[%s1 + $0x878] sm:$0xff]
    %v346 = vld [vmem:[%s1 + $0x880] sm:$0xff]
    %v347 = vld [vmem:[%s1 + $0x888] sm:$0xff]
    %v348 = vld [vmem:[%s1 + $0x890] sm:$0xff]
    %v349 = vld [vmem:[%s1 + $0x898] sm:$0xff]
    %v350 = vld [vmem:[%s1 + $0x8a0] sm:$0xff]
    %v351 = vld [vmem:[%s1 + $0x8a8] sm:$0xff]
    %v352 = vld [vmem:[%s1 + $0x8b0] sm:$0xff]
    %v353 = vld [vmem:[%s1 + $0x8b8] sm:$0xff]
    %v354 = vld [vmem:[%s1 + $0x8c0] sm:$0xff]
    %v355 = vld [vmem:[%s1 + $0x8c8] sm:$0xff]
    %v356 = vld [vmem:[%s1 + $0x8d0] sm:$0xff]
    %v357 = vld [vmem:[%s1 + $0x8d8] sm:$0xff]
    %v358 = vld [vmem:[%s1 + $0x8e0] sm:$0xff]
    %v359 = vld [vmem:[%s1 + $0x8e8] sm:$0xff]
    %v360 = vld [vmem:[%s1 + $0x8f0] sm:$0xff]
    %v361 = vld [vmem:[%s1 + $0x8f8] sm:$0xff]
    %v362 = vld [vmem:[%s1 + $0x900] sm:$0xff]
    %v363 = vld [vmem:[%s1 + $0x908] sm:$0xff]
    %v364 = vld [vmem:[%s1 + $0x910] sm:$0xff]
    %v365 = vld [vmem:[%s1 + $0x918] sm:$0xff]
    %v366 = vld [vmem:[%s1 + $0x920] sm:$0xff]
    %v367 = vld [vmem:[%s1 + $0x928] sm:$0xff]
    %v368 = vld [vmem:[%s1 + $0x930] sm:$0xff]
    %v369 = vld [vmem:[%s1 + $0x938] sm:$0xff]
    %v370 = vld [vmem:[%s1 + $0x940] sm:$0xff]
    %v371 = vld [vmem:[%s1 + $0x948] sm:$0xff]
    %v372 = vld [vmem:[%s1 + $0x950] sm:$0xff]
    %v373 = vld [vmem:[%s1 + $0x958] sm:$0xff]
    %v374 = vld [vmem:[%s1 + $0x960] sm:$0xff]
    %v375 = vld [vmem:[%s1 + $0x968] sm:$0xff]
    %v376 = vld [vmem:[%s1 + $0x970] sm:$0xff]
    %v377 = vld [vmem:[%s1 + $0x978] sm:$0xff]
    %v378 = vld [vmem:[%s1 + $0x980] sm:$0xff]
    %v379 = vld [vmem:[%s1 + $0x988] sm:$0xff]
    %v380 = vld [vmem:[%s1 + $0x990] sm:$0xff]
    %v381 = vld [vmem:[%s1 + $0x998] sm:$0xff]
    %v382 = vld [vmem:[%s1 + $0x9a0] sm:$0xff]
    %v383 = vld [vmem:[%s1 + $0x9a8] sm:$0xff]
    %v384 = vld [vmem:[%s1 + $0x9b0] sm:$0xff]
    %v385 = vld [vmem:[%s1 + $0x9b8] sm:$0xff]
    %v386 = vld [vmem:[%s1 + $0x9c0] sm:$0xff]
    %v387 = vld [vmem:[%s1 + $0x9c8] sm:$0xff]
    %v388 = vld [vmem:[%s1 + $0x9d0] sm:$0xff]
    %v389 = vld [vmem:[%s1 + $0x9d8] sm:$0xff]
    %v390 = vld [vmem:[%s1 + $0x9e0] sm:$0xff]
    %v391 = vld [vmem:[%s1 + $0x9e8] sm:$0xff]
    %v392 = vld [vmem:[%s1 + $0x9f0] sm:$0xff]
    %v393 = vld [vmem:[%s1 + $0x9f8] sm:$0xff]
    %v394 = vld [vmem:[%s1 + $0xa00] sm:$0xff]
    %v395 = vld [vmem:[%s1 + $0xa08] sm:$0xff]
    %v396 = vld [vmem:[%s1 + $0xa10] sm:$0xff]
    %v397 = vld [vmem:[%s1 + $0xa18] sm:$0xff]
    %v398 = vld [vmem:[%s1 + $0xa20] sm:$0xff]
    %v399 = vld [vmem:[%s1 + $0xa28] sm:$0xff]
    %v400 = vld [vmem:[%s1 + $0xa30] sm:$0xff]
    %v401 = vld [vmem:[%s1 + $0xa38] sm:$0xff]
    %v402 = vld [vmem:[%s1 + $0xa40] sm:$0xff]
    %v403 = vld [vmem:[%s1 + $0xa48] sm:$0xff]
    %v404 = vld [vmem:[%s1 + $0xa50] sm:$0xff]
    %v405 = vld [vmem:[%s1 + $0xa58] sm:$0xff]
    %v406 = vld [vmem:[%s1 + $0xa60] sm:$0xff]
    %v407 = vld [vmem:[%s1 + $0xa68] sm:$0xff]
    %v408 = vld [vmem:[%s1 + $0xa70] sm:$0xff]
    %v409 = vld [vmem:[%s1 + $0xa78] sm:$0xff]
    %v410 = vld [vmem:[%s1 + $0xa80] sm:$0xff]
    %v411 = vld [vmem:[%s1 + $0xa88] sm:$0xff]
    %v412 = vld [vmem:[%s1 + $0xa90] sm:$0xff]
    %v413 = vld [vmem:[%s1 + $0xa98] sm:$0xff]
    %v414 = vld [vmem:[%s1 + $0xaa0] sm:$0xff]
    %v415 = vld [vmem:[%s1 + $0xaa8] sm:$0xff]
    %v416 = vld [vmem:[%s1 + $0xab0] sm:$0xff]
    %v417 = vld [vmem:[%s1 + $0xab8] sm:$0xff]
    %v418 = vld [vmem:[%s1 + $0xac0] sm:$0xff]
    %v419 = vld [vmem:[%s1 + $0xac8] sm:$0xff]
    %v420 = vld [vmem:[%s1 + $0xad0] sm:$0xff]
    %v421 = vld [vmem:[%s1 + $0xad8] sm:$0xff]
    %v422 = vld [vmem:[%s1 + $0xae0] sm:$0xff]
    %v423 = vld [vmem:[%s1 + $0xae8] sm:$0xff]
    %v424 = vld [vmem:[%s1 + $0xaf0] sm:$0xff]
    %v425 = vld [vmem:[%s1 + $0xaf8] sm:$0xff]
    %v426 = vld [vmem:[%s1 + $0xb00] sm:$0xff]
    %v427 = vld [vmem:[%s1 + $0xb08] sm:$0xff]
    %v428 = vld [vmem:[%s1 + $0xb10] sm:$0xff]
    %v429 = vld [vmem:[%s1 + $0xb18] sm:$0xff]
    %v430 = vld [vmem:[%s1 + $0xb20] sm:$0xff]
    %v431 = vld [vmem:[%s1 + $0xb28] sm:$0xff]
    %v432 = vld [vmem:[%s1 + $0xb30] sm:$0xff]
    %v433 = vld [vmem:[%s1 + $0xb38] sm:$0xff]
    %v434 = vld [vmem:[%s1 + $0xb40] sm:$0xff]
    %v435 = vld [vmem:[%s1 + $0xb48] sm:$0xff]
    %v436 = vld [vmem:[%s1 + $0xb50] sm:$0xff]
    %v437 = vld [vmem:[%s1 + $0xb58] sm:$0xff]
    %v438 = vld [vmem:[%s1 + $0xb60] sm:$0xff]
    %v439 = vld [vmem:[%s1 + $0xb68] sm:$0xff]
    %v440 = vld [vmem:[%s1 + $0xb70] sm:$0xff]
    %v441 = vld [vmem:[%s1 + $0xb78] sm:$0xff]
    %v442 = vld [vmem:[%s1 + $0xb80] sm:$0xff]
    %v443 = vld [vmem:[%s1 + $0xb88] sm:$0xff]
    %v444 = vld [vmem:[%s1 + $0xb90] sm:$0xff]
    %v445 = vld [vmem:[%s1 + $0xb98] sm:$0xff]
    %v446 = vld [vmem:[%s1 + $0xba0] sm:$0xff]
    %v447 = vld [vmem:[%s1 + $0xba8] sm:$0xff]
    %v448 = vld [vmem:[%s1 + $0xbb0] sm:$0xff]
    %v449 = vld [vmem:[%s1 + $0xbb8] sm:$0xff]
    %v450 = vld [vmem:[%s1 + $0xbc0] sm:$0xff]
    %v451 = vld [vmem:[%s1 + $0xbc8] sm:$0xff]
    %v452 = vld [vmem:[%s1 + $0xbd0] sm:$0xff]
    %v453 = vld [vmem:[%s1 + $0xbd8] sm:$0xff]
    %v454 = vld [vmem:[%s1 + $0xbe0] sm:$0xff]
    %v455 = vld [vmem:[%s1 + $0xbe8] sm:$0xff]
    %v456 = vld [vmem:[%s1 + $0xbf0] sm:$0xff]
    %v457 = vld [vmem:[%s1 + $0xbf8] sm:$0xff]
    %v458 = vld [vmem:[%s1 + $0xc00] sm:$0xff]
    %v459 = vld [vmem:[%s1 + $0xc08] sm:$0xff]
    %v460 = vld [vmem:[%s1 + $0xc10] sm:$0xff]
    %v461 = vld [vmem:[%s1 + $0xc18] sm:$0xff]
    %v462 = vld [vmem:[%s1 + $0xc20] sm:$0xff]
    %v463 = vld [vmem:[%s1 + $0xc28] sm:$0xff]
    %v464 = vld [vmem:[%s1 + $0xc30] sm:$0xff]
    %v465 = vld [vmem:[%s1 + $0xc38] sm:$0xff]
    %v466 = vld [vmem:[%s1 + $0xc40] sm:$0xff]
    %v467 = vld [vmem:[%s1 + $0xc48] sm:$0xff]
    %v468 = vld [vmem:[%s1 + $0xc50] sm:$0xff]
    %v469 = vld [vmem:[%s1 + $0xc58] sm:$0xff]
    %v470 = vld [vmem:[%s1 + $0xc60] sm:$0xff]
    %v471 = vld [vmem:[%s1 + $0xc68] sm:$0xff]
    %v472 = vld [vmem:[%s1 + $0xc70] sm:$0xff]
    %v473 = vld [vmem:[%s1 + $0xc78] sm:$0xff]
    %v474 = vld [vmem:[%s1 + $0xc80] sm:$0xff]
    %v475 = vld [vmem:[%s1 + $0xc88] sm:$0xff]
    %v476 = vld [vmem:[%s1 + $0xc90] sm:$0xff]
    %v477 = vld [vmem:[%s1 + $0xc98] sm:$0xff]
    %v478 = vld [vmem:[%s1 + $0xca0] sm:$0xff]
    %v479 = vld [vmem:[%s1 + $0xca8] sm:$0xff]
    %v480 = vld [vmem:[%s1 + $0xcb0] sm:$0xff]
    %v481 = vld [vmem:[%s1 + $0xcb8] sm:$0xff]
    %v482 = vld [vmem:[%s1 + $0xcc0] sm:$0xff]
    %v483 = vld [vmem:[%s1 + $0xcc8] sm:$0xff]
    %v484 = vld [vmem:[%s1 + $0xcd0] sm:$0xff]
    %v485 = vld [vmem:[%s1 + $0xcd8] sm:$0xff]
    %v486 = vld [vmem:[%s1 + $0xce0] sm:$0xff]
    %v487 = vld [vmem:[%s1 + $0xce8] sm:$0xff]
    %v488 = vld [vmem:[%s1 + $0xcf0] sm:$0xff]
    %v489 = vld [vmem:[%s1 + $0xcf8] sm:$0xff]
    %v490 = vld [vmem:[%s1 + $0xd00] sm:$0xff]
    %v491 = vld [vmem:[%s1 + $0xd08] sm:$0xff]
    %v492 = vld [vmem:[%s1 + $0xd10] sm:$0xff]
    %v493 = vld [vmem:[%s1 + $0xd18] sm:$0xff]
    %v494 = vld [vmem:[%s1 + $0xd20] sm:$0xff]
    %v495 = vld [vmem:[%s1 + $0xd28] sm:$0xff]
    %v496 = vld [vmem:[%s1 + $0xd30] sm:$0xff]
    %v497 = vld [vmem:[%s1 + $0xd38] sm:$0xff]
    %v498 = vld [vmem:[%s1 + $0xd40] sm:$0xff]
    %v499 = vld [vmem:[%s1 + $0xd48] sm:$0xff]
    %v500 = vld [vmem:[%s1 + $0xd50] sm:$0xff]
    %v501 = vld [vmem:[%s1 + $0xd58] sm:$0xff]
    %v502 = vld [vmem:[%s1 + $0xd60] sm:$0xff]
    %v503 = vld [vmem:[%s1 + $0xd68] sm:$0xff]
    %v504 = vld [vmem:[%s1 + $0xd70] sm:$0xff]
    %v505 = vld [vmem:[%s1 + $0xd78] sm:$0xff]
    %v506 = vld [vmem:[%s1 + $0xd80] sm:$0xff]
    %v507 = vld [vmem:[%s1 + $0xd88] sm:$0xff]
    %v508 = vld [vmem:[%s1 + $0xd90] sm:$0xff]
    %v509 = vld [vmem:[%s1 + $0xd98] sm:$0xff]
    %v510 = vld [vmem:[%s1 + $0xda0] sm:$0xff]
    %v511 = vld [vmem:[%s1 + $0xda8] sm:$0xff]
    %v512 = vld [vmem:[%s1 + $0xdb0] sm:$0xff]
    %v513 = vld [vmem:[%s1 + $0xdb8] sm:$0xff]
    %v514 = vld [vmem:[%s1 + $0xdc0] sm:$0xff]
    %v515 = vld [vmem:[%s1 + $0xdc8] sm:$0xff]
    %v516 = vld [vmem:[%s1 + $0xdd0] sm:$0xff]
    %v517 = vld [vmem:[%s1 + $0xdd8] sm:$0xff]
    %v518 = vld [vmem:[%s1 + $0xde0] sm:$0xff]
    %v519 = vld [vmem:[%s1 + $0xde8] sm:$0xff]
    %v520 = vld [vmem:[%s1 + $0xdf0] sm:$0xff]
    %v521 = vld [vmem:[%s1 + $0xdf8] sm:$0xff]
    %v522 = vld [vmem:[%s1 + $0xe00] sm:$0xff]
    %v523 = vld [vmem:[%s1 + $0xe08] sm:$0xff]
    %v524 = vld [vmem:[%s1 + $0xe10] sm:$0xff]
    %v525 = vld [vmem:[%s1 + $0xe18] sm:$0xff]
    %v526 = vld [vmem:[%s1 + $0xe20] sm:$0xff]
    %v527 = vld [vmem:[%s1 + $0xe28] sm:$0xff]
    %v528 = vld [vmem:[%s1 + $0xe30] sm:$0xff]
    %v529 = vld [vmem:[%s1 + $0xe38] sm:$0xff]
    %v530 = vld [vmem:[%s1 + $0xe40] sm:$0xff]
    %v531 = vld [vmem:[%s1 + $0xe48] sm:$0xff]
    %v532 = vld [vmem:[%s1 + $0xe50] sm:$0xff]
    %v533 = vld [vmem:[%s1 + $0xe58] sm:$0xff]
    %v534 = vld [vmem:[%s1 + $0xe60] sm:$0xff]
    %v535 = vld [vmem:[%s1 + $0xe68] sm:$0xff]
    %v536 = vld [vmem:[%s1 + $0xe70] sm:$0xff]
    %v537 = vld [vmem:[%s1 + $0xe78] sm:$0xff]
    %v538 = vld [vmem:[%s1 + $0xe80] sm:$0xff]
    %v539 = vld [vmem:[%s1 + $0xe88] sm:$0xff]
    %v540 = vld [vmem:[%s1 + $0xe90] sm:$0xff]
    %v541 = vld [vmem:[%s1 + $0xe98] sm:$0xff]
    %v542 = vld [vmem:[%s1 + $0xea0] sm:$0xff]
    %v543 = vld [vmem:[%s1 + $0xea8] sm:$0xff]
    %v544 = vld [vmem:[%s1 + $0xeb0] sm:$0xff]
    %v545 = vld [vmem:[%s1 + $0xeb8] sm:$0xff]
    %v546 = vld [vmem:[%s1 + $0xec0] sm:$0xff]
    %v547 = vld [vmem:[%s1 + $0xec8] sm:$0xff]
    %v548 = vld [vmem:[%s1 + $0xed0] sm:$0xff]
    %v549 = vld [vmem:[%s1 + $0xed8] sm:$0xff]
    %v550 = vld [vmem:[%s1 + $0xee0] sm:$0xff]
    %v551 = vld [vmem:[%s1 + $0xee8] sm:$0xff]
    %v552 = vld [vmem:[%s1 + $0xef0] sm:$0xff]
    %v553 = vld [vmem:[%s1 + $0xef8] sm:$0xff]
    %v554 = vld [vmem:[%s1 + $0xf00] sm:$0xff]
    %v555 = vld [vmem:[%s1 + $0xf08] sm:$0xff]
    %v556 = vld [vmem:[%s1 + $0xf10] sm:$0xff]
    %v557 = vld [vmem:[%s1 + $0xf18] sm:$0xff]
    %v558 = vld [vmem:[%s1 + $0xf20] sm:$0xff]
    %v559 = vld [vmem:[%s1 + $0xf28] sm:$0xff]
    %v560 = vld [vmem:[%s1 + $0xf30] sm:$0xff]
    %v561 = vld [vmem:[%s1 + $0xf38] sm:$0xff]
    %v562 = vld [vmem:[%s1 + $0xf40] sm:$0xff]
    %v563 = vld [vmem:[%s1 + $0xf48] sm:$0xff]
    %v564 = vld [vmem:[%s1 + $0xf50] sm:$0xff]
    %v565 = vld [vmem:[%s1 + $0xf58] sm:$0xff]
    %v566 = vld [vmem:[%s1 + $0xf60] sm:$0xff]
    %v567 = vld [vmem:[%s1 + $0xf68] sm:$0xff]
    %v568 = vld [vmem:[%s1 + $0xf70] sm:$0xff]
    %v569 = vld [vmem:[%s1 + $0xf78] sm:$0xff]
    %v570 = vld [vmem:[%s1 + $0xf80] sm:$0xff]
    %v571 = vld [vmem:[%s1 + $0xf88] sm:$0xff]
    %v572 = vld [vmem:[%s1 + $0xf90] sm:$0xff]
    %v573 = vld [vmem:[%s1 + $0xf98] sm:$0xff]
    %v574 = vld [vmem:[%s1 + $0xfa0] sm:$0xff]
    %v575 = vld [vmem:[%s1 + $0xfa8] sm:$0xff]
    %v576 = vld [vmem:[%s1 + $0xfb0] sm:$0xff]
    %v577 = vld [vmem:[%s1 + $0xfb8] sm:$0xff]
    %v578 = vld [vmem:[%s1 + $0xfc0] sm:$0xff]
    %v579 = vld [vmem:[%s1 + $0xfc8] sm:$0xff]
    %v580 = vld [vmem:[%s1 + $0xfd0] sm:$0xff]
    %v581 = vld [vmem:[%s1 + $0xfd8] sm:$0xff]
    %v582 = vld [vmem:[%s1 + $0xfe0] sm:$0xff]
    %v583 = vld [vmem:[%s1 + $0xfe8] sm:$0xff]
    %v584 = vld [vmem:[%s1 + $0xff0] sm:$0xff]
    %v585 = vld [vmem:[%s1 + $0xff8] sm:$0xff]
    %v586 = vld [vmem:[%s1 + $0x1000] sm:$0xff]
    %v587 = vld [vmem:[%s1 + $0x1008] sm:$0xff]
    %v588 = vld [vmem:[%s1 + $0x1010] sm:$0xff]
    %v589 = vld [vmem:[%s1 + $0x1018] sm:$0xff]
    %v590 = vld [vmem:[%s1 + $0x1020] sm:$0xff]
    %v591 = vld [vmem:[%s1 + $0x1028] sm:$0xff]
    %v592 = vld [vmem:[%s1 + $0x1030] sm:$0xff]
    %v593 = vld [vmem:[%s1 + $0x1038] sm:$0xff]
    %v594 = vld [vmem:[%s1 + $0x1040] sm:$0xff]
    %v595 = vld [vmem:[%s1 + $0x1048] sm:$0xff]
    %v596 = vld [vmem:[%s1 + $0x1050] sm:$0xff]
    %v597 = vld [vmem:[%s1 + $0x1058] sm:$0xff]
    %v598 = vld [vmem:[%s1 + $0x1060] sm:$0xff]
    %v599 = vld [vmem:[%s1 + $0x1068] sm:$0xff]
    %v600 = vld [vmem:[%s1 + $0x1070] sm:$0xff]
    %v601 = vld [vmem:[%s1 + $0x1078] sm:$0xff]
    %v602 = vld [vmem:[%s1 + $0x1080] sm:$0xff]
    %v603 = vld [vmem:[%s1 + $0x1088] sm:$0xff]
    %v604 = vld [vmem:[%s1 + $0x1090] sm:$0xff]
    %v605 = vld [vmem:[%s1 + $0x1098] sm:$0xff]
    %v606 = vld [vmem:[%s1 + $0x10a0] sm:$0xff]
    %v607 = vld [vmem:[%s1 + $0x10a8] sm:$0xff]
    %v608 = vld [vmem:[%s1 + $0x10b0] sm:$0xff]
    %v609 = vld [vmem:[%s1 + $0x10b8] sm:$0xff]
    %v610 = vld [vmem:[%s1 + $0x10c0] sm:$0xff]
    %v611 = vld [vmem:[%s1 + $0x10c8] sm:$0xff]
    %v612 = vld [vmem:[%s1 + $0x10d0] sm:$0xff]
    %v613 = vld [vmem:[%s1 + $0x10d8] sm:$0xff]
    %v614 = vld [vmem:[%s1 + $0x10e0] sm:$0xff]
    %v615 = vld [vmem:[%s1 + $0x10e8] sm:$0xff]
    %v616 = vld [vmem:[%s1 + $0x10f0] sm:$0xff]
    %v617 = vld [vmem:[%s1 + $0x10f8] sm:$0xff]
    %v618 = vld [vmem:[%s1 + $0x1100] sm:$0xff]
    %v619 = vld [vmem:[%s1 + $0x1108] sm:$0xff]
    %v620 = vld [vmem:[%s1 + $0x1110] sm:$0xff]
    %v621 = vld [vmem:[%s1 + $0x1118] sm:$0xff]
    %v622 = vld [vmem:[%s1 + $0x1120] sm:$0xff]
    %v623 = vld [vmem:[%s1 + $0x1128] sm:$0xff]
    %v624 = vld [vmem:[%s1 + $0x1130] sm:$0xff]
    %v625 = vld [vmem:[%s1 + $0x1138] sm:$0xff]
    %v626 = vld [vmem:[%s1 + $0x1140] sm:$0xff]
    %v627 = vld [vmem:[%s1 + $0x1148] sm:$0xff]
    %v628 = vld [vmem:[%s1 + $0x1150] sm:$0xff]
    %v629 = vld [vmem:[%s1 + $0x1158] sm:$0xff]
    %v630 = vld [vmem:[%s1 + $0x1160] sm:$0xff]
    %v631 = vld [vmem:[%s1 + $0x1168] sm:$0xff]
    %v632 = vld [vmem:[%s1 + $0x1170] sm:$0xff]
    %v633 = vld [vmem:[%s1 + $0x1178] sm:$0xff]
    %v634 = vld [vmem:[%s1 + $0x1180] sm:$0xff]
    %v635 = vld [vmem:[%s1 + $0x1188] sm:$0xff]
    %v636 = vld [vmem:[%s1 + $0x1190] sm:$0xff]
    %v637 = vld [vmem:[%s1 + $0x1198] sm:$0xff]
    %v638 = vld [vmem:[%s1 + $0x11a0] sm:$0xff]
    %v639 = vld [vmem:[%s1 + $0x11a8] sm:$0xff]
    %v640 = vld [vmem:[%s1 + $0x11b0] sm:$0xff]
    %v641 = vld [vmem:[%s1 + $0x11b8] sm:$0xff]
    %v642 = vld [vmem:[%s1 + $0x11c0] sm:$0xff]
    %v643 = vld [vmem:[%s1 + $0x11c8] sm:$0xff]
    %v644 = vld [vmem:[%s1 + $0x11d0] sm:$0xff]
    %v645 = vld [vmem:[%s1 + $0x11d8] sm:$0xff]
    %v646 = vld [vmem:[%s1 + $0x11e0] sm:$0xff]
    %v647 = vld [vmem:[%s1 + $0x11e8] sm:$0xff]
    %v648 = vld [vmem:[%s1 + $0x11f0] sm:$0xff]
    %v649 = vld [vmem:[%s1 + $0x11f8] sm:$0xff]
    %v650 = vld [vmem:[%s2] sm:$0x7]
    %v651 = vld [vmem:[%s3] sm:$0xff]
    %v652 = vld [vmem:[%s3 + $0x8] sm:$0xff]
    %v653 = vld [vmem:[%s3 + $0x10] sm:$0xff]
    %v654 = vld [vmem:[%s3 + $0x18] sm:$0xff]
    %v655 = vld [vmem:[%s3 + $0x20] sm:$0xff]
    %v656 = vld [vmem:[%s3 + $0x28] sm:$0xff]
    %v657 = vld [vmem:[%s3 + $0x30] sm:$0xff]
    %v658 = vld [vmem:[%s3 + $0x38] sm:$0xff]
    %v659 = vld [vmem:[%s3 + $0x40] sm:$0xff]
    %v660 = vld [vmem:[%s3 + $0x48] sm:$0xff]
    %v661 = vld [vmem:[%s3 + $0x50] sm:$0xff]
    %v662 = vld [vmem:[%s3 + $0x58] sm:$0xff]
    %v663 = vld [vmem:[%s3 + $0x60] sm:$0xff]
    %v664 = vld [vmem:[%s3 + $0x68] sm:$0xff]
    %v665 = vld [vmem:[%s3 + $0x70] sm:$0xff]
    %v666 = vld [vmem:[%s3 + $0x78] sm:$0xff]
    %v667 = vld [vmem:[%s3 + $0x80] sm:$0xff]
    %v668 = vld [vmem:[%s3 + $0x88] sm:$0xff]
    %v669 = vld [vmem:[%s3 + $0x90] sm:$0xff]
    %v670 = vld [vmem:[%s3 + $0x98] sm:$0xff]
    %v671 = vld [vmem:[%s3 + $0xa0] sm:$0xff]
    %v672 = vld [vmem:[%s3 + $0xa8] sm:$0xff]
    %v673 = vld [vmem:[%s3 + $0xb0] sm:$0xff]
    %v674 = vld [vmem:[%s3 + $0xb8] sm:$0xff]
    %v675 = vld [vmem:[%s3 + $0xc0] sm:$0xff]
    %v676 = vld [vmem:[%s3 + $0xc8] sm:$0xff]
    %v677 = vld [vmem:[%s3 + $0xd0] sm:$0xff]
    %v678 = vld [vmem:[%s3 + $0xd8] sm:$0xff]
    %v679 = vld [vmem:[%s3 + $0xe0] sm:$0xff]
    %v680 = vld [vmem:[%s3 + $0xe8] sm:$0xff]
    %v681 = vld [vmem:[%s3 + $0xf0] sm:$0xff]
    %v682 = vld [vmem:[%s3 + $0xf8] sm:$0xff]
    %v683 = vld [vmem:[%s3 + $0x100] sm:$0xff]
    %v684 = vld [vmem:[%s3 + $0x108] sm:$0xff]
    %v685 = vld [vmem:[%s3 + $0x110] sm:$0xff]
    %v686 = vld [vmem:[%s3 + $0x118] sm:$0xff]
    %v687 = vld [vmem:[%s3 + $0x120] sm:$0xff]
    %v688 = vld [vmem:[%s3 + $0x128] sm:$0xff]
    %v689 = vld [vmem:[%s3 + $0x130] sm:$0xff]
    %v690 = vld [vmem:[%s3 + $0x138] sm:$0xff]
    %v691 = vld [vmem:[%s3 + $0x140] sm:$0xff]
    %v692 = vld [vmem:[%s3 + $0x148] sm:$0xff]
    %v693 = vld [vmem:[%s3 + $0x150] sm:$0xff]
    %v694 = vld [vmem:[%s3 + $0x158] sm:$0xff]
    %v695 = vld [vmem:[%s3 + $0x160] sm:$0xff]
    %v696 = vld [vmem:[%s3 + $0x168] sm:$0xff]
    %v697 = vld [vmem:[%s3 + $0x170] sm:$0xff]
    %v698 = vld [vmem:[%s3 + $0x178] sm:$0xff]
    %v699 = vld [vmem:[%s3 + $0x180] sm:$0xff]
    %v700 = vld [vmem:[%s3 + $0x188] sm:$0xff]
    %v701 = vld [vmem:[%s3 + $0x190] sm:$0xff]
    %v702 = vld [vmem:[%s3 + $0x198] sm:$0xff]
    %v703 = vld [vmem:[%s3 + $0x1a0] sm:$0xff]
    %v704 = vld [vmem:[%s3 + $0x1a8] sm:$0xff]
    %v705 = vld [vmem:[%s3 + $0x1b0] sm:$0xff]
    %v706 = vld [vmem:[%s3 + $0x1b8] sm:$0xff]
    %v707 = vld [vmem:[%s3 + $0x1c0] sm:$0xff]
    %v708 = vld [vmem:[%s3 + $0x1c8] sm:$0xff]
    %v709 = vld [vmem:[%s3 + $0x1d0] sm:$0xff]
    %v710 = vld [vmem:[%s3 + $0x1d8] sm:$0xff]
    %v711 = vld [vmem:[%s3 + $0x1e0] sm:$0xff]
    %v712 = vld [vmem:[%s3 + $0x1e8] sm:$0xff]
    %v713 = vld [vmem:[%s3 + $0x1f0] sm:$0xff]
    %v714 = vld [vmem:[%s3 + $0x1f8] sm:$0xff]
    %v715 = vld [vmem:[%s3 + $0x200] sm:$0xff]
    %v716 = vld [vmem:[%s3 + $0x208] sm:$0xff]
    %v717 = vld [vmem:[%s3 + $0x210] sm:$0xff]
    %v718 = vld [vmem:[%s3 + $0x218] sm:$0xff]
    %v719 = vld [vmem:[%s3 + $0x220] sm:$0xff]
    %v720 = vld [vmem:[%s3 + $0x228] sm:$0xff]
    %v721 = vld [vmem:[%s3 + $0x230] sm:$0xff]
    %v722 = vld [vmem:[%s3 + $0x238] sm:$0xff]
    %v723 = vld [vmem:[%s3 + $0x240] sm:$0xff]
    %v724 = vld [vmem:[%s3 + $0x248] sm:$0xff]
    %v725 = vld [vmem:[%s3 + $0x250] sm:$0xff]
    %v726 = vld [vmem:[%s3 + $0x258] sm:$0xff]
    %v727 = vld [vmem:[%s3 + $0x260] sm:$0xff]
    %v728 = vld [vmem:[%s3 + $0x268] sm:$0xff]
    %v729 = vld [vmem:[%s3 + $0x270] sm:$0xff]
    %v730 = vld [vmem:[%s3 + $0x278] sm:$0xff]
    %v731 = vld [vmem:[%s3 + $0x280] sm:$0xff]
    %v732 = vld [vmem:[%s3 + $0x288] sm:$0xff]
    %v733 = vld [vmem:[%s3 + $0x290] sm:$0xff]
    %v734 = vld [vmem:[%s3 + $0x298] sm:$0xff]
    %v735 = vld [vmem:[%s3 + $0x2a0] sm:$0xff]
    %v736 = vld [vmem:[%s3 + $0x2a8] sm:$0xff]
    %v737 = vld [vmem:[%s3 + $0x2b0] sm:$0xff]
    %v738 = vld [vmem:[%s3 + $0x2b8] sm:$0xff]
    %v739 = vld [vmem:[%s3 + $0x2c0] sm:$0xff]
    %v740 = vld [vmem:[%s3 + $0x2c8] sm:$0xff]
    %v741 = vld [vmem:[%s3 + $0x2d0] sm:$0xff]
    %v742 = vld [vmem:[%s3 + $0x2d8] sm:$0xff]
    %v743 = vld [vmem:[%s3 + $0x2e0] sm:$0xff]
    %v744 = vld [vmem:[%s3 + $0x2e8] sm:$0xff]
    %v745 = vld [vmem:[%s3 + $0x2f0] sm:$0xff]
    %v746 = vld [vmem:[%s3 + $0x2f8] sm:$0xff]
    %v747 = vld [vmem:[%s3 + $0x300] sm:$0xff]
    %v748 = vld [vmem:[%s3 + $0x308] sm:$0xff]
    %v749 = vld [vmem:[%s3 + $0x310] sm:$0xff]
    %v750 = vld [vmem:[%s3 + $0x318] sm:$0xff]
    %v751 = vld [vmem:[%s3 + $0x320] sm:$0xff]
    %v752 = vld [vmem:[%s3 + $0x328] sm:$0xff]
    %v753 = vld [vmem:[%s3 + $0x330] sm:$0xff]
    %v754 = vld [vmem:[%s3 + $0x338] sm:$0xff]
    %v755 = vld [vmem:[%s3 + $0x340] sm:$0xff]
    %v756 = vld [vmem:[%s3 + $0x348] sm:$0xff]
    %v757 = vld [vmem:[%s3 + $0x350] sm:$0xff]
    %v758 = vld [vmem:[%s3 + $0x358] sm:$0xff]
    %v759 = vld [vmem:[%s3 + $0x360] sm:$0xff]
    %v760 = vld [vmem:[%s3 + $0x368] sm:$0xff]
    %v761 = vld [vmem:[%s3 + $0x370] sm:$0xff]
    %v762 = vld [vmem:[%s3 + $0x378] sm:$0xf]
    %v763 = vld [vmem:[%s3 + $0x380] sm:$0xf]
    %v764 = vld [vmem:[%s3 + $0x388] sm:$0xf]
    %v765 = vld [vmem:[%s4] sm:$0x7]
    %v766 = vld [vmem:[%s6] sm:$0x3f]
    %v767 = vld [vmem:[%s6 + $0x8] sm:$0x3f]
    %v768 = vld [vmem:[%s6 + $0x10] sm:$0x3f]
    %v770 = vperm.slane %v650, 0
    %v771 = vperm.slane %v650, 1
    %v772 = vperm.slane %v650, 2
    %779 = vst [vmem:[#allocation1] ss:$4 sm:$0xff] %v71
    %s780 = scalar_lea.vmem [#allocation1], 32
    %781 = vst [vmem:[%s780] ss:$4 sm:$0xff] %v72
    %v782 = vld.sshfl [vmem:[#allocation1] sm:$0xff pattern:$0x73625140]
    %v783 = vld.sshfl [vmem:[#allocation1 + $0x8] sm:$0xff pattern:$0x73625140]
    %v784 = vld.sshfl [vmem:[#allocation1 + $0x10] sm:$0xff pattern:$0x73625140]
    %v785 = vld.sshfl [vmem:[#allocation1 + $0x18] sm:$0xff pattern:$0x73625140]
    %v786 = vld.sshfl [vmem:[#allocation1 + $0x20] sm:$0xff pattern:$0x73625140]
    %v787 = vld.sshfl [vmem:[#allocation1 + $0x28] sm:$0xff pattern:$0x73625140]
    %v788 = vld.sshfl [vmem:[#allocation1 + $0x30] sm:$0xff pattern:$0x73625140]
    %v789 = vld.sshfl [vmem:[#allocation1 + $0x38] sm:$0xff pattern:$0x73625140]
    %790 = vst [vmem:[#allocation1] ss:$4 sm:$0xff] %v73
    %v791 = vld.sshfl [vmem:[#allocation1] sm:$0xff pattern:$0x73625140]
    %v792 = vld.sshfl [vmem:[#allocation1 + $0x8] sm:$0xff pattern:$0x73625140]
    %v793 = vld.sshfl [vmem:[#allocation1 + $0x10] sm:$0xff pattern:$0x73625140]
    %v794 = vld.sshfl [vmem:[#allocation1 + $0x18] sm:$0xff pattern:$0x73625140]
    %807 = vmatpush.msra.mxu0 %v119
    %808 = vmatpush.msra.mxu0 %v116
    %809 = vmatpush.msra.mxu0 %v113
    %810 = vmatpush.msra.mxu0 %v110
    %811 = vmatpush.msra.mxu0 %v107
    %812 = vmatpush.msra.mxu0 %v104
    %813 = vmatpush.msra.mxu0 %v101
    %814 = vmatpush.msra.mxu0 %v98
    %815 = vmatpush.msra.mxu0 %v95
    %816 = vmatpush.msra.mxu0 %v92
    %817 = vmatpush.msra.mxu0 %v89
    %818 = vmatpush.msra.mxu0 %v86
    %819 = vmatpush.msra.mxu0 %v83
    %820 = vmatpush.msra.mxu0 %v80
    %821 = vmatpush.msra.mxu0 %v77
    %822 = vmatpush.msra.mxu0 %v74
    %823 = vmatmul.f32.gmra.mxu0 %v782
    %v824 = vpop.f32.mrf.mxu0
    %v825 = vadd.f32 %v770, %v824
    %826 = vdwg.mxu0
    %827 = vmatpush.msra.mxu0 %v167
    %828 = vmatpush.msra.mxu0 %v164
    %829 = vmatpush.msra.mxu0 %v161
    %830 = vmatpush.msra.mxu0 %v158
    %831 = vmatpush.msra.mxu0 %v155
    %832 = vmatpush.msra.mxu0 %v152
    %833 = vmatpush.msra.mxu0 %v149
    %834 = vmatpush.msra.mxu0 %v146
    %835 = vmatpush.msra.mxu0 %v143
    %836 = vmatpush.msra.mxu0 %v140
    %837 = vmatpush.msra.mxu0 %v137
    %838 = vmatpush.msra.mxu0 %v134
    %839 = vmatpush.msra.mxu0 %v131
    %840 = vmatpush.msra.mxu0 %v128
    %841 = vmatpush.msra.mxu0 %v125
    %842 = vmatpush.msra.mxu0 %v122
    %843 = vmatmul.f32.gmra.mxu0 %v783
    %v844 = vpop.f32.mrf.mxu0
    %v845 = vadd.f32 %v825, %v844
    %846 = vdwg.mxu0
    %847 = vmatpush.msra.mxu0 %v215
    %848 = vmatpush.msra.mxu0 %v212
    %849 = vmatpush.msra.mxu0 %v209
    %850 = vmatpush.msra.mxu0 %v206
    %851 = vmatpush.msra.mxu0 %v203
    %852 = vmatpush.msra.mxu0 %v200
    %853 = vmatpush.msra.mxu0 %v197
    %854 = vmatpush.msra.mxu0 %v194
    %855 = vmatpush.msra.mxu0 %v191
    %856 = vmatpush.msra.mxu0 %v188
    %857 = vmatpush.msra.mxu0 %v185
    %858 = vmatpush.msra.mxu0 %v182
    %859 = vmatpush.msra.mxu0 %v179
    %860 = vmatpush.msra.mxu0 %v176
    %861 = vmatpush.msra.mxu0 %v173
    %862 = vmatpush.msra.mxu0 %v170
    %863 = vmatmul.f32.gmra.mxu0 %v784
    %v864 = vpop.f32.mrf.mxu0
    %v865 = vadd.f32 %v845, %v864
    %866 = vdwg.mxu0
    %867 = vmatpush.msra.mxu0 %v263
    %868 = vmatpush.msra.mxu0 %v260
    %869 = vmatpush.msra.mxu0 %v257
    %870 = vmatpush.msra.mxu0 %v254
    %871 = vmatpush.msra.mxu0 %v251
    %872 = vmatpush.msra.mxu0 %v248
    %873 = vmatpush.msra.mxu0 %v245
    %874 = vmatpush.msra.mxu0 %v242
    %875 = vmatpush.msra.mxu0 %v239
    %876 = vmatpush.msra.mxu0 %v236
    %877 = vmatpush.msra.mxu0 %v233
    %878 = vmatpush.msra.mxu0 %v230
    %879 = vmatpush.msra.mxu0 %v227
    %880 = vmatpush.msra.mxu0 %v224
    %881 = vmatpush.msra.mxu0 %v221
    %882 = vmatpush.msra.mxu0 %v218
    %883 = vmatmul.f32.gmra.mxu0 %v785
    %v884 = vpop.f32.mrf.mxu0
    %v885 = vadd.f32 %v865, %v884
    %886 = vdwg.mxu0
    %887 = vmatpush.msra.mxu0 %v311
    %888 = vmatpush.msra.mxu0 %v308
    %889 = vmatpush.msra.mxu0 %v305
    %890 = vmatpush.msra.mxu0 %v302
    %891 = vmatpush.msra.mxu0 %v299
    %892 = vmatpush.msra.mxu0 %v296
    %893 = vmatpush.msra.mxu0 %v293
    %894 = vmatpush.msra.mxu0 %v290
    %895 = vmatpush.msra.mxu0 %v287
    %896 = vmatpush.msra.mxu0 %v284
    %897 = vmatpush.msra.mxu0 %v281
    %898 = vmatpush.msra.mxu0 %v278
    %899 = vmatpush.msra.mxu0 %v275
    %900 = vmatpush.msra.mxu0 %v272
    %901 = vmatpush.msra.mxu0 %v269
    %902 = vmatpush.msra.mxu0 %v266
    %903 = vmatmul.f32.gmra.mxu0 %v786
    %v904 = vpop.f32.mrf.mxu0
    %v905 = vadd.f32 %v885, %v904
    %906 = vdwg.mxu0
    %907 = vmatpush.msra.mxu0 %v359
    %908 = vmatpush.msra.mxu0 %v356
    %909 = vmatpush.msra.mxu0 %v353
    %910 = vmatpush.msra.mxu0 %v350
    %911 = vmatpush.msra.mxu0 %v347
    %912 = vmatpush.msra.mxu0 %v344
    %913 = vmatpush.msra.mxu0 %v341
    %914 = vmatpush.msra.mxu0 %v338
    %915 = vmatpush.msra.mxu0 %v335
    %916 = vmatpush.msra.mxu0 %v332
    %917 = vmatpush.msra.mxu0 %v329
    %918 = vmatpush.msra.mxu0 %v326
    %919 = vmatpush.msra.mxu0 %v323
    %920 = vmatpush.msra.mxu0 %v320
    %921 = vmatpush.msra.mxu0 %v317
    %922 = vmatpush.msra.mxu0 %v314
    %923 = vmatmul.f32.gmra.mxu0 %v787
    %v924 = vpop.f32.mrf.mxu0
    %v925 = vadd.f32 %v905, %v924
    %926 = vdwg.mxu0
    %927 = vmatpush.msra.mxu0 %v407
    %928 = vmatpush.msra.mxu0 %v404
    %929 = vmatpush.msra.mxu0 %v401
    %930 = vmatpush.msra.mxu0 %v398
    %931 = vmatpush.msra.mxu0 %v395
    %932 = vmatpush.msra.mxu0 %v392
    %933 = vmatpush.msra.mxu0 %v389
    %934 = vmatpush.msra.mxu0 %v386
    %935 = vmatpush.msra.mxu0 %v383
    %936 = vmatpush.msra.mxu0 %v380
    %937 = vmatpush.msra.mxu0 %v377
    %938 = vmatpush.msra.mxu0 %v374
    %939 = vmatpush.msra.mxu0 %v371
    %940 = vmatpush.msra.mxu0 %v368
    %941 = vmatpush.msra.mxu0 %v365
    %942 = vmatpush.msra.mxu0 %v362
    %943 = vmatmul.f32.gmra.mxu0 %v788
    %v944 = vpop.f32.mrf.mxu0
    %v945 = vadd.f32 %v925, %v944
    %946 = vdwg.mxu0
    %947 = vmatpush.msra.mxu0 %v455
    %948 = vmatpush.msra.mxu0 %v452
    %949 = vmatpush.msra.mxu0 %v449
    %950 = vmatpush.msra.mxu0 %v446
    %951 = vmatpush.msra.mxu0 %v443
    %952 = vmatpush.msra.mxu0 %v440
    %953 = vmatpush.msra.mxu0 %v437
    %954 = vmatpush.msra.mxu0 %v434
    %955 = vmatpush.msra.mxu0 %v431
    %956 = vmatpush.msra.mxu0 %v428
    %957 = vmatpush.msra.mxu0 %v425
    %958 = vmatpush.msra.mxu0 %v422
    %959 = vmatpush.msra.mxu0 %v419
    %960 = vmatpush.msra.mxu0 %v416
    %961 = vmatpush.msra.mxu0 %v413
    %962 = vmatpush.msra.mxu0 %v410
    %963 = vmatmul.f32.gmra.mxu0 %v789
    %v964 = vpop.f32.mrf.mxu0
    %v965 = vadd.f32 %v945, %v964
    %966 = vdwg.mxu0
    %967 = vmatpush.msra.mxu0 %v503
    %968 = vmatpush.msra.mxu0 %v500
    %969 = vmatpush.msra.mxu0 %v497
    %970 = vmatpush.msra.mxu0 %v494
    %971 = vmatpush.msra.mxu0 %v491
    %972 = vmatpush.msra.mxu0 %v488
    %973 = vmatpush.msra.mxu0 %v485
    %974 = vmatpush.msra.mxu0 %v482
    %975 = vmatpush.msra.mxu0 %v479
    %976 = vmatpush.msra.mxu0 %v476
    %977 = vmatpush.msra.mxu0 %v473
    %978 = vmatpush.msra.mxu0 %v470
    %979 = vmatpush.msra.mxu0 %v467
    %980 = vmatpush.msra.mxu0 %v464
    %981 = vmatpush.msra.mxu0 %v461
    %982 = vmatpush.msra.mxu0 %v458
    %983 = vmatmul.f32.gmra.mxu0 %v791
    %v984 = vpop.f32.mrf.mxu0
    %v985 = vadd.f32 %v965, %v984
    %986 = vdwg.mxu0
    %987 = vmatpush.msra.mxu0 %v551
    %988 = vmatpush.msra.mxu0 %v548
    %989 = vmatpush.msra.mxu0 %v545
    %990 = vmatpush.msra.mxu0 %v542
    %991 = vmatpush.msra.mxu0 %v539
    %992 = vmatpush.msra.mxu0 %v536
    %993 = vmatpush.msra.mxu0 %v533
    %994 = vmatpush.msra.mxu0 %v530
    %995 = vmatpush.msra.mxu0 %v527
    %996 = vmatpush.msra.mxu0 %v524
    %997 = vmatpush.msra.mxu0 %v521
    %998 = vmatpush.msra.mxu0 %v518
    %999 = vmatpush.msra.mxu0 %v515
    %1000 = vmatpush.msra.mxu0 %v512
    %1001 = vmatpush.msra.mxu0 %v509
    %1002 = vmatpush.msra.mxu0 %v506
    %1003 = vmatmul.f32.gmra.mxu0 %v792
    %v1004 = vpop.f32.mrf.mxu0
    %v1005 = vadd.f32 %v985, %v1004
    %1006 = vdwg.mxu0
    %1007 = vmatpush.msra.mxu0 %v599
    %1008 = vmatpush.msra.mxu0 %v596
    %1009 = vmatpush.msra.mxu0 %v593
    %1010 = vmatpush.msra.mxu0 %v590
    %1011 = vmatpush.msra.mxu0 %v587
    %1012 = vmatpush.msra.mxu0 %v584
    %1013 = vmatpush.msra.mxu0 %v581
    %1014 = vmatpush.msra.mxu0 %v578
    %1015 = vmatpush.msra.mxu0 %v575
    %1016 = vmatpush.msra.mxu0 %v572
    %1017 = vmatpush.msra.mxu0 %v569
    %1018 = vmatpush.msra.mxu0 %v566
    %1019 = vmatpush.msra.mxu0 %v563
    %1020 = vmatpush.msra.mxu0 %v560
    %1021 = vmatpush.msra.mxu0 %v557
    %1022 = vmatpush.msra.mxu0 %v554
    %1023 = vmatmul.f32.gmra.mxu0 %v793
    %v1024 = vpop.f32.mrf.mxu0
    %v1025 = vadd.f32 %v1005, %v1024
    %1026 = vdwg.mxu0
    %1027 = vmatpush.msra.mxu0 %v647
    %1028 = vmatpush.msra.mxu0 %v644
    %1029 = vmatpush.msra.mxu0 %v641
    %1030 = vmatpush.msra.mxu0 %v638
    %1031 = vmatpush.msra.mxu0 %v635
    %1032 = vmatpush.msra.mxu0 %v632
    %1033 = vmatpush.msra.mxu0 %v629
    %1034 = vmatpush.msra.mxu0 %v626
    %1035 = vmatpush.msra.mxu0 %v623
    %1036 = vmatpush.msra.mxu0 %v620
    %1037 = vmatpush.msra.mxu0 %v617
    %1038 = vmatpush.msra.mxu0 %v614
    %1039 = vmatpush.msra.mxu0 %v611
    %1040 = vmatpush.msra.mxu0 %v608
    %1041 = vmatpush.msra.mxu0 %v605
    %1042 = vmatpush.msra.mxu0 %v602
    %1043 = vmatmul.f32.gmra.mxu0 %v794
    %v1044 = vpop.f32.mrf.mxu0
    %v1045 = vadd.f32 %v1025, %v1044
    %1046 = vdwg.mxu0
    %1047 = vmatpush.msra.mxu0 %v120
    %1048 = vmatpush.msra.mxu0 %v117
    %1049 = vmatpush.msra.mxu0 %v114
    %1050 = vmatpush.msra.mxu0 %v111
    %1051 = vmatpush.msra.mxu0 %v108
    %1052 = vmatpush.msra.mxu0 %v105
    %1053 = vmatpush.msra.mxu0 %v102
    %1054 = vmatpush.msra.mxu0 %v99
    %1055 = vmatpush.msra.mxu0 %v96
    %1056 = vmatpush.msra.mxu0 %v93
    %1057 = vmatpush.msra.mxu0 %v90
    %1058 = vmatpush.msra.mxu0 %v87
    %1059 = vmatpush.msra.mxu0 %v84
    %1060 = vmatpush.msra.mxu0 %v81
    %1061 = vmatpush.msra.mxu0 %v78
    %1062 = vmatpush.msra.mxu0 %v75
    %1063 = vmatmul.f32.gmra.mxu0 %v782
    %v1064 = vpop.f32.mrf.mxu0
    %v1065 = vadd.f32 %v771, %v1064
    %1066 = vdwg.mxu0
    %1067 = vmatpush.msra.mxu0 %v168
    %1068 = vmatpush.msra.mxu0 %v165
    %1069 = vmatpush.msra.mxu0 %v162
    %1070 = vmatpush.msra.mxu0 %v159
    %1071 = vmatpush.msra.mxu0 %v156
    %1072 = vmatpush.msra.mxu0 %v153
    %1073 = vmatpush.msra.mxu0 %v150
    %1074 = vmatpush.msra.mxu0 %v147
    %1075 = vmatpush.msra.mxu0 %v144
    %1076 = vmatpush.msra.mxu0 %v141
    %1077 = vmatpush.msra.mxu0 %v138
    %1078 = vmatpush.msra.mxu0 %v135
    %1079 = vmatpush.msra.mxu0 %v132
    %1080 = vmatpush.msra.mxu0 %v129
    %1081 = vmatpush.msra.mxu0 %v126
    %1082 = vmatpush.msra.mxu0 %v123
    %1083 = vmatmul.f32.gmra.mxu0 %v783
    %v1084 = vpop.f32.mrf.mxu0
    %v1085 = vadd.f32 %v1065, %v1084
    %1086 = vdwg.mxu0
    %1087 = vmatpush.msra.mxu0 %v216
    %1088 = vmatpush.msra.mxu0 %v213
    %1089 = vmatpush.msra.mxu0 %v210
    %1090 = vmatpush.msra.mxu0 %v207
    %1091 = vmatpush.msra.mxu0 %v204
    %1092 = vmatpush.msra.mxu0 %v201
    %1093 = vmatpush.msra.mxu0 %v198
    %1094 = vmatpush.msra.mxu0 %v195
    %1095 = vmatpush.msra.mxu0 %v192
    %1096 = vmatpush.msra.mxu0 %v189
    %1097 = vmatpush.msra.mxu0 %v186
    %1098 = vmatpush.msra.mxu0 %v183
    %1099 = vmatpush.msra.mxu0 %v180
    %1100 = vmatpush.msra.mxu0 %v177
    %1101 = vmatpush.msra.mxu0 %v174
    %1102 = vmatpush.msra.mxu0 %v171
    %1103 = vmatmul.f32.gmra.mxu0 %v784
    %v1104 = vpop.f32.mrf.mxu0
    %v1105 = vadd.f32 %v1085, %v1104
    %1106 = vdwg.mxu0
    %1107 = vmatpush.msra.mxu0 %v264
    %1108 = vmatpush.msra.mxu0 %v261
    %1109 = vmatpush.msra.mxu0 %v258
    %1110 = vmatpush.msra.mxu0 %v255
    %1111 = vmatpush.msra.mxu0 %v252
    %1112 = vmatpush.msra.mxu0 %v249
    %1113 = vmatpush.msra.mxu0 %v246
    %1114 = vmatpush.msra.mxu0 %v243
    %1115 = vmatpush.msra.mxu0 %v240
    %1116 = vmatpush.msra.mxu0 %v237
    %1117 = vmatpush.msra.mxu0 %v234
    %1118 = vmatpush.msra.mxu0 %v231
    %1119 = vmatpush.msra.mxu0 %v228
    %1120 = vmatpush.msra.mxu0 %v225
    %1121 = vmatpush.msra.mxu0 %v222
    %1122 = vmatpush.msra.mxu0 %v219
    %1123 = vmatmul.f32.gmra.mxu0 %v785
    %v1124 = vpop.f32.mrf.mxu0
    %v1125 = vadd.f32 %v1105, %v1124
    %1126 = vdwg.mxu0
    %1127 = vmatpush.msra.mxu0 %v312
    %1128 = vmatpush.msra.mxu0 %v309
    %1129 = vmatpush.msra.mxu0 %v306
    %1130 = vmatpush.msra.mxu0 %v303
    %1131 = vmatpush.msra.mxu0 %v300
    %1132 = vmatpush.msra.mxu0 %v297
    %1133 = vmatpush.msra.mxu0 %v294
    %1134 = vmatpush.msra.mxu0 %v291
    %1135 = vmatpush.msra.mxu0 %v288
    %1136 = vmatpush.msra.mxu0 %v285
    %1137 = vmatpush.msra.mxu0 %v282
    %1138 = vmatpush.msra.mxu0 %v279
    %1139 = vmatpush.msra.mxu0 %v276
    %1140 = vmatpush.msra.mxu0 %v273
    %1141 = vmatpush.msra.mxu0 %v270
    %1142 = vmatpush.msra.mxu0 %v267
    %1143 = vmatmul.f32.gmra.mxu0 %v786
    %v1144 = vpop.f32.mrf.mxu0
    %v1145 = vadd.f32 %v1125, %v1144
    %1146 = vdwg.mxu0
    %1147 = vmatpush.msra.mxu0 %v360
    %1148 = vmatpush.msra.mxu0 %v357
    %1149 = vmatpush.msra.mxu0 %v354
    %1150 = vmatpush.msra.mxu0 %v351
    %1151 = vmatpush.msra.mxu0 %v348
    %1152 = vmatpush.msra.mxu0 %v345
    %1153 = vmatpush.msra.mxu0 %v342
    %1154 = vmatpush.msra.mxu0 %v339
    %1155 = vmatpush.msra.mxu0 %v336
    %1156 = vmatpush.msra.mxu0 %v333
    %1157 = vmatpush.msra.mxu0 %v330
    %1158 = vmatpush.msra.mxu0 %v327
    %1159 = vmatpush.msra.mxu0 %v324
    %1160 = vmatpush.msra.mxu0 %v321
    %1161 = vmatpush.msra.mxu0 %v318
    %1162 = vmatpush.msra.mxu0 %v315
    %1163 = vmatmul.f32.gmra.mxu0 %v787
    %v1164 = vpop.f32.mrf.mxu0
    %v1165 = vadd.f32 %v1145, %v1164
    %1166 = vdwg.mxu0
    %1167 = vmatpush.msra.mxu0 %v408
    %1168 = vmatpush.msra.mxu0 %v405
    %1169 = vmatpush.msra.mxu0 %v402
    %1170 = vmatpush.msra.mxu0 %v399
    %1171 = vmatpush.msra.mxu0 %v396
    %1172 = vmatpush.msra.mxu0 %v393
    %1173 = vmatpush.msra.mxu0 %v390
    %1174 = vmatpush.msra.mxu0 %v387
    %1175 = vmatpush.msra.mxu0 %v384
    %1176 = vmatpush.msra.mxu0 %v381
    %1177 = vmatpush.msra.mxu0 %v378
    %1178 = vmatpush.msra.mxu0 %v375
    %1179 = vmatpush.msra.mxu0 %v372
    %1180 = vmatpush.msra.mxu0 %v369
    %1181 = vmatpush.msra.mxu0 %v366
    %1182 = vmatpush.msra.mxu0 %v363
    %1183 = vmatmul.f32.gmra.mxu0 %v788
    %v1184 = vpop.f32.mrf.mxu0
    %v1185 = vadd.f32 %v1165, %v1184
    %1186 = vdwg.mxu0
    %1187 = vmatpush.msra.mxu0 %v456
    %1188 = vmatpush.msra.mxu0 %v453
    %1189 = vmatpush.msra.mxu0 %v450
    %1190 = vmatpush.msra.mxu0 %v447
    %1191 = vmatpush.msra.mxu0 %v444
    %1192 = vmatpush.msra.mxu0 %v441
    %1193 = vmatpush.msra.mxu0 %v438
    %1194 = vmatpush.msra.mxu0 %v435
    %1195 = vmatpush.msra.mxu0 %v432
    %1196 = vmatpush.msra.mxu0 %v429
    %1197 = vmatpush.msra.mxu0 %v426
    %1198 = vmatpush.msra.mxu0 %v423
    %1199 = vmatpush.msra.mxu0 %v420
    %1200 = vmatpush.msra.mxu0 %v417
    %1201 = vmatpush.msra.mxu0 %v414
    %1202 = vmatpush.msra.mxu0 %v411
    %1203 = vmatmul.f32.gmra.mxu0 %v789
    %v1204 = vpop.f32.mrf.mxu0
    %v1205 = vadd.f32 %v1185, %v1204
    %1206 = vdwg.mxu0
    %1207 = vmatpush.msra.mxu0 %v504
    %1208 = vmatpush.msra.mxu0 %v501
    %1209 = vmatpush.msra.mxu0 %v498
    %1210 = vmatpush.msra.mxu0 %v495
    %1211 = vmatpush.msra.mxu0 %v492
    %1212 = vmatpush.msra.mxu0 %v489
    %1213 = vmatpush.msra.mxu0 %v486
    %1214 = vmatpush.msra.mxu0 %v483
    %1215 = vmatpush.msra.mxu0 %v480
    %1216 = vmatpush.msra.mxu0 %v477
    %1217 = vmatpush.msra.mxu0 %v474
    %1218 = vmatpush.msra.mxu0 %v471
    %1219 = vmatpush.msra.mxu0 %v468
    %1220 = vmatpush.msra.mxu0 %v465
    %1221 = vmatpush.msra.mxu0 %v462
    %1222 = vmatpush.msra.mxu0 %v459
    %1223 = vmatmul.f32.gmra.mxu0 %v791
    %v1224 = vpop.f32.mrf.mxu0
    %v1225 = vadd.f32 %v1205, %v1224
    %1226 = vdwg.mxu0
    %1227 = vmatpush.msra.mxu0 %v552
    %1228 = vmatpush.msra.mxu0 %v549
    %1229 = vmatpush.msra.mxu0 %v546
    %1230 = vmatpush.msra.mxu0 %v543
    %1231 = vmatpush.msra.mxu0 %v540
    %1232 = vmatpush.msra.mxu0 %v537
    %1233 = vmatpush.msra.mxu0 %v534
    %1234 = vmatpush.msra.mxu0 %v531
    %1235 = vmatpush.msra.mxu0 %v528
    %1236 = vmatpush.msra.mxu0 %v525
    %1237 = vmatpush.msra.mxu0 %v522
    %1238 = vmatpush.msra.mxu0 %v519
    %1239 = vmatpush.msra.mxu0 %v516
    %1240 = vmatpush.msra.mxu0 %v513
    %1241 = vmatpush.msra.mxu0 %v510
    %1242 = vmatpush.msra.mxu0 %v507
    %1243 = vmatmul.f32.gmra.mxu0 %v792
    %v1244 = vpop.f32.mrf.mxu0
    %v1245 = vadd.f32 %v1225, %v1244
    %1246 = vdwg.mxu0
    %1247 = vmatpush.msra.mxu0 %v600
    %1248 = vmatpush.msra.mxu0 %v597
    %1249 = vmatpush.msra.mxu0 %v594
    %1250 = vmatpush.msra.mxu0 %v591
    %1251 = vmatpush.msra.mxu0 %v588
    %1252 = vmatpush.msra.mxu0 %v585
    %1253 = vmatpush.msra.mxu0 %v582
    %1254 = vmatpush.msra.mxu0 %v579
    %1255 = vmatpush.msra.mxu0 %v576
    %1256 = vmatpush.msra.mxu0 %v573
    %1257 = vmatpush.msra.mxu0 %v570
    %1258 = vmatpush.msra.mxu0 %v567
    %1259 = vmatpush.msra.mxu0 %v564
    %1260 = vmatpush.msra.mxu0 %v561
    %1261 = vmatpush.msra.mxu0 %v558
    %1262 = vmatpush.msra.mxu0 %v555
    %1263 = vmatmul.f32.gmra.mxu0 %v793
    %v1264 = vpop.f32.mrf.mxu0
    %v1265 = vadd.f32 %v1245, %v1264
    %1266 = vdwg.mxu0
    %1267 = vmatpush.msra.mxu0 %v648
    %1268 = vmatpush.msra.mxu0 %v645
    %1269 = vmatpush.msra.mxu0 %v642
    %1270 = vmatpush.msra.mxu0 %v639
    %1271 = vmatpush.msra.mxu0 %v636
    %1272 = vmatpush.msra.mxu0 %v633
    %1273 = vmatpush.msra.mxu0 %v630
    %1274 = vmatpush.msra.mxu0 %v627
    %1275 = vmatpush.msra.mxu0 %v624
    %1276 = vmatpush.msra.mxu0 %v621
    %1277 = vmatpush.msra.mxu0 %v618
    %1278 = vmatpush.msra.mxu0 %v615
    %1279 = vmatpush.msra.mxu0 %v612
    %1280 = vmatpush.msra.mxu0 %v609
    %1281 = vmatpush.msra.mxu0 %v606
    %1282 = vmatpush.msra.mxu0 %v603
    %1283 = vmatmul.f32.gmra.mxu0 %v794
    %v1284 = vpop.f32.mrf.mxu0
    %v1285 = vadd.f32 %v1265, %v1284
    %1286 = vdwg.mxu0
    %1287 = vmatpush.msra.mxu0 %v121
    %1288 = vmatpush.msra.mxu0 %v118
    %1289 = vmatpush.msra.mxu0 %v115
    %1290 = vmatpush.msra.mxu0 %v112
    %1291 = vmatpush.msra.mxu0 %v109
    %1292 = vmatpush.msra.mxu0 %v106
    %1293 = vmatpush.msra.mxu0 %v103
    %1294 = vmatpush.msra.mxu0 %v100
    %1295 = vmatpush.msra.mxu0 %v97
    %1296 = vmatpush.msra.mxu0 %v94
    %1297 = vmatpush.msra.mxu0 %v91
    %1298 = vmatpush.msra.mxu0 %v88
    %1299 = vmatpush.msra.mxu0 %v85
    %1300 = vmatpush.msra.mxu0 %v82
    %1301 = vmatpush.msra.mxu0 %v79
    %1302 = vmatpush.msra.mxu0 %v76
    %1303 = vmatmul.f32.gmra.mxu0 %v782
    %v1304 = vpop.f32.mrf.mxu0
    %v1305 = vadd.f32 %v772, %v1304
    %1306 = vdwg.mxu0
    %1307 = vmatpush.msra.mxu0 %v169
    %1308 = vmatpush.msra.mxu0 %v166
    %1309 = vmatpush.msra.mxu0 %v163
    %1310 = vmatpush.msra.mxu0 %v160
    %1311 = vmatpush.msra.mxu0 %v157
    %1312 = vmatpush.msra.mxu0 %v154
    %1313 = vmatpush.msra.mxu0 %v151
    %1314 = vmatpush.msra.mxu0 %v148
    %1315 = vmatpush.msra.mxu0 %v145
    %1316 = vmatpush.msra.mxu0 %v142
    %1317 = vmatpush.msra.mxu0 %v139
    %1318 = vmatpush.msra.mxu0 %v136
    %1319 = vmatpush.msra.mxu0 %v133
    %1320 = vmatpush.msra.mxu0 %v130
    %1321 = vmatpush.msra.mxu0 %v127
    %1322 = vmatpush.msra.mxu0 %v124
    %1323 = vmatmul.f32.gmra.mxu0 %v783
    %v1324 = vpop.f32.mrf.mxu0
    %v1325 = vadd.f32 %v1305, %v1324
    %1326 = vdwg.mxu0
    %1327 = vmatpush.msra.mxu0 %v217
    %1328 = vmatpush.msra.mxu0 %v214
    %1329 = vmatpush.msra.mxu0 %v211
    %1330 = vmatpush.msra.mxu0 %v208
    %1331 = vmatpush.msra.mxu0 %v205
    %1332 = vmatpush.msra.mxu0 %v202
    %1333 = vmatpush.msra.mxu0 %v199
    %1334 = vmatpush.msra.mxu0 %v196
    %1335 = vmatpush.msra.mxu0 %v193
    %1336 = vmatpush.msra.mxu0 %v190
    %1337 = vmatpush.msra.mxu0 %v187
    %1338 = vmatpush.msra.mxu0 %v184
    %1339 = vmatpush.msra.mxu0 %v181
    %1340 = vmatpush.msra.mxu0 %v178
    %1341 = vmatpush.msra.mxu0 %v175
    %1342 = vmatpush.msra.mxu0 %v172
    %1343 = vmatmul.f32.gmra.mxu0 %v784
    %v1344 = vpop.f32.mrf.mxu0
    %v1345 = vadd.f32 %v1325, %v1344
    %1346 = vdwg.mxu0
    %1347 = vmatpush.msra.mxu0 %v265
    %1348 = vmatpush.msra.mxu0 %v262
    %1349 = vmatpush.msra.mxu0 %v259
    %1350 = vmatpush.msra.mxu0 %v256
    %1351 = vmatpush.msra.mxu0 %v253
    %1352 = vmatpush.msra.mxu0 %v250
    %1353 = vmatpush.msra.mxu0 %v247
    %1354 = vmatpush.msra.mxu0 %v244
    %1355 = vmatpush.msra.mxu0 %v241
    %1356 = vmatpush.msra.mxu0 %v238
    %1357 = vmatpush.msra.mxu0 %v235
    %1358 = vmatpush.msra.mxu0 %v232
    %1359 = vmatpush.msra.mxu0 %v229
    %1360 = vmatpush.msra.mxu0 %v226
    %1361 = vmatpush.msra.mxu0 %v223
    %1362 = vmatpush.msra.mxu0 %v220
    %1363 = vmatmul.f32.gmra.mxu0 %v785
    %v1364 = vpop.f32.mrf.mxu0
    %v1365 = vadd.f32 %v1345, %v1364
    %1366 = vdwg.mxu0
    %1367 = vmatpush.msra.mxu0 %v313
    %1368 = vmatpush.msra.mxu0 %v310
    %1369 = vmatpush.msra.mxu0 %v307
    %1370 = vmatpush.msra.mxu0 %v304
    %1371 = vmatpush.msra.mxu0 %v301
    %1372 = vmatpush.msra.mxu0 %v298
    %1373 = vmatpush.msra.mxu0 %v295
    %1374 = vmatpush.msra.mxu0 %v292
    %1375 = vmatpush.msra.mxu0 %v289
    %1376 = vmatpush.msra.mxu0 %v286
    %1377 = vmatpush.msra.mxu0 %v283
    %1378 = vmatpush.msra.mxu0 %v280
    %1379 = vmatpush.msra.mxu0 %v277
    %1380 = vmatpush.msra.mxu0 %v274
    %1381 = vmatpush.msra.mxu0 %v271
    %1382 = vmatpush.msra.mxu0 %v268
    %1383 = vmatmul.f32.gmra.mxu0 %v786
    %v1384 = vpop.f32.mrf.mxu0
    %v1385 = vadd.f32 %v1365, %v1384
    %1386 = vdwg.mxu0
    %1387 = vmatpush.msra.mxu0 %v361
    %1388 = vmatpush.msra.mxu0 %v358
    %1389 = vmatpush.msra.mxu0 %v355
    %1390 = vmatpush.msra.mxu0 %v352
    %1391 = vmatpush.msra.mxu0 %v349
    %1392 = vmatpush.msra.mxu0 %v346
    %1393 = vmatpush.msra.mxu0 %v343
    %1394 = vmatpush.msra.mxu0 %v340
    %1395 = vmatpush.msra.mxu0 %v337
    %1396 = vmatpush.msra.mxu0 %v334
    %1397 = vmatpush.msra.mxu0 %v331
    %1398 = vmatpush.msra.mxu0 %v328
    %1399 = vmatpush.msra.mxu0 %v325
    %1400 = vmatpush.msra.mxu0 %v322
    %1401 = vmatpush.msra.mxu0 %v319
    %1402 = vmatpush.msra.mxu0 %v316
    %1403 = vmatmul.f32.gmra.mxu0 %v787
    %v1404 = vpop.f32.mrf.mxu0
    %v1405 = vadd.f32 %v1385, %v1404
    %1406 = vdwg.mxu0
    %1407 = vmatpush.msra.mxu0 %v409
    %1408 = vmatpush.msra.mxu0 %v406
    %1409 = vmatpush.msra.mxu0 %v403
    %1410 = vmatpush.msra.mxu0 %v400
    %1411 = vmatpush.msra.mxu0 %v397
    %1412 = vmatpush.msra.mxu0 %v394
    %1413 = vmatpush.msra.mxu0 %v391
    %1414 = vmatpush.msra.mxu0 %v388
    %1415 = vmatpush.msra.mxu0 %v385
    %1416 = vmatpush.msra.mxu0 %v382
    %1417 = vmatpush.msra.mxu0 %v379
    %1418 = vmatpush.msra.mxu0 %v376
    %1419 = vmatpush.msra.mxu0 %v373
    %1420 = vmatpush.msra.mxu0 %v370
    %1421 = vmatpush.msra.mxu0 %v367
    %1422 = vmatpush.msra.mxu0 %v364
    %1423 = vmatmul.f32.gmra.mxu0 %v788
    %v1424 = vpop.f32.mrf.mxu0
    %v1425 = vadd.f32 %v1405, %v1424
    %1426 = vdwg.mxu0
    %1427 = vmatpush.msra.mxu0 %v457
    %1428 = vmatpush.msra.mxu0 %v454
    %1429 = vmatpush.msra.mxu0 %v451
    %1430 = vmatpush.msra.mxu0 %v448
    %1431 = vmatpush.msra.mxu0 %v445
    %1432 = vmatpush.msra.mxu0 %v442
    %1433 = vmatpush.msra.mxu0 %v439
    %1434 = vmatpush.msra.mxu0 %v436
    %1435 = vmatpush.msra.mxu0 %v433
    %1436 = vmatpush.msra.mxu0 %v430
    %1437 = vmatpush.msra.mxu0 %v427
    %1438 = vmatpush.msra.mxu0 %v424
    %1439 = vmatpush.msra.mxu0 %v421
    %1440 = vmatpush.msra.mxu0 %v418
    %1441 = vmatpush.msra.mxu0 %v415
    %1442 = vmatpush.msra.mxu0 %v412
    %1443 = vmatmul.f32.gmra.mxu0 %v789
    %v1444 = vpop.f32.mrf.mxu0
    %v1445 = vadd.f32 %v1425, %v1444
    %1446 = vdwg.mxu0
    %1447 = vmatpush.msra.mxu0 %v505
    %1448 = vmatpush.msra.mxu0 %v502
    %1449 = vmatpush.msra.mxu0 %v499
    %1450 = vmatpush.msra.mxu0 %v496
    %1451 = vmatpush.msra.mxu0 %v493
    %1452 = vmatpush.msra.mxu0 %v490
    %1453 = vmatpush.msra.mxu0 %v487
    %1454 = vmatpush.msra.mxu0 %v484
    %1455 = vmatpush.msra.mxu0 %v481
    %1456 = vmatpush.msra.mxu0 %v478
    %1457 = vmatpush.msra.mxu0 %v475
    %1458 = vmatpush.msra.mxu0 %v472
    %1459 = vmatpush.msra.mxu0 %v469
    %1460 = vmatpush.msra.mxu0 %v466
    %1461 = vmatpush.msra.mxu0 %v463
    %1462 = vmatpush.msra.mxu0 %v460
    %1463 = vmatmul.f32.gmra.mxu0 %v791
    %v1464 = vpop.f32.mrf.mxu0
    %v1465 = vadd.f32 %v1445, %v1464
    %1466 = vdwg.mxu0
    %1467 = vmatpush.msra.mxu0 %v553
    %1468 = vmatpush.msra.mxu0 %v550
    %1469 = vmatpush.msra.mxu0 %v547
    %1470 = vmatpush.msra.mxu0 %v544
    %1471 = vmatpush.msra.mxu0 %v541
    %1472 = vmatpush.msra.mxu0 %v538
    %1473 = vmatpush.msra.mxu0 %v535
    %1474 = vmatpush.msra.mxu0 %v532
    %1475 = vmatpush.msra.mxu0 %v529
    %1476 = vmatpush.msra.mxu0 %v526
    %1477 = vmatpush.msra.mxu0 %v523
    %1478 = vmatpush.msra.mxu0 %v520
    %1479 = vmatpush.msra.mxu0 %v517
    %1480 = vmatpush.msra.mxu0 %v514
    %1481 = vmatpush.msra.mxu0 %v511
    %1482 = vmatpush.msra.mxu0 %v508
    %1483 = vmatmul.f32.gmra.mxu0 %v792
    %v1484 = vpop.f32.mrf.mxu0
    %v1485 = vadd.f32 %v1465, %v1484
    %1486 = vdwg.mxu0
    %1487 = vmatpush.msra.mxu0 %v601
    %1488 = vmatpush.msra.mxu0 %v598
    %1489 = vmatpush.msra.mxu0 %v595
    %1490 = vmatpush.msra.mxu0 %v592
    %1491 = vmatpush.msra.mxu0 %v589
    %1492 = vmatpush.msra.mxu0 %v586
    %1493 = vmatpush.msra.mxu0 %v583
    %1494 = vmatpush.msra.mxu0 %v580
    %1495 = vmatpush.msra.mxu0 %v577
    %1496 = vmatpush.msra.mxu0 %v574
    %1497 = vmatpush.msra.mxu0 %v571
    %1498 = vmatpush.msra.mxu0 %v568
    %1499 = vmatpush.msra.mxu0 %v565
    %1500 = vmatpush.msra.mxu0 %v562
    %1501 = vmatpush.msra.mxu0 %v559
    %1502 = vmatpush.msra.mxu0 %v556
    %1503 = vmatmul.f32.gmra.mxu0 %v793
    %v1504 = vpop.f32.mrf.mxu0
    %v1505 = vadd.f32 %v1485, %v1504
    %1506 = vdwg.mxu0
    %1507 = vmatpush.msra.mxu0 %v649
    %1508 = vmatpush.msra.mxu0 %v646
    %1509 = vmatpush.msra.mxu0 %v643
    %1510 = vmatpush.msra.mxu0 %v640
    %1511 = vmatpush.msra.mxu0 %v637
    %1512 = vmatpush.msra.mxu0 %v634
    %1513 = vmatpush.msra.mxu0 %v631
    %1514 = vmatpush.msra.mxu0 %v628
    %1515 = vmatpush.msra.mxu0 %v625
    %1516 = vmatpush.msra.mxu0 %v622
    %1517 = vmatpush.msra.mxu0 %v619
    %1518 = vmatpush.msra.mxu0 %v616
    %1519 = vmatpush.msra.mxu0 %v613
    %1520 = vmatpush.msra.mxu0 %v610
    %1521 = vmatpush.msra.mxu0 %v607
    %1522 = vmatpush.msra.mxu0 %v604
    %1523 = vmatmul.f32.gmra.mxu0 %v794
    %v1524 = vpop.f32.mrf.mxu0
    %v1525 = vadd.f32 %v1505, %v1524
    %1526 = vdwg.mxu0
    %vm1527 = vcmask 359424
    %v1529 = vsel %vm1527, %v1525, 0
    %vm1531 = vcmask 1043456
    %v1533 = vsel %vm1531, %v70, 0
    %1535 = vmatpush.msra.mxu0 %v48
    %1536 = vmatpush.msra.mxu0 %v47
    %1537 = vmatpush.msra.mxu0 %v46
    %1538 = vmatpush.msra.mxu0 %v45
    %1539 = vmatpush.msra.mxu0 %v44
    %1540 = vmatpush.msra.mxu0 %v43
    %1541 = vmatpush.msra.mxu0 %v42
    %1542 = vmatpush.msra.mxu0 %v41
    %1543 = vmatpush.msra.mxu0 %v40
    %1544 = vmatpush.msra.mxu0 %v39
    %1545 = vmatpush.msra.mxu0 %v38
    %1546 = vmatpush.msra.mxu0 %v37
    %1547 = vmatpush.msra.mxu0 %v36
    %1548 = vmatpush.msra.mxu0 %v35
    %1549 = vmatpush.msra.mxu0 %v34
    %1550 = vmatpush.msra.mxu0 %v33
    %1551 = vmatmul.f32.gmra.mxu0 %v1045
    %v1552 = vpop.f32.mrf.mxu0
    %v1553 = vadd.f32 0.0, %v1552
    %1554 = vdwg.mxu0
    %1555 = vmatpush.msra.mxu0 %v64
    %1556 = vmatpush.msra.mxu0 %v63
    %1557 = vmatpush.msra.mxu0 %v62
    %1558 = vmatpush.msra.mxu0 %v61
    %1559 = vmatpush.msra.mxu0 %v60
    %1560 = vmatpush.msra.mxu0 %v59
    %1561 = vmatpush.msra.mxu0 %v58
    %1562 = vmatpush.msra.mxu0 %v57
    %1563 = vmatpush.msra.mxu0 %v56
    %1564 = vmatpush.msra.mxu0 %v55
    %1565 = vmatpush.msra.mxu0 %v54
    %1566 = vmatpush.msra.mxu0 %v53
    %1567 = vmatpush.msra.mxu0 %v52
    %1568 = vmatpush.msra.mxu0 %v51
    %1569 = vmatpush.msra.mxu0 %v50
    %1570 = vmatpush.msra.mxu0 %v49
    %1571 = vmatmul.f32.gmra.mxu0 %v1285
    %v1572 = vpop.f32.mrf.mxu0
    %v1573 = vadd.f32 %v1553, %v1572
    %1574 = vdwg.mxu0
    %1575 = vmatpush.msra.mxu0 0.0
    %1576 = vmatpush.msra.mxu0 0.0
    %1577 = vmatpush.msra.mxu0 0.0
    %1578 = vmatpush.msra.mxu0 0.0
    %1579 = vmatpush.msra.mxu0 0.0
    %1580 = vmatpush.msra.mxu0 0.0
    %1581 = vmatpush.msra.mxu0 0.0
    %1582 = vmatpush.msra.mxu0 0.0
    %1583 = vmatpush.msra.mxu0 0.0
    %1584 = vmatpush.msra.mxu0 0.0
    %1585 = vmatpush.msra.mxu0 %v1533
    %1586 = vmatpush.msra.mxu0 %v69
    %1587 = vmatpush.msra.mxu0 %v68
    %1588 = vmatpush.msra.mxu0 %v67
    %1589 = vmatpush.msra.mxu0 %v66
    %1590 = vmatpush.msra.mxu0 %v65
    %1591 = vmatmul.f32.gmra.mxu0 %v1529
    %v1592 = vpop.f32.mrf.mxu0
    %v1593 = vadd.f32 %v1573, %v1592
    %1594 = vdwg.mxu0
    %v1595 = vmul.f32 %v1593, 0.02
    %v1596 = vmul.f32 %v1045, %v1045
    %v1597 = vmul.f32 %v1285, %v1285
    %v1598 = vmul.f32 %v1525, %v1525
    %v1600 = vsel %vm1527, %v1598, 0
    %1602 = vmatpush.msra.mxu0 %v48
    %1603 = vmatpush.msra.mxu0 %v47
    %1604 = vmatpush.msra.mxu0 %v46
    %1605 = vmatpush.msra.mxu0 %v45
    %1606 = vmatpush.msra.mxu0 %v44
    %1607 = vmatpush.msra.mxu0 %v43
    %1608 = vmatpush.msra.mxu0 %v42
    %1609 = vmatpush.msra.mxu0 %v41
    %1610 = vmatpush.msra.mxu0 %v40
    %1611 = vmatpush.msra.mxu0 %v39
    %1612 = vmatpush.msra.mxu0 %v38
    %1613 = vmatpush.msra.mxu0 %v37
    %1614 = vmatpush.msra.mxu0 %v36
    %1615 = vmatpush.msra.mxu0 %v35
    %1616 = vmatpush.msra.mxu0 %v34
    %1617 = vmatpush.msra.mxu0 %v33
    %1618 = vmatmul.f32.gmra.mxu0 %v1596
    %v1619 = vpop.f32.mrf.mxu0
    %v1620 = vadd.f32 0.0, %v1619
    %1621 = vdwg.mxu0
    %1622 = vmatpush.msra.mxu0 %v64
    %1623 = vmatpush.msra.mxu0 %v63
    %1624 = vmatpush.msra.mxu0 %v62
    %1625 = vmatpush.msra.mxu0 %v61
    %1626 = vmatpush.msra.mxu0 %v60
    %1627 = vmatpush.msra.mxu0 %v59
    %1628 = vmatpush.msra.mxu0 %v58
    %1629 = vmatpush.msra.mxu0 %v57
    %1630 = vmatpush.msra.mxu0 %v56
    %1631 = vmatpush.msra.mxu0 %v55
    %1632 = vmatpush.msra.mxu0 %v54
    %1633 = vmatpush.msra.mxu0 %v53
    %1634 = vmatpush.msra.mxu0 %v52
    %1635 = vmatpush.msra.mxu0 %v51
    %1636 = vmatpush.msra.mxu0 %v50
    %1637 = vmatpush.msra.mxu0 %v49
    %1638 = vmatmul.f32.gmra.mxu0 %v1597
    %v1639 = vpop.f32.mrf.mxu0
    %v1640 = vadd.f32 %v1620, %v1639
    %1641 = vdwg.mxu0
    %1642 = vmatpush.msra.mxu0 0.0
    %1643 = vmatpush.msra.mxu0 0.0
    %1644 = vmatpush.msra.mxu0 0.0
    %1645 = vmatpush.msra.mxu0 0.0
    %1646 = vmatpush.msra.mxu0 0.0
    %1647 = vmatpush.msra.mxu0 0.0
    %1648 = vmatpush.msra.mxu0 0.0
    %1649 = vmatpush.msra.mxu0 0.0
    %1650 = vmatpush.msra.mxu0 0.0
    %1651 = vmatpush.msra.mxu0 0.0
    %1652 = vmatpush.msra.mxu0 %v1533
    %1653 = vmatpush.msra.mxu0 %v69
    %1654 = vmatpush.msra.mxu0 %v68
    %1655 = vmatpush.msra.mxu0 %v67
    %1656 = vmatpush.msra.mxu0 %v66
    %1657 = vmatpush.msra.mxu0 %v65
    %1658 = vmatmul.f32.gmra.mxu0 %v1600
    %v1659 = vpop.f32.mrf.mxu0
    %v1660 = vadd.f32 %v1640, %v1659
    %1661 = vdwg.mxu0
    %v1662 = vmul.f32 %v1660, 0.02
    %v1663 = vmul.f32 %v1595, %v1595
    %v1664 = vsub.f32 %v1662, %v1663
    %v1665 = vmax.f32 %v1664, 0.0
    %v1666 = vadd.f32 %v1665, 1e-05
    %v1667 = vrsqrt.pop %v1666
    %v1668 = vmul.f32 %v1667, %v1666
    %v1669 = vmul.f32 %v1668, %v1667
    %v1670 = vmul.f32 0.5, %v1669
    %v1671 = vsub.f32 1.5, %v1670
    %v1672 = vmul.f32 %v1667, %v1671
    %vm1673 = vweird.f32 %v1666
    %vm1674 = vweird.f32 %v1667
    %vm1675 = vmor %vm1673, %vm1674
    %v1676 = vsel %vm1675, %v1667, %v1672
    %vm1677 = vcmask 48128
    %v1679 = vsel %vm1677, %v1595, 0
    %vm1681 = vcmask 1045504
    %v1683 = vsel %vm1681, %v766, 0
    %v1686 = vsel %vm1681, %v767, 0
    %v1689 = vsel %vm1681, %v768, 0
    %1691 = vmatpush.msra.mxu0 0.0
    %1692 = vmatpush.msra.mxu0 0.0
    %1693 = vmatpush.msra.mxu0 0.0
    %1694 = vmatpush.msra.mxu0 0.0
    %1695 = vmatpush.msra.mxu0 0.0
    %1696 = vmatpush.msra.mxu0 0.0
    %1697 = vmatpush.msra.mxu0 0.0
    %1698 = vmatpush.msra.mxu0 0.0
    %1699 = vmatpush.msra.mxu0 0.0
    %1700 = vmatpush.msra.mxu0 0.0
    %1701 = vmatpush.msra.mxu0 0.0
    %1702 = vmatpush.msra.mxu0 0.0
    %1703 = vmatpush.msra.mxu0 0.0
    %1704 = vmatpush.msra.mxu0 0.0
    %1705 = vmatpush.msra.mxu0 0.0
    %1706 = vmatpush.msra.mxu0 %v1683
    %1707 = vmatmul.f32.gmra.mxu0 %v1679
    %v1708 = vpop.f32.mrf.mxu0
    %v1709 = vadd.f32 0.0, %v1708
    %1710 = vdwg.mxu0
    %1711 = vmatpush.msra.mxu0 0.0
    %1712 = vmatpush.msra.mxu0 0.0
    %1713 = vmatpush.msra.mxu0 0.0
    %1714 = vmatpush.msra.mxu0 0.0
    %1715 = vmatpush.msra.mxu0 0.0
    %1716 = vmatpush.msra.mxu0 0.0
    %1717 = vmatpush.msra.mxu0 0.0
    %1718 = vmatpush.msra.mxu0 0.0
    %1719 = vmatpush.msra.mxu0 0.0
    %1720 = vmatpush.msra.mxu0 0.0
    %1721 = vmatpush.msra.mxu0 0.0
    %1722 = vmatpush.msra.mxu0 0.0
    %1723 = vmatpush.msra.mxu0 0.0
    %1724 = vmatpush.msra.mxu0 0.0
    %1725 = vmatpush.msra.mxu0 0.0
    %1726 = vmatpush.msra.mxu0 %v1686
    %1727 = vmatmul.f32.gmra.mxu0 %v1679
    %v1728 = vpop.f32.mrf.mxu0
    %v1729 = vadd.f32 0.0, %v1728
    %1730 = vdwg.mxu0
    %1731 = vmatpush.msra.mxu0 0.0
    %1732 = vmatpush.msra.mxu0 0.0
    %1733 = vmatpush.msra.mxu0 0.0
    %1734 = vmatpush.msra.mxu0 0.0
    %1735 = vmatpush.msra.mxu0 0.0
    %1736 = vmatpush.msra.mxu0 0.0
    %1737 = vmatpush.msra.mxu0 0.0
    %1738 = vmatpush.msra.mxu0 0.0
    %1739 = vmatpush.msra.mxu0 0.0
    %1740 = vmatpush.msra.mxu0 0.0
    %1741 = vmatpush.msra.mxu0 0.0
    %1742 = vmatpush.msra.mxu0 0.0
    %1743 = vmatpush.msra.mxu0 0.0
    %1744 = vmatpush.msra.mxu0 0.0
    %1745 = vmatpush.msra.mxu0 0.0
    %1746 = vmatpush.msra.mxu0 %v1689
    %1747 = vmatmul.f32.gmra.mxu0 %v1679
    %v1748 = vpop.f32.mrf.mxu0
    %v1749 = vadd.f32 0.0, %v1748
    %1750 = vdwg.mxu0
    %v1752 = vsel %vm1677, %v1676, 0
    %1754 = vmatpush.msra.mxu0 0.0
    %1755 = vmatpush.msra.mxu0 0.0
    %1756 = vmatpush.msra.mxu0 0.0
    %1757 = vmatpush.msra.mxu0 0.0
    %1758 = vmatpush.msra.mxu0 0.0
    %1759 = vmatpush.msra.mxu0 0.0
    %1760 = vmatpush.msra.mxu0 0.0
    %1761 = vmatpush.msra.mxu0 0.0
    %1762 = vmatpush.msra.mxu0 0.0
    %1763 = vmatpush.msra.mxu0 0.0
    %1764 = vmatpush.msra.mxu0 0.0
    %1765 = vmatpush.msra.mxu0 0.0
    %1766 = vmatpush.msra.mxu0 0.0
    %1767 = vmatpush.msra.mxu0 0.0
    %1768 = vmatpush.msra.mxu0 0.0
    %1769 = vmatpush.msra.mxu0 %v1683
    %1770 = vmatmul.f32.gmra.mxu0 %v1752
    %v1771 = vpop.f32.mrf.mxu0
    %v1772 = vadd.f32 0.0, %v1771
    %1773 = vdwg.mxu0
    %1774 = vmatpush.msra.mxu0 0.0
    %1775 = vmatpush.msra.mxu0 0.0
    %1776 = vmatpush.msra.mxu0 0.0
    %1777 = vmatpush.msra.mxu0 0.0
    %1778 = vmatpush.msra.mxu0 0.0
    %1779 = vmatpush.msra.mxu0 0.0
    %1780 = vmatpush.msra.mxu0 0.0
    %1781 = vmatpush.msra.mxu0 0.0
    %1782 = vmatpush.msra.mxu0 0.0
    %1783 = vmatpush.msra.mxu0 0.0
    %1784 = vmatpush.msra.mxu0 0.0
    %1785 = vmatpush.msra.mxu0 0.0
    %1786 = vmatpush.msra.mxu0 0.0
    %1787 = vmatpush.msra.mxu0 0.0
    %1788 = vmatpush.msra.mxu0 0.0
    %1789 = vmatpush.msra.mxu0 %v1686
    %1790 = vmatmul.f32.gmra.mxu0 %v1752
    %v1791 = vpop.f32.mrf.mxu0
    %v1792 = vadd.f32 0.0, %v1791
    %1793 = vdwg.mxu0
    %1794 = vmatpush.msra.mxu0 0.0
    %1795 = vmatpush.msra.mxu0 0.0
    %1796 = vmatpush.msra.mxu0 0.0
    %1797 = vmatpush.msra.mxu0 0.0
    %1798 = vmatpush.msra.mxu0 0.0
    %1799 = vmatpush.msra.mxu0 0.0
    %1800 = vmatpush.msra.mxu0 0.0
    %1801 = vmatpush.msra.mxu0 0.0
    %1802 = vmatpush.msra.mxu0 0.0
    %1803 = vmatpush.msra.mxu0 0.0
    %1804 = vmatpush.msra.mxu0 0.0
    %1805 = vmatpush.msra.mxu0 0.0
    %1806 = vmatpush.msra.mxu0 0.0
    %1807 = vmatpush.msra.mxu0 0.0
    %1808 = vmatpush.msra.mxu0 0.0
    %1809 = vmatpush.msra.mxu0 %v1689
    %1810 = vmatmul.f32.gmra.mxu0 %v1752
    %v1811 = vpop.f32.mrf.mxu0
    %v1812 = vadd.f32 0.0, %v1811
    %1813 = vdwg.mxu0
    %v1814 = vsub.f32 %v1045, %v1709
    %v1815 = vsub.f32 %v1285, %v1729
    %v1816 = vsub.f32 %v1525, %v1749
    %v1817 = vmul.f32 %v1814, %v1772
    %v1818 = vmul.f32 %v1815, %v1792
    %v1819 = vmul.f32 %v1816, %v1812
    %v1820 = vmax.f32 %v1817, 0.0
    %v1821 = vmax.f32 %v1818, 0.0
    %v1822 = vmax.f32 %v1819, 0.0
    %v1824 = vperm.slane %v765, 0
    %v1825 = vperm.slane %v765, 1
    %v1826 = vperm.slane %v765, 2
    %v1831 = vsel %vm1527, %v1822, 0
    %v1834 = vsel %vm1531, %v762, 0
    %v1837 = vsel %vm1531, %v763, 0
    %v1840 = vsel %vm1531, %v764, 0
    %1842 = vmatpush.msra.mxu0 %v696
    %1843 = vmatpush.msra.mxu0 %v693
    %1844 = vmatpush.msra.mxu0 %v690
    %1845 = vmatpush.msra.mxu0 %v687
    %1846 = vmatpush.msra.mxu0 %v684
    %1847 = vmatpush.msra.mxu0 %v681
    %1848 = vmatpush.msra.mxu0 %v678
    %1849 = vmatpush.msra.mxu0 %v675
    %1850 = vmatpush.msra.mxu0 %v672
    %1851 = vmatpush.msra.mxu0 %v669
    %1852 = vmatpush.msra.mxu0 %v666
    %1853 = vmatpush.msra.mxu0 %v663
    %1854 = vmatpush.msra.mxu0 %v660
    %1855 = vmatpush.msra.mxu0 %v657
    %1856 = vmatpush.msra.mxu0 %v654
    %1857 = vmatpush.msra.mxu0 %v651
    %1858 = vmatmul.f32.gmra.mxu0 %v1820
    %v1859 = vpop.f32.mrf.mxu0
    %v1860 = vadd.f32 %v1824, %v1859
    %1861 = vdwg.mxu0
    %1862 = vmatpush.msra.mxu0 %v744
    %1863 = vmatpush.msra.mxu0 %v741
    %1864 = vmatpush.msra.mxu0 %v738
    %1865 = vmatpush.msra.mxu0 %v735
    %1866 = vmatpush.msra.mxu0 %v732
    %1867 = vmatpush.msra.mxu0 %v729
    %1868 = vmatpush.msra.mxu0 %v726
    %1869 = vmatpush.msra.mxu0 %v723
    %1870 = vmatpush.msra.mxu0 %v720
    %1871 = vmatpush.msra.mxu0 %v717
    %1872 = vmatpush.msra.mxu0 %v714
    %1873 = vmatpush.msra.mxu0 %v711
    %1874 = vmatpush.msra.mxu0 %v708
    %1875 = vmatpush.msra.mxu0 %v705
    %1876 = vmatpush.msra.mxu0 %v702
    %1877 = vmatpush.msra.mxu0 %v699
    %1878 = vmatmul.f32.gmra.mxu0 %v1821
    %v1879 = vpop.f32.mrf.mxu0
    %v1880 = vadd.f32 %v1860, %v1879
    %1881 = vdwg.mxu0
    %1882 = vmatpush.msra.mxu0 0.0
    %1883 = vmatpush.msra.mxu0 0.0
    %1884 = vmatpush.msra.mxu0 0.0
    %1885 = vmatpush.msra.mxu0 0.0
    %1886 = vmatpush.msra.mxu0 0.0
    %1887 = vmatpush.msra.mxu0 0.0
    %1888 = vmatpush.msra.mxu0 0.0
    %1889 = vmatpush.msra.mxu0 0.0
    %1890 = vmatpush.msra.mxu0 0.0
    %1891 = vmatpush.msra.mxu0 0.0
    %1892 = vmatpush.msra.mxu0 %v1834
    %1893 = vmatpush.msra.mxu0 %v759
    %1894 = vmatpush.msra.mxu0 %v756
    %1895 = vmatpush.msra.mxu0 %v753
    %1896 = vmatpush.msra.mxu0 %v750
    %1897 = vmatpush.msra.mxu0 %v747
    %1898 = vmatmul.f32.gmra.mxu0 %v1831
    %v1899 = vpop.f32.mrf.mxu0
    %v1900 = vadd.f32 %v1880, %v1899
    %1901 = vdwg.mxu0
    %1902 = vmatpush.msra.mxu0 %v697
    %1903 = vmatpush.msra.mxu0 %v694
    %1904 = vmatpush.msra.mxu0 %v691
    %1905 = vmatpush.msra.mxu0 %v688
    %1906 = vmatpush.msra.mxu0 %v685
    %1907 = vmatpush.msra.mxu0 %v682
    %1908 = vmatpush.msra.mxu0 %v679
    %1909 = vmatpush.msra.mxu0 %v676
    %1910 = vmatpush.msra.mxu0 %v673
    %1911 = vmatpush.msra.mxu0 %v670
    %1912 = vmatpush.msra.mxu0 %v667
    %1913 = vmatpush.msra.mxu0 %v664
    %1914 = vmatpush.msra.mxu0 %v661
    %1915 = vmatpush.msra.mxu0 %v658
    %1916 = vmatpush.msra.mxu0 %v655
    %1917 = vmatpush.msra.mxu0 %v652
    %1918 = vmatmul.f32.gmra.mxu0 %v1820
    %v1919 = vpop.f32.mrf.mxu0
    %v1920 = vadd.f32 %v1825, %v1919
    %1921 = vdwg.mxu0
    %1922 = vmatpush.msra.mxu0 %v745
    %1923 = vmatpush.msra.mxu0 %v742
    %1924 = vmatpush.msra.mxu0 %v739
    %1925 = vmatpush.msra.mxu0 %v736
    %1926 = vmatpush.msra.mxu0 %v733
    %1927 = vmatpush.msra.mxu0 %v730
    %1928 = vmatpush.msra.mxu0 %v727
    %1929 = vmatpush.msra.mxu0 %v724
    %1930 = vmatpush.msra.mxu0 %v721
    %1931 = vmatpush.msra.mxu0 %v718
    %1932 = vmatpush.msra.mxu0 %v715
    %1933 = vmatpush.msra.mxu0 %v712
    %1934 = vmatpush.msra.mxu0 %v709
    %1935 = vmatpush.msra.mxu0 %v706
    %1936 = vmatpush.msra.mxu0 %v703
    %1937 = vmatpush.msra.mxu0 %v700
    %1938 = vmatmul.f32.gmra.mxu0 %v1821
    %v1939 = vpop.f32.mrf.mxu0
    %v1940 = vadd.f32 %v1920, %v1939
    %1941 = vdwg.mxu0
    %1942 = vmatpush.msra.mxu0 0.0
    %1943 = vmatpush.msra.mxu0 0.0
    %1944 = vmatpush.msra.mxu0 0.0
    %1945 = vmatpush.msra.mxu0 0.0
    %1946 = vmatpush.msra.mxu0 0.0
    %1947 = vmatpush.msra.mxu0 0.0
    %1948 = vmatpush.msra.mxu0 0.0
    %1949 = vmatpush.msra.mxu0 0.0
    %1950 = vmatpush.msra.mxu0 0.0
    %1951 = vmatpush.msra.mxu0 0.0
    %1952 = vmatpush.msra.mxu0 %v1837
    %1953 = vmatpush.msra.mxu0 %v760
    %1954 = vmatpush.msra.mxu0 %v757
    %1955 = vmatpush.msra.mxu0 %v754
    %1956 = vmatpush.msra.mxu0 %v751
    %1957 = vmatpush.msra.mxu0 %v748
    %1958 = vmatmul.f32.gmra.mxu0 %v1831
    %v1959 = vpop.f32.mrf.mxu0
    %v1960 = vadd.f32 %v1940, %v1959
    %1961 = vdwg.mxu0
    %1962 = vmatpush.msra.mxu0 %v698
    %1963 = vmatpush.msra.mxu0 %v695
    %1964 = vmatpush.msra.mxu0 %v692
    %1965 = vmatpush.msra.mxu0 %v689
    %1966 = vmatpush.msra.mxu0 %v686
    %1967 = vmatpush.msra.mxu0 %v683
    %1968 = vmatpush.msra.mxu0 %v680
    %1969 = vmatpush.msra.mxu0 %v677
    %1970 = vmatpush.msra.mxu0 %v674
    %1971 = vmatpush.msra.mxu0 %v671
    %1972 = vmatpush.msra.mxu0 %v668
    %1973 = vmatpush.msra.mxu0 %v665
    %1974 = vmatpush.msra.mxu0 %v662
    %1975 = vmatpush.msra.mxu0 %v659
    %1976 = vmatpush.msra.mxu0 %v656
    %1977 = vmatpush.msra.mxu0 %v653
    %1978 = vmatmul.f32.gmra.mxu0 %v1820
    %v1979 = vpop.f32.mrf.mxu0
    %v1980 = vadd.f32 %v1826, %v1979
    %1981 = vdwg.mxu0
    %1982 = vmatpush.msra.mxu0 %v746
    %1983 = vmatpush.msra.mxu0 %v743
    %1984 = vmatpush.msra.mxu0 %v740
    %1985 = vmatpush.msra.mxu0 %v737
    %1986 = vmatpush.msra.mxu0 %v734
    %1987 = vmatpush.msra.mxu0 %v731
    %1988 = vmatpush.msra.mxu0 %v728
    %1989 = vmatpush.msra.mxu0 %v725
    %1990 = vmatpush.msra.mxu0 %v722
    %1991 = vmatpush.msra.mxu0 %v719
    %1992 = vmatpush.msra.mxu0 %v716
    %1993 = vmatpush.msra.mxu0 %v713
    %1994 = vmatpush.msra.mxu0 %v710
    %1995 = vmatpush.msra.mxu0 %v707
    %1996 = vmatpush.msra.mxu0 %v704
    %1997 = vmatpush.msra.mxu0 %v701
    %1998 = vmatmul.f32.gmra.mxu0 %v1821
    %v1999 = vpop.f32.mrf.mxu0
    %v2000 = vadd.f32 %v1980, %v1999
    %2001 = vdwg.mxu0
    %2002 = vmatpush.msra.mxu0 0.0
    %2003 = vmatpush.msra.mxu0 0.0
    %2004 = vmatpush.msra.mxu0 0.0
    %2005 = vmatpush.msra.mxu0 0.0
    %2006 = vmatpush.msra.mxu0 0.0
    %2007 = vmatpush.msra.mxu0 0.0
    %2008 = vmatpush.msra.mxu0 0.0
    %2009 = vmatpush.msra.mxu0 0.0
    %2010 = vmatpush.msra.mxu0 0.0
    %2011 = vmatpush.msra.mxu0 0.0
    %2012 = vmatpush.msra.mxu0 %v1840
    %2013 = vmatpush.msra.mxu0 %v761
    %2014 = vmatpush.msra.mxu0 %v758
    %2015 = vmatpush.msra.mxu0 %v755
    %2016 = vmatpush.msra.mxu0 %v752
    %2017 = vmatpush.msra.mxu0 %v749
    %2018 = vmatmul.f32.gmra.mxu0 %v1831
    %v2019 = vpop.f32.mrf.mxu0
    %v2020 = vadd.f32 %v2000, %v2019
    %2021 = vdwg.mxu0
    %v2022 = vld [vmem:[%s7] sm:$0x7]
    %v2024 = vperm.slane %v2022, 0
    %v2025 = vperm.slane %v2022, 1
    %v2026 = vperm.slane %v2022, 2
    %v2030 = vsub.f32 %v1900, %v2024
    %v2031 = vsub.f32 %v1960, %v2025
    %v2032 = vsub.f32 %v2020, %v2026
    %v2033 = vmul.f32 %v2030, %v2030
    %v2034 = vmul.f32 %v2031, %v2031
    %v2035 = vmul.f32 %v2032, %v2032
    %v2037 = vsel %vm1527, %v2035, 0
    %2039 = vmatpush.msra.mxu0 %v48
    %2040 = vmatpush.msra.mxu0 %v47
    %2041 = vmatpush.msra.mxu0 %v46
    %2042 = vmatpush.msra.mxu0 %v45
    %2043 = vmatpush.msra.mxu0 %v44
    %2044 = vmatpush.msra.mxu0 %v43
    %2045 = vmatpush.msra.mxu0 %v42
    %2046 = vmatpush.msra.mxu0 %v41
    %2047 = vmatpush.msra.mxu0 %v40
    %2048 = vmatpush.msra.mxu0 %v39
    %2049 = vmatpush.msra.mxu0 %v38
    %2050 = vmatpush.msra.mxu0 %v37
    %2051 = vmatpush.msra.mxu0 %v36
    %2052 = vmatpush.msra.mxu0 %v35
    %2053 = vmatpush.msra.mxu0 %v34
    %2054 = vmatpush.msra.mxu0 %v33
    %2055 = vmatmul.f32.gmra.mxu0 %v2033
    %v2056 = vpop.f32.mrf.mxu0
    %v2057 = vadd.f32 0.0, %v2056
    %2058 = vdwg.mxu0
    %2059 = vmatpush.msra.mxu0 %v64
    %2060 = vmatpush.msra.mxu0 %v63
    %2061 = vmatpush.msra.mxu0 %v62
    %2062 = vmatpush.msra.mxu0 %v61
    %2063 = vmatpush.msra.mxu0 %v60
    %2064 = vmatpush.msra.mxu0 %v59
    %2065 = vmatpush.msra.mxu0 %v58
    %2066 = vmatpush.msra.mxu0 %v57
    %2067 = vmatpush.msra.mxu0 %v56
    %2068 = vmatpush.msra.mxu0 %v55
    %2069 = vmatpush.msra.mxu0 %v54
    %2070 = vmatpush.msra.mxu0 %v53
    %2071 = vmatpush.msra.mxu0 %v52
    %2072 = vmatpush.msra.mxu0 %v51
    %2073 = vmatpush.msra.mxu0 %v50
    %2074 = vmatpush.msra.mxu0 %v49
    %2075 = vmatmul.f32.gmra.mxu0 %v2034
    %v2076 = vpop.f32.mrf.mxu0
    %v2077 = vadd.f32 %v2057, %v2076
    %2078 = vdwg.mxu0
    %2079 = vmatpush.msra.mxu0 0.0
    %2080 = vmatpush.msra.mxu0 0.0
    %2081 = vmatpush.msra.mxu0 0.0
    %2082 = vmatpush.msra.mxu0 0.0
    %2083 = vmatpush.msra.mxu0 0.0
    %2084 = vmatpush.msra.mxu0 0.0
    %2085 = vmatpush.msra.mxu0 0.0
    %2086 = vmatpush.msra.mxu0 0.0
    %2087 = vmatpush.msra.mxu0 0.0
    %2088 = vmatpush.msra.mxu0 0.0
    %2089 = vmatpush.msra.mxu0 %v1533
    %2090 = vmatpush.msra.mxu0 %v69
    %2091 = vmatpush.msra.mxu0 %v68
    %2092 = vmatpush.msra.mxu0 %v67
    %2093 = vmatpush.msra.mxu0 %v66
    %2094 = vmatpush.msra.mxu0 %v65
    %2095 = vmatmul.f32.gmra.mxu0 %v2037
    %v2096 = vpop.f32.mrf.mxu0
    %v2097 = vadd.f32 %v2077, %v2096
    %2098 = vdwg.mxu0
    %v2099 = vadd.f32 %v2097, 1.0
    %v2100 = vadd.f32 %v2097, 1e-05
    %v2101 = vrcp.pop %v2100
    %v2102 = vmul.f32 %v2100, %v2101
    %v2103 = vsub.f32 1.0, %v2102
    %v2104 = vmul.f32 %v2101, %v2103
    %v2105 = vadd.f32 %v2101, %v2104
    %vm2106 = vweird.f32 %v2100
    %vm2107 = vweird.f32 %v2101
    %vm2108 = vmor %vm2106, %vm2107
    %v2109 = vsel %vm2108, %v2101, %v2105
    %v2110 = vand.u32 2147483647, %v2100
    %vm2111 = vcmp.eq.f32.partialorder %v2110, 8.507059e+37
    %v2112 = vand.u32 %v2100, 2147483648
    %v2113 = vor.u32 1.1754944e-38, %v2112
    %v2114 = vsel %vm2111, %v2113, %v2109
    %v2115 = vmul.f32 %v2099, %v2114
    %v2116 = vlog2.pop %v2115
    %v2117 = vmul.f32 %v2116, 0.6931472
    %v2118 = vld [vmem:[%s8] sm:$0x3f]
    %v2120 = vsel %vm1677, %v2117, 0
    %v2123 = vsel %vm1681, %v2118, 0
    %2125 = vmatpush.msra.mxu0 0.0
    %2126 = vmatpush.msra.mxu0 0.0
    %2127 = vmatpush.msra.mxu0 0.0
    %2128 = vmatpush.msra.mxu0 0.0
    %2129 = vmatpush.msra.mxu0 0.0
    %2130 = vmatpush.msra.mxu0 0.0
    %2131 = vmatpush.msra.mxu0 0.0
    %2132 = vmatpush.msra.mxu0 0.0
    %2133 = vmatpush.msra.mxu0 0.0
    %2134 = vmatpush.msra.mxu0 0.0
    %2135 = vmatpush.msra.mxu0 0.0
    %2136 = vmatpush.msra.mxu0 0.0
    %2137 = vmatpush.msra.mxu0 0.0
    %2138 = vmatpush.msra.mxu0 0.0
    %2139 = vmatpush.msra.mxu0 0.0
    %2140 = vmatpush.msra.mxu0 %v2123
    %2141 = vmatmul.f32.gmra.mxu0 %v2120
    %v2142 = vpop.f32.mrf.mxu0
    %v2143 = vadd.f32 0.0, %v2142
    %2144 = vdwg.mxu0
    %vm2145 = vcmask 41984
    %v2146 = vsel %vm2145, %v2143, -inf
    %2147 = vmax.xlane.f32.xlu0 %v2146
    %v2148 = vpop.xlane.xlu0 %2147
    %v2149 = vsub.f32 %v2143, %v2148
    %v2150 = vmul.f32 %v2149, 1.442695
    %v2151 = vpow.pop %v2150
    %v2152 = vsel %vm2145, %v2151, 0.0
    %2153 = vadd.xlane.f32.xlu0 %v2152
    %v2154 = vpop.xlane.xlu0 %2153
    %v2155 = vrcp.pop %v2154
    %v2156 = vmul.f32 %v2154, %v2155
    %v2157 = vsub.f32 1.0, %v2156
    %v2158 = vmul.f32 %v2155, %v2157
    %v2159 = vadd.f32 %v2155, %v2158
    %vm2160 = vweird.f32 %v2154
    %vm2161 = vweird.f32 %v2155
    %vm2162 = vmor %vm2160, %vm2161
    %v2163 = vsel %vm2162, %v2155, %v2159
    %v2164 = vand.u32 2147483647, %v2154
    %vm2165 = vcmp.eq.f32.partialorder %v2164, 8.507059e+37
    %v2166 = vand.u32 %v2154, 2147483648
    %v2167 = vor.u32 1.1754944e-38, %v2166
    %v2168 = vsel %vm2165, %v2167, %v2163
    %v2169 = vmul.f32 %v2151, %v2168
    %2170 = vst.msk [vmem:[#allocation2] sm:$0x3] %vm2145, %v2169
    // Predicated region
    $region38: #{pwnet_forward.3} parent=1 // pred_check
      _
    $region39: #{pwnet_forward.3} parent=1 // pred_check_branch
      %2172 = sbr.rel (0) target = $region41
    $region40: #{pwnet_forward.3} parent=1 // pred_region
      %2174 = vsyncadd [#allocation3], 0
      %s2176 = sshll.u32 [#allocation2], 4
      %s2177 = int_to_ptr.vmem [resolvable:$true] %s2176
      %s2178 = sshll.u32 %s9, 4
      %s2179 = int_to_ptr.hbm [resolvable:$true] %s2178
      %2181 = dma.vmem_to_hbm [thread:$0]  %s2177, 32, %s2179, [#allocation3]
    $region41: #{pwnet_forward.3} parent=1 // pred_fallthru
      _
    // Predicated region
    $region42: #{pwnet_forward.3} parent=1 // pred_check
      _
    $region43: #{pwnet_forward.3} parent=1 // pred_check_branch
      %2183 = sbr.rel (0) target = $region45
    $region44: #{pwnet_forward.3} parent=1 // pred_region
      %2185 = dma.done [#allocation3], 32
    $region45: #{pwnet_forward.3} parent=1 // pred_fallthru
      _
    %2186 = vsyncpa [#allocation3], 1

</llo_original>
